<compile_context>
chip_gen: v5e
topology: v5e:2x2
jax: 0.10.0
libtpu: 0.0.40
codegen_flags: <defaults>
</compile_context>

<pallas_src>
import numpy as np
import jax
import jax.numpy as jnp
from jax.experimental import pallas as pl
from jax.experimental.pallas import tpu as pltpu

HIDDEN = 50        # true hidden size
INPUT = 1
GP = 128           # per-gate lane block (padded)
WCOLS = 4 * GP     # packed parameter blob width: [r | z | n_x | n_h]
ROWS = 392         # 128 (whh0) + 256 (fused layer-1) + 8 (vector rows, padded)


# ----------------------------------------------------------------------------
# Kernel
# ----------------------------------------------------------------------------
def gru_kernel(x_ref, w_ref, out_ref):
    # x_ref:   (B, T) float32  -- input sequence, time on the lane axis
    # w_ref:   (392, 512) float32 packed parameters (see pack_params)
    # out_ref: (B, 1) float32
    B, T = x_ref.shape

    # ---- one-time parameter loads (static, lane-aligned slices) -------------
    whh0 = w_ref[0:128, :]          # (128, 512)  layer-0 hidden weights [r|z|n|0]
    w1   = w_ref[128:384, :]        # (256, 512)  fused layer-1 weights  [r|z|n_x|n_h]
    wih0 = w_ref[384:385, :]        # (1, 512)    layer-0 input weights (input_size==1)
    bih0 = w_ref[385:386, :]        # (1, 512)
    bhh0 = w_ref[386:387, :]        # (1, 512)
    b1   = w_ref[387:388, :]        # (1, 512)    fused layer-1 bias
    wfc  = w_ref[388:389, 0:GP]     # (1, 128)    fc weight (zeros past lane 49)
    bfc  = w_ref[389:390, 0:1]      # (1, 1)      fc bias

    # Hoist broadcasts out of the unrolled loop (JAX does not CSE broadcasts).
    wih0_b = jnp.broadcast_to(wih0, (B, WCOLS))
    bih0_b = jnp.broadcast_to(bih0, (B, WCOLS))
    bhh0_b = jnp.broadcast_to(bhh0, (B, WCOLS))
    b1_b   = jnp.broadcast_to(b1,   (B, WCOLS))

    h0 = jnp.zeros((B, GP), jnp.float32)   # padded lanes 50..127 stay exactly 0
    h1 = jnp.zeros((B, GP), jnp.float32)

    # Fully unrolled time recurrence (T is small and static).
    for t in range(T):
        x_t = x_ref[:, t:t + 1]                               # (B, 1)

        # ---- layer 0: input projection on the VPU, hidden projection on MXU -
        gx0 = x_t * wih0_b + bih0_b                           # (B, 512) VPU only
        gh0 = jnp.dot(h0, whh0,
                      preferred_element_type=jnp.float32) + bhh0_b  # (B, 512)
        r0 = jax.nn.sigmoid(gx0[:, 0:GP] + gh0[:, 0:GP])
        z0 = jax.nn.sigmoid(gx0[:, GP:2 * GP] + gh0[:, GP:2 * GP])
        n0 = jnp.tanh(gx0[:, 2 * GP:3 * GP] + r0 * gh0[:, 2 * GP:3 * GP])
        h0 = (1.0 - z0) * n0 + z0 * h0

        # dropout(p=0.2) between GRU layers: identity in eval mode (omitted)

        # ---- layer 1: single fused matmul over [h0, h1] ----------------------
        hcat = jnp.concatenate([h0, h1], axis=-1)             # (B, 256)
        g1 = jnp.dot(hcat, w1,
                     preferred_element_type=jnp.float32) + b1_b     # (B, 512)
        r1 = jax.nn.sigmoid(g1[:, 0:GP])
        z1 = jax.nn.sigmoid(g1[:, GP:2 * GP])
        n1 = jnp.tanh(g1[:, 2 * GP:3 * GP] + r1 * g1[:, 3 * GP:4 * GP])
        h1 = (1.0 - z1) * n1 + z1 * h1

    # fc(50 -> 1): padded lanes of h1 and wfc are zero, so a lane reduction is exact.
    out_ref[...] = jnp.sum(h1 * wfc, axis=-1, keepdims=True) + bfc


# ----------------------------------------------------------------------------
# Parameter init (PyTorch shapes / init) and packing into one VMEM blob
# ----------------------------------------------------------------------------
def init_params(key):
    """PyTorch-style uniform(-1/sqrt(H), 1/sqrt(H)) init; PyTorch tensor shapes."""
    k = 1.0 / np.sqrt(HIDDEN)
    keys = jax.random.split(key, 10)

    def u(kk, shape):
        return jax.random.uniform(kk, shape, jnp.float32, minval=-k, maxval=k)

    w_ih0 = u(keys[0], (3 * HIDDEN, INPUT))
    w_hh0 = u(keys[1], (3 * HIDDEN, HIDDEN))
    b_ih0 = u(keys[2], (3 * HIDDEN,))
    b_hh0 = u(keys[3], (3 * HIDDEN,))
    w_ih1 = u(keys[4], (3 * HIDDEN, HIDDEN))
    w_hh1 = u(keys[5], (3 * HIDDEN, HIDDEN))
    b_ih1 = u(keys[6], (3 * HIDDEN,))
    b_hh1 = u(keys[7], (3 * HIDDEN,))
    w_fc  = u(keys[8], (1, HIDDEN))
    b_fc  = u(keys[9], (1,))
    return (w_ih0, w_hh0, b_ih0, b_hh0, w_ih1, w_hh1, b_ih1, b_hh1, w_fc, b_fc)


def pack_params(raw):
    """Pack all parameters into one (392, 512) f32 blob.

    Column blocks of 128 lanes: [r | z | n_x | n_h]; only lanes 0..49 of each
    block are live (rest zero).  Row layout:
      rows   0:128  layer-0 W_hh^T       (gate blocks r,z,n ; block 3 zero)
      rows 128:256  layer-1 W_ih^T       (gate blocks r,z,n_x)
      rows 256:384  layer-1 W_hh^T       (gate blocks r,z,n_h)
      row  384      layer-0 W_ih (input_size==1) per-gate
      row  385/386  layer-0 b_ih / b_hh
      row  387      fused layer-1 bias [b_ir+b_hr | b_iz+b_hz | b_in | b_hn]
      row  388      fc weight ; row 389 col 0: fc bias ; rows 390/391 padding
    """
    (w_ih0, w_hh0, b_ih0, b_hh0,
     w_ih1, w_hh1, b_ih1, b_hh1, w_fc, b_fc) = [np.asarray(p, np.float32)
                                                for p in raw]
    H = HIDDEN
    blob = np.zeros((ROWS, WCOLS), np.float32)

    # layer-0 hidden weights
    for g in range(3):
        blob[0:H, g * GP:g * GP + H] = w_hh0[g * H:(g + 1) * H, :].T

    # fused layer-1 weights: rows 128:256 act on h0 (W_ih), rows 256:384 on h1 (W_hh)
    for g, col in ((0, 0), (1, GP), (2, 2 * GP)):          # r, z, n_x
        blob[128:128 + H, col:col + H] = w_ih1[g * H:(g + 1) * H, :].T
    for g, col in ((0, 0), (1, GP), (2, 3 * GP)):          # r, z, n_h
        blob[256:256 + H, col:col + H] = w_hh1[g * H:(g + 1) * H, :].T

    # vector parameters
    for g in range(3):
        blob[384, g * GP:g * GP + H] = w_ih0[g * H:(g + 1) * H, 0]
        blob[385, g * GP:g * GP + H] = b_ih0[g * H:(g + 1) * H]
        blob[386, g * GP:g * GP + H] = b_hh0[g * H:(g + 1) * H]
    blob[387, 0:H]                 = b_ih1[0:H] + b_hh1[0:H]
    blob[387, GP:GP + H]           = b_ih1[H:2 * H] + b_hh1[H:2 * H]
    blob[387, 2 * GP:2 * GP + H]   = b_ih1[2 * H:3 * H]
    blob[387, 3 * GP:3 * GP + H]   = b_hh1[2 * H:3 * H]
    blob[388, 0:H] = w_fc[0, :]
    blob[389, 0] = b_fc[0]
    return jnp.asarray(blob)


# ----------------------------------------------------------------------------
# Public wrapper
# ----------------------------------------------------------------------------
def temperature_gru_forward(x, blob):
    """x: (B, T, 1) float32 (batch_first, like the PyTorch module). Returns (B,)."""
    B, T, _ = x.shape
    x2 = x.reshape(B, T)  # drop trailing size-1 dim; no transpose needed

    flops = T * (2 * B * GP * WCOLS + 2 * B * 2 * GP * WCOLS) + 2 * B * GP
    transcendentals = T * 6 * B * GP
    bytes_accessed = (B * T + ROWS * WCOLS + B) * 4

    out = pl.pallas_call(
        gru_kernel,
        out_shape=jax.ShapeDtypeStruct((B, 1), jnp.float32),
        in_specs=[pl.BlockSpec(memory_space=pltpu.MemorySpace.VMEM),
                  pl.BlockSpec(memory_space=pltpu.MemorySpace.VMEM)],
        out_specs=pl.BlockSpec(memory_space=pltpu.MemorySpace.VMEM),
        cost_estimate=pl.CostEstimate(flops=flops,
                                      transcendentals=transcendentals,
                                      bytes_accessed=bytes_accessed),
    )(x2, blob)
    return jnp.squeeze(out)  # torch.squeeze on (B, 1) -> (B,)


# ----------------------------------------------------------------------------
# Pure-JAX reference (straight from PyTorch GRU semantics, unpadded/unfused)
# ----------------------------------------------------------------------------
def reference_forward(x, raw):
    (w_ih0, w_hh0, b_ih0, b_hh0,
     w_ih1, w_hh1, b_ih1, b_hh1, w_fc, b_fc) = raw
    B, T, _ = x.shape
    H = HIDDEN

    def cell(h, inp, w_ih, w_hh, b_ih, b_hh):
        gx = inp @ w_ih.T + b_ih
        gh = h @ w_hh.T + b_hh
        r = jax.nn.sigmoid(gx[:, :H] + gh[:, :H])
        z = jax.nn.sigmoid(gx[:, H:2 * H] + gh[:, H:2 * H])
        n = jnp.tanh(gx[:, 2 * H:] + r * gh[:, 2 * H:])
        return (1.0 - z) * n + z * h

    h0 = jnp.zeros((B, H), jnp.float32)
    h1 = jnp.zeros((B, H), jnp.float32)
    for t in range(T):
        h0 = cell(h0, x[:, t, :], w_ih0, w_hh0, b_ih0, b_hh0)
        h1 = cell(h1, h0, w_ih1, w_hh1, b_ih1, b_hh1)
    return jnp.squeeze(h1 @ w_fc.T + b_fc)


if __name__ == "__main__":
    key = jax.random.PRNGKey(0)
    k_param, k_x = jax.random.split(key)

    raw = init_params(k_param)
    blob = pack_params(raw)

    B, T = 2, 8
    x = jax.random.normal(k_x, (B, T, INPUT), jnp.float32)

    y = temperature_gru_forward(x, blob)
    y = jax.block_until_ready(y)

    y_ref = reference_forward(x, raw)
    assert y.shape == (B,), y.shape
    assert jnp.allclose(y, y_ref, atol=1e-5, rtol=1e-5), (y, y_ref)

    print("KERNEL_OK")
</pallas_src>

<mosaic_0001>
module attributes {stable_mosaic.version = 11 : i64} {
  func.func @gru_kernel(%arg0: memref<2x8xf32, #tpu.memory_space<vmem>>, %arg1: memref<392x512xf32, #tpu.memory_space<vmem>>, %arg2: memref<2x1xf32, #tpu.memory_space<vmem>>) attributes {dimension_semantics = [], scalar_prefetch = 0 : i64, scratch_operands = 0 : i64, tpu.core_type = #tpu.core_type<tc>} {
    %c0 = arith.constant 0 : index
    %c0_0 = arith.constant 0 : index
    %0 = vector.load %arg1[%c0, %c0_0] : memref<392x512xf32, #tpu.memory_space<vmem>>, vector<128x512xf32>
    %c128 = arith.constant 128 : index
    %c0_1 = arith.constant 0 : index
    %1 = vector.load %arg1[%c128, %c0_1] : memref<392x512xf32, #tpu.memory_space<vmem>>, vector<256x512xf32>
    %c384 = arith.constant 384 : index
    %c0_2 = arith.constant 0 : index
    %2 = vector.load %arg1[%c384, %c0_2] : memref<392x512xf32, #tpu.memory_space<vmem>>, vector<1x512xf32>
    %c385 = arith.constant 385 : index
    %c0_3 = arith.constant 0 : index
    %3 = vector.load %arg1[%c385, %c0_3] : memref<392x512xf32, #tpu.memory_space<vmem>>, vector<1x512xf32>
    %c386 = arith.constant 386 : index
    %c0_4 = arith.constant 0 : index
    %4 = vector.load %arg1[%c386, %c0_4] : memref<392x512xf32, #tpu.memory_space<vmem>>, vector<1x512xf32>
    %c387 = arith.constant 387 : index
    %c0_5 = arith.constant 0 : index
    %5 = vector.load %arg1[%c387, %c0_5] : memref<392x512xf32, #tpu.memory_space<vmem>>, vector<1x512xf32>
    %c388 = arith.constant 388 : index
    %c0_6 = arith.constant 0 : index
    %6 = vector.load %arg1[%c388, %c0_6] : memref<392x512xf32, #tpu.memory_space<vmem>>, vector<1x128xf32>
    %c389 = arith.constant 389 : index
    %c0_7 = arith.constant 0 : index
    %7 = vector.load %arg1[%c389, %c0_7] : memref<392x512xf32, #tpu.memory_space<vmem>>, vector<1x1xf32>
    %8 = vector.shape_cast %2 : vector<1x512xf32> to vector<1x512xf32>
    %9 = vector.broadcast %8 : vector<1x512xf32> to vector<2x512xf32>
    %10 = vector.shape_cast %3 : vector<1x512xf32> to vector<1x512xf32>
    %11 = vector.broadcast %10 : vector<1x512xf32> to vector<2x512xf32>
    %12 = vector.shape_cast %4 : vector<1x512xf32> to vector<1x512xf32>
    %13 = vector.broadcast %12 : vector<1x512xf32> to vector<2x512xf32>
    %14 = vector.shape_cast %5 : vector<1x512xf32> to vector<1x512xf32>
    %15 = vector.broadcast %14 : vector<1x512xf32> to vector<2x512xf32>
    %cst = arith.constant 0.000000e+00 : f32
    %16 = vector.broadcast %cst : f32 to vector<2x128xf32>
    %cst_8 = arith.constant 0.000000e+00 : f32
    %17 = vector.broadcast %cst_8 : f32 to vector<2x128xf32>
    %c0_9 = arith.constant 0 : index
    %c0_10 = arith.constant 0 : index
    %18 = vector.load %arg0[%c0_9, %c0_10] : memref<2x8xf32, #tpu.memory_space<vmem>>, vector<2x1xf32>
    %19 = vector.broadcast %18 : vector<2x1xf32> to vector<2x512xf32>
    %20 = arith.mulf %19, %9 : vector<2x512xf32>
    %21 = arith.addf %20, %11 : vector<2x512xf32>
    %cst_11 = arith.constant dense<0.000000e+00> : vector<2x512xf32>
    %22 = tpu.matmul %16, %0, %cst_11 {dimension_numbers = #tpu.dot_dimension_numbers<[1], [0], [0], [1], [0, 0, 1, 1], [], []>} : vector<2x128xf32>, vector<128x512xf32>, vector<2x512xf32> -> vector<2x512xf32>
    %23 = arith.addf %22, %13 : vector<2x512xf32>
    %24 = vector.extract_strided_slice %21 {offsets = [0, 0], sizes = [2, 128], strides = [1, 1]} : vector<2x512xf32> to vector<2x128xf32>
    %25 = vector.extract_strided_slice %23 {offsets = [0, 0], sizes = [2, 128], strides = [1, 1]} : vector<2x512xf32> to vector<2x128xf32>
    %26 = arith.addf %24, %25 : vector<2x128xf32>
    %27 = arith.negf %26 : vector<2x128xf32>
    %28 = math.exp %27 : vector<2x128xf32>
    %cst_12 = arith.constant 1.000000e+00 : f32
    %29 = vector.broadcast %cst_12 : f32 to vector<2x128xf32>
    %30 = arith.addf %29, %28 : vector<2x128xf32>
    %31 = arith.divf %29, %30 : vector<2x128xf32>
    %32 = vector.extract_strided_slice %21 {offsets = [0, 128], sizes = [2, 128], strides = [1, 1]} : vector<2x512xf32> to vector<2x128xf32>
    %33 = vector.extract_strided_slice %23 {offsets = [0, 128], sizes = [2, 128], strides = [1, 1]} : vector<2x512xf32> to vector<2x128xf32>
    %34 = arith.addf %32, %33 : vector<2x128xf32>
    %35 = arith.negf %34 : vector<2x128xf32>
    %36 = math.exp %35 : vector<2x128xf32>
    %cst_13 = arith.constant 1.000000e+00 : f32
    %37 = vector.broadcast %cst_13 : f32 to vector<2x128xf32>
    %38 = arith.addf %37, %36 : vector<2x128xf32>
    %39 = arith.divf %37, %38 : vector<2x128xf32>
    %40 = vector.extract_strided_slice %21 {offsets = [0, 256], sizes = [2, 128], strides = [1, 1]} : vector<2x512xf32> to vector<2x128xf32>
    %41 = vector.extract_strided_slice %23 {offsets = [0, 256], sizes = [2, 128], strides = [1, 1]} : vector<2x512xf32> to vector<2x128xf32>
    %42 = arith.mulf %31, %41 : vector<2x128xf32>
    %43 = arith.addf %40, %42 : vector<2x128xf32>
    %44 = math.tanh %43 : vector<2x128xf32>
    %cst_14 = arith.constant 1.000000e+00 : f32
    %45 = vector.broadcast %cst_14 : f32 to vector<2x128xf32>
    %46 = arith.subf %45, %39 : vector<2x128xf32>
    %47 = arith.mulf %46, %44 : vector<2x128xf32>
    %48 = arith.mulf %39, %16 : vector<2x128xf32>
    %49 = arith.addf %47, %48 : vector<2x128xf32>
    %50 = tpu.concatenate %49, %17 in 1 : vector<2x128xf32>, vector<2x128xf32> -> vector<2x256xf32>
    %cst_15 = arith.constant dense<0.000000e+00> : vector<2x512xf32>
    %51 = tpu.matmul %50, %1, %cst_15 {dimension_numbers = #tpu.dot_dimension_numbers<[1], [0], [0], [1], [0, 0, 1, 1], [], []>} : vector<2x256xf32>, vector<256x512xf32>, vector<2x512xf32> -> vector<2x512xf32>
    %52 = arith.addf %51, %15 : vector<2x512xf32>
    %53 = vector.extract_strided_slice %52 {offsets = [0, 0], sizes = [2, 128], strides = [1, 1]} : vector<2x512xf32> to vector<2x128xf32>
    %54 = arith.negf %53 : vector<2x128xf32>
    %55 = math.exp %54 : vector<2x128xf32>
    %cst_16 = arith.constant 1.000000e+00 : f32
    %56 = vector.broadcast %cst_16 : f32 to vector<2x128xf32>
    %57 = arith.addf %56, %55 : vector<2x128xf32>
    %58 = arith.divf %56, %57 : vector<2x128xf32>
    %59 = vector.extract_strided_slice %52 {offsets = [0, 128], sizes = [2, 128], strides = [1, 1]} : vector<2x512xf32> to vector<2x128xf32>
    %60 = arith.negf %59 : vector<2x128xf32>
    %61 = math.exp %60 : vector<2x128xf32>
    %cst_17 = arith.constant 1.000000e+00 : f32
    %62 = vector.broadcast %cst_17 : f32 to vector<2x128xf32>
    %63 = arith.addf %62, %61 : vector<2x128xf32>
    %64 = arith.divf %62, %63 : vector<2x128xf32>
    %65 = vector.extract_strided_slice %52 {offsets = [0, 256], sizes = [2, 128], strides = [1, 1]} : vector<2x512xf32> to vector<2x128xf32>
    %66 = vector.extract_strided_slice %52 {offsets = [0, 384], sizes = [2, 128], strides = [1, 1]} : vector<2x512xf32> to vector<2x128xf32>
    %67 = arith.mulf %58, %66 : vector<2x128xf32>
    %68 = arith.addf %65, %67 : vector<2x128xf32>
    %69 = math.tanh %68 : vector<2x128xf32>
    %cst_18 = arith.constant 1.000000e+00 : f32
    %70 = vector.broadcast %cst_18 : f32 to vector<2x128xf32>
    %71 = arith.subf %70, %64 : vector<2x128xf32>
    %72 = arith.mulf %71, %69 : vector<2x128xf32>
    %73 = arith.mulf %64, %17 : vector<2x128xf32>
    %74 = arith.addf %72, %73 : vector<2x128xf32>
    %c0_19 = arith.constant 0 : index
    %c1 = arith.constant 1 : index
    %75 = vector.load %arg0[%c0_19, %c1] : memref<2x8xf32, #tpu.memory_space<vmem>>, vector<2x1xf32>
    %76 = vector.broadcast %75 : vector<2x1xf32> to vector<2x512xf32>
    %77 = arith.mulf %76, %9 : vector<2x512xf32>
    %78 = arith.addf %77, %11 : vector<2x512xf32>
    %cst_20 = arith.constant dense<0.000000e+00> : vector<2x512xf32>
    %79 = tpu.matmul %49, %0, %cst_20 {dimension_numbers = #tpu.dot_dimension_numbers<[1], [0], [0], [1], [0, 0, 1, 1], [], []>} : vector<2x128xf32>, vector<128x512xf32>, vector<2x512xf32> -> vector<2x512xf32>
    %80 = arith.addf %79, %13 : vector<2x512xf32>
    %81 = vector.extract_strided_slice %78 {offsets = [0, 0], sizes = [2, 128], strides = [1, 1]} : vector<2x512xf32> to vector<2x128xf32>
    %82 = vector.extract_strided_slice %80 {offsets = [0, 0], sizes = [2, 128], strides = [1, 1]} : vector<2x512xf32> to vector<2x128xf32>
    %83 = arith.addf %81, %82 : vector<2x128xf32>
    %84 = arith.negf %83 : vector<2x128xf32>
    %85 = math.exp %84 : vector<2x128xf32>
    %cst_21 = arith.constant 1.000000e+00 : f32
    %86 = vector.broadcast %cst_21 : f32 to vector<2x128xf32>
    %87 = arith.addf %86, %85 : vector<2x128xf32>
    %88 = arith.divf %86, %87 : vector<2x128xf32>
    %89 = vector.extract_strided_slice %78 {offsets = [0, 128], sizes = [2, 128], strides = [1, 1]} : vector<2x512xf32> to vector<2x128xf32>
    %90 = vector.extract_strided_slice %80 {offsets = [0, 128], sizes = [2, 128], strides = [1, 1]} : vector<2x512xf32> to vector<2x128xf32>
    %91 = arith.addf %89, %90 : vector<2x128xf32>
    %92 = arith.negf %91 : vector<2x128xf32>
    %93 = math.exp %92 : vector<2x128xf32>
    %cst_22 = arith.constant 1.000000e+00 : f32
    %94 = vector.broadcast %cst_22 : f32 to vector<2x128xf32>
    %95 = arith.addf %94, %93 : vector<2x128xf32>
    %96 = arith.divf %94, %95 : vector<2x128xf32>
    %97 = vector.extract_strided_slice %78 {offsets = [0, 256], sizes = [2, 128], strides = [1, 1]} : vector<2x512xf32> to vector<2x128xf32>
    %98 = vector.extract_strided_slice %80 {offsets = [0, 256], sizes = [2, 128], strides = [1, 1]} : vector<2x512xf32> to vector<2x128xf32>
    %99 = arith.mulf %88, %98 : vector<2x128xf32>
    %100 = arith.addf %97, %99 : vector<2x128xf32>
    %101 = math.tanh %100 : vector<2x128xf32>
    %cst_23 = arith.constant 1.000000e+00 : f32
    %102 = vector.broadcast %cst_23 : f32 to vector<2x128xf32>
    %103 = arith.subf %102, %96 : vector<2x128xf32>
    %104 = arith.mulf %103, %101 : vector<2x128xf32>
    %105 = arith.mulf %96, %49 : vector<2x128xf32>
    %106 = arith.addf %104, %105 : vector<2x128xf32>
    %107 = tpu.concatenate %106, %74 in 1 : vector<2x128xf32>, vector<2x128xf32> -> vector<2x256xf32>
    %cst_24 = arith.constant dense<0.000000e+00> : vector<2x512xf32>
    %108 = tpu.matmul %107, %1, %cst_24 {dimension_numbers = #tpu.dot_dimension_numbers<[1], [0], [0], [1], [0, 0, 1, 1], [], []>} : vector<2x256xf32>, vector<256x512xf32>, vector<2x512xf32> -> vector<2x512xf32>
    %109 = arith.addf %108, %15 : vector<2x512xf32>
    %110 = vector.extract_strided_slice %109 {offsets = [0, 0], sizes = [2, 128], strides = [1, 1]} : vector<2x512xf32> to vector<2x128xf32>
    %111 = arith.negf %110 : vector<2x128xf32>
    %112 = math.exp %111 : vector<2x128xf32>
    %cst_25 = arith.constant 1.000000e+00 : f32
    %113 = vector.broadcast %cst_25 : f32 to vector<2x128xf32>
    %114 = arith.addf %113, %112 : vector<2x128xf32>
    %115 = arith.divf %113, %114 : vector<2x128xf32>
    %116 = vector.extract_strided_slice %109 {offsets = [0, 128], sizes = [2, 128], strides = [1, 1]} : vector<2x512xf32> to vector<2x128xf32>
    %117 = arith.negf %116 : vector<2x128xf32>
    %118 = math.exp %117 : vector<2x128xf32>
    %cst_26 = arith.constant 1.000000e+00 : f32
    %119 = vector.broadcast %cst_26 : f32 to vector<2x128xf32>
    %120 = arith.addf %119, %118 : vector<2x128xf32>
    %121 = arith.divf %119, %120 : vector<2x128xf32>
    %122 = vector.extract_strided_slice %109 {offsets = [0, 256], sizes = [2, 128], strides = [1, 1]} : vector<2x512xf32> to vector<2x128xf32>
    %123 = vector.extract_strided_slice %109 {offsets = [0, 384], sizes = [2, 128], strides = [1, 1]} : vector<2x512xf32> to vector<2x128xf32>
    %124 = arith.mulf %115, %123 : vector<2x128xf32>
    %125 = arith.addf %122, %124 : vector<2x128xf32>
    %126 = math.tanh %125 : vector<2x128xf32>
    %cst_27 = arith.constant 1.000000e+00 : f32
    %127 = vector.broadcast %cst_27 : f32 to vector<2x128xf32>
    %128 = arith.subf %127, %121 : vector<2x128xf32>
    %129 = arith.mulf %128, %126 : vector<2x128xf32>
    %130 = arith.mulf %121, %74 : vector<2x128xf32>
    %131 = arith.addf %129, %130 : vector<2x128xf32>
    %c0_28 = arith.constant 0 : index
    %c2 = arith.constant 2 : index
    %132 = vector.load %arg0[%c0_28, %c2] : memref<2x8xf32, #tpu.memory_space<vmem>>, vector<2x1xf32>
    %133 = vector.broadcast %132 : vector<2x1xf32> to vector<2x512xf32>
    %134 = arith.mulf %133, %9 : vector<2x512xf32>
    %135 = arith.addf %134, %11 : vector<2x512xf32>
    %cst_29 = arith.constant dense<0.000000e+00> : vector<2x512xf32>
    %136 = tpu.matmul %106, %0, %cst_29 {dimension_numbers = #tpu.dot_dimension_numbers<[1], [0], [0], [1], [0, 0, 1, 1], [], []>} : vector<2x128xf32>, vector<128x512xf32>, vector<2x512xf32> -> vector<2x512xf32>
    %137 = arith.addf %136, %13 : vector<2x512xf32>
    %138 = vector.extract_strided_slice %135 {offsets = [0, 0], sizes = [2, 128], strides = [1, 1]} : vector<2x512xf32> to vector<2x128xf32>
    %139 = vector.extract_strided_slice %137 {offsets = [0, 0], sizes = [2, 128], strides = [1, 1]} : vector<2x512xf32> to vector<2x128xf32>
    %140 = arith.addf %138, %139 : vector<2x128xf32>
    %141 = arith.negf %140 : vector<2x128xf32>
    %142 = math.exp %141 : vector<2x128xf32>
    %cst_30 = arith.constant 1.000000e+00 : f32
    %143 = vector.broadcast %cst_30 : f32 to vector<2x128xf32>
    %144 = arith.addf %143, %142 : vector<2x128xf32>
    %145 = arith.divf %143, %144 : vector<2x128xf32>
    %146 = vector.extract_strided_slice %135 {offsets = [0, 128], sizes = [2, 128], strides = [1, 1]} : vector<2x512xf32> to vector<2x128xf32>
    %147 = vector.extract_strided_slice %137 {offsets = [0, 128], sizes = [2, 128], strides = [1, 1]} : vector<2x512xf32> to vector<2x128xf32>
    %148 = arith.addf %146, %147 : vector<2x128xf32>
    %149 = arith.negf %148 : vector<2x128xf32>
    %150 = math.exp %149 : vector<2x128xf32>
    %cst_31 = arith.constant 1.000000e+00 : f32
    %151 = vector.broadcast %cst_31 : f32 to vector<2x128xf32>
    %152 = arith.addf %151, %150 : vector<2x128xf32>
    %153 = arith.divf %151, %152 : vector<2x128xf32>
    %154 = vector.extract_strided_slice %135 {offsets = [0, 256], sizes = [2, 128], strides = [1, 1]} : vector<2x512xf32> to vector<2x128xf32>
    %155 = vector.extract_strided_slice %137 {offsets = [0, 256], sizes = [2, 128], strides = [1, 1]} : vector<2x512xf32> to vector<2x128xf32>
    %156 = arith.mulf %145, %155 : vector<2x128xf32>
    %157 = arith.addf %154, %156 : vector<2x128xf32>
    %158 = math.tanh %157 : vector<2x128xf32>
    %cst_32 = arith.constant 1.000000e+00 : f32
    %159 = vector.broadcast %cst_32 : f32 to vector<2x128xf32>
    %160 = arith.subf %159, %153 : vector<2x128xf32>
    %161 = arith.mulf %160, %158 : vector<2x128xf32>
    %162 = arith.mulf %153, %106 : vector<2x128xf32>
    %163 = arith.addf %161, %162 : vector<2x128xf32>
    %164 = tpu.concatenate %163, %131 in 1 : vector<2x128xf32>, vector<2x128xf32> -> vector<2x256xf32>
    %cst_33 = arith.constant dense<0.000000e+00> : vector<2x512xf32>
    %165 = tpu.matmul %164, %1, %cst_33 {dimension_numbers = #tpu.dot_dimension_numbers<[1], [0], [0], [1], [0, 0, 1, 1], [], []>} : vector<2x256xf32>, vector<256x512xf32>, vector<2x512xf32> -> vector<2x512xf32>
    %166 = arith.addf %165, %15 : vector<2x512xf32>
    %167 = vector.extract_strided_slice %166 {offsets = [0, 0], sizes = [2, 128], strides = [1, 1]} : vector<2x512xf32> to vector<2x128xf32>
    %168 = arith.negf %167 : vector<2x128xf32>
    %169 = math.exp %168 : vector<2x128xf32>
    %cst_34 = arith.constant 1.000000e+00 : f32
    %170 = vector.broadcast %cst_34 : f32 to vector<2x128xf32>
    %171 = arith.addf %170, %169 : vector<2x128xf32>
    %172 = arith.divf %170, %171 : vector<2x128xf32>
    %173 = vector.extract_strided_slice %166 {offsets = [0, 128], sizes = [2, 128], strides = [1, 1]} : vector<2x512xf32> to vector<2x128xf32>
    %174 = arith.negf %173 : vector<2x128xf32>
    %175 = math.exp %174 : vector<2x128xf32>
    %cst_35 = arith.constant 1.000000e+00 : f32
    %176 = vector.broadcast %cst_35 : f32 to vector<2x128xf32>
    %177 = arith.addf %176, %175 : vector<2x128xf32>
    %178 = arith.divf %176, %177 : vector<2x128xf32>
    %179 = vector.extract_strided_slice %166 {offsets = [0, 256], sizes = [2, 128], strides = [1, 1]} : vector<2x512xf32> to vector<2x128xf32>
    %180 = vector.extract_strided_slice %166 {offsets = [0, 384], sizes = [2, 128], strides = [1, 1]} : vector<2x512xf32> to vector<2x128xf32>
    %181 = arith.mulf %172, %180 : vector<2x128xf32>
    %182 = arith.addf %179, %181 : vector<2x128xf32>
    %183 = math.tanh %182 : vector<2x128xf32>
    %cst_36 = arith.constant 1.000000e+00 : f32
    %184 = vector.broadcast %cst_36 : f32 to vector<2x128xf32>
    %185 = arith.subf %184, %178 : vector<2x128xf32>
    %186 = arith.mulf %185, %183 : vector<2x128xf32>
    %187 = arith.mulf %178, %131 : vector<2x128xf32>
    %188 = arith.addf %186, %187 : vector<2x128xf32>
    %c0_37 = arith.constant 0 : index
    %c3 = arith.constant 3 : index
    %189 = vector.load %arg0[%c0_37, %c3] : memref<2x8xf32, #tpu.memory_space<vmem>>, vector<2x1xf32>
    %190 = vector.broadcast %189 : vector<2x1xf32> to vector<2x512xf32>
    %191 = arith.mulf %190, %9 : vector<2x512xf32>
    %192 = arith.addf %191, %11 : vector<2x512xf32>
    %cst_38 = arith.constant dense<0.000000e+00> : vector<2x512xf32>
    %193 = tpu.matmul %163, %0, %cst_38 {dimension_numbers = #tpu.dot_dimension_numbers<[1], [0], [0], [1], [0, 0, 1, 1], [], []>} : vector<2x128xf32>, vector<128x512xf32>, vector<2x512xf32> -> vector<2x512xf32>
    %194 = arith.addf %193, %13 : vector<2x512xf32>
    %195 = vector.extract_strided_slice %192 {offsets = [0, 0], sizes = [2, 128], strides = [1, 1]} : vector<2x512xf32> to vector<2x128xf32>
    %196 = vector.extract_strided_slice %194 {offsets = [0, 0], sizes = [2, 128], strides = [1, 1]} : vector<2x512xf32> to vector<2x128xf32>
    %197 = arith.addf %195, %196 : vector<2x128xf32>
    %198 = arith.negf %197 : vector<2x128xf32>
    %199 = math.exp %198 : vector<2x128xf32>
    %cst_39 = arith.constant 1.000000e+00 : f32
    %200 = vector.broadcast %cst_39 : f32 to vector<2x128xf32>
    %201 = arith.addf %200, %199 : vector<2x128xf32>
    %202 = arith.divf %200, %201 : vector<2x128xf32>
    %203 = vector.extract_strided_slice %192 {offsets = [0, 128], sizes = [2, 128], strides = [1, 1]} : vector<2x512xf32> to vector<2x128xf32>
    %204 = vector.extract_strided_slice %194 {offsets = [0, 128], sizes = [2, 128], strides = [1, 1]} : vector<2x512xf32> to vector<2x128xf32>
    %205 = arith.addf %203, %204 : vector<2x128xf32>
    %206 = arith.negf %205 : vector<2x128xf32>
    %207 = math.exp %206 : vector<2x128xf32>
    %cst_40 = arith.constant 1.000000e+00 : f32
    %208 = vector.broadcast %cst_40 : f32 to vector<2x128xf32>
    %209 = arith.addf %208, %207 : vector<2x128xf32>
    %210 = arith.divf %208, %209 : vector<2x128xf32>
    %211 = vector.extract_strided_slice %192 {offsets = [0, 256], sizes = [2, 128], strides = [1, 1]} : vector<2x512xf32> to vector<2x128xf32>
    %212 = vector.extract_strided_slice %194 {offsets = [0, 256], sizes = [2, 128], strides = [1, 1]} : vector<2x512xf32> to vector<2x128xf32>
    %213 = arith.mulf %202, %212 : vector<2x128xf32>
    %214 = arith.addf %211, %213 : vector<2x128xf32>
    %215 = math.tanh %214 : vector<2x128xf32>
    %cst_41 = arith.constant 1.000000e+00 : f32
    %216 = vector.broadcast %cst_41 : f32 to vector<2x128xf32>
    %217 = arith.subf %216, %210 : vector<2x128xf32>
    %218 = arith.mulf %217, %215 : vector<2x128xf32>
    %219 = arith.mulf %210, %163 : vector<2x128xf32>
    %220 = arith.addf %218, %219 : vector<2x128xf32>
    %221 = tpu.concatenate %220, %188 in 1 : vector<2x128xf32>, vector<2x128xf32> -> vector<2x256xf32>
    %cst_42 = arith.constant dense<0.000000e+00> : vector<2x512xf32>
    %222 = tpu.matmul %221, %1, %cst_42 {dimension_numbers = #tpu.dot_dimension_numbers<[1], [0], [0], [1], [0, 0, 1, 1], [], []>} : vector<2x256xf32>, vector<256x512xf32>, vector<2x512xf32> -> vector<2x512xf32>
    %223 = arith.addf %222, %15 : vector<2x512xf32>
    %224 = vector.extract_strided_slice %223 {offsets = [0, 0], sizes = [2, 128], strides = [1, 1]} : vector<2x512xf32> to vector<2x128xf32>
    %225 = arith.negf %224 : vector<2x128xf32>
    %226 = math.exp %225 : vector<2x128xf32>
    %cst_43 = arith.constant 1.000000e+00 : f32
    %227 = vector.broadcast %cst_43 : f32 to vector<2x128xf32>
    %228 = arith.addf %227, %226 : vector<2x128xf32>
    %229 = arith.divf %227, %228 : vector<2x128xf32>
    %230 = vector.extract_strided_slice %223 {offsets = [0, 128], sizes = [2, 128], strides = [1, 1]} : vector<2x512xf32> to vector<2x128xf32>
    %231 = arith.negf %230 : vector<2x128xf32>
    %232 = math.exp %231 : vector<2x128xf32>
    %cst_44 = arith.constant 1.000000e+00 : f32
    %233 = vector.broadcast %cst_44 : f32 to vector<2x128xf32>
    %234 = arith.addf %233, %232 : vector<2x128xf32>
    %235 = arith.divf %233, %234 : vector<2x128xf32>
    %236 = vector.extract_strided_slice %223 {offsets = [0, 256], sizes = [2, 128], strides = [1, 1]} : vector<2x512xf32> to vector<2x128xf32>
    %237 = vector.extract_strided_slice %223 {offsets = [0, 384], sizes = [2, 128], strides = [1, 1]} : vector<2x512xf32> to vector<2x128xf32>
    %238 = arith.mulf %229, %237 : vector<2x128xf32>
    %239 = arith.addf %236, %238 : vector<2x128xf32>
    %240 = math.tanh %239 : vector<2x128xf32>
    %cst_45 = arith.constant 1.000000e+00 : f32
    %241 = vector.broadcast %cst_45 : f32 to vector<2x128xf32>
    %242 = arith.subf %241, %235 : vector<2x128xf32>
    %243 = arith.mulf %242, %240 : vector<2x128xf32>
    %244 = arith.mulf %235, %188 : vector<2x128xf32>
    %245 = arith.addf %243, %244 : vector<2x128xf32>
    %c0_46 = arith.constant 0 : index
    %c4 = arith.constant 4 : index
    %246 = vector.load %arg0[%c0_46, %c4] : memref<2x8xf32, #tpu.memory_space<vmem>>, vector<2x1xf32>
    %247 = vector.broadcast %246 : vector<2x1xf32> to vector<2x512xf32>
    %248 = arith.mulf %247, %9 : vector<2x512xf32>
    %249 = arith.addf %248, %11 : vector<2x512xf32>
    %cst_47 = arith.constant dense<0.000000e+00> : vector<2x512xf32>
    %250 = tpu.matmul %220, %0, %cst_47 {dimension_numbers = #tpu.dot_dimension_numbers<[1], [0], [0], [1], [0, 0, 1, 1], [], []>} : vector<2x128xf32>, vector<128x512xf32>, vector<2x512xf32> -> vector<2x512xf32>
    %251 = arith.addf %250, %13 : vector<2x512xf32>
    %252 = vector.extract_strided_slice %249 {offsets = [0, 0], sizes = [2, 128], strides = [1, 1]} : vector<2x512xf32> to vector<2x128xf32>
    %253 = vector.extract_strided_slice %251 {offsets = [0, 0], sizes = [2, 128], strides = [1, 1]} : vector<2x512xf32> to vector<2x128xf32>
    %254 = arith.addf %252, %253 : vector<2x128xf32>
    %255 = arith.negf %254 : vector<2x128xf32>
    %256 = math.exp %255 : vector<2x128xf32>
    %cst_48 = arith.constant 1.000000e+00 : f32
    %257 = vector.broadcast %cst_48 : f32 to vector<2x128xf32>
    %258 = arith.addf %257, %256 : vector<2x128xf32>
    %259 = arith.divf %257, %258 : vector<2x128xf32>
    %260 = vector.extract_strided_slice %249 {offsets = [0, 128], sizes = [2, 128], strides = [1, 1]} : vector<2x512xf32> to vector<2x128xf32>
    %261 = vector.extract_strided_slice %251 {offsets = [0, 128], sizes = [2, 128], strides = [1, 1]} : vector<2x512xf32> to vector<2x128xf32>
    %262 = arith.addf %260, %261 : vector<2x128xf32>
    %263 = arith.negf %262 : vector<2x128xf32>
    %264 = math.exp %263 : vector<2x128xf32>
    %cst_49 = arith.constant 1.000000e+00 : f32
    %265 = vector.broadcast %cst_49 : f32 to vector<2x128xf32>
    %266 = arith.addf %265, %264 : vector<2x128xf32>
    %267 = arith.divf %265, %266 : vector<2x128xf32>
    %268 = vector.extract_strided_slice %249 {offsets = [0, 256], sizes = [2, 128], strides = [1, 1]} : vector<2x512xf32> to vector<2x128xf32>
    %269 = vector.extract_strided_slice %251 {offsets = [0, 256], sizes = [2, 128], strides = [1, 1]} : vector<2x512xf32> to vector<2x128xf32>
    %270 = arith.mulf %259, %269 : vector<2x128xf32>
    %271 = arith.addf %268, %270 : vector<2x128xf32>
    %272 = math.tanh %271 : vector<2x128xf32>
    %cst_50 = arith.constant 1.000000e+00 : f32
    %273 = vector.broadcast %cst_50 : f32 to vector<2x128xf32>
    %274 = arith.subf %273, %267 : vector<2x128xf32>
    %275 = arith.mulf %274, %272 : vector<2x128xf32>
    %276 = arith.mulf %267, %220 : vector<2x128xf32>
    %277 = arith.addf %275, %276 : vector<2x128xf32>
    %278 = tpu.concatenate %277, %245 in 1 : vector<2x128xf32>, vector<2x128xf32> -> vector<2x256xf32>
    %cst_51 = arith.constant dense<0.000000e+00> : vector<2x512xf32>
    %279 = tpu.matmul %278, %1, %cst_51 {dimension_numbers = #tpu.dot_dimension_numbers<[1], [0], [0], [1], [0, 0, 1, 1], [], []>} : vector<2x256xf32>, vector<256x512xf32>, vector<2x512xf32> -> vector<2x512xf32>
    %280 = arith.addf %279, %15 : vector<2x512xf32>
    %281 = vector.extract_strided_slice %280 {offsets = [0, 0], sizes = [2, 128], strides = [1, 1]} : vector<2x512xf32> to vector<2x128xf32>
    %282 = arith.negf %281 : vector<2x128xf32>
    %283 = math.exp %282 : vector<2x128xf32>
    %cst_52 = arith.constant 1.000000e+00 : f32
    %284 = vector.broadcast %cst_52 : f32 to vector<2x128xf32>
    %285 = arith.addf %284, %283 : vector<2x128xf32>
    %286 = arith.divf %284, %285 : vector<2x128xf32>
    %287 = vector.extract_strided_slice %280 {offsets = [0, 128], sizes = [2, 128], strides = [1, 1]} : vector<2x512xf32> to vector<2x128xf32>
    %288 = arith.negf %287 : vector<2x128xf32>
    %289 = math.exp %288 : vector<2x128xf32>
    %cst_53 = arith.constant 1.000000e+00 : f32
    %290 = vector.broadcast %cst_53 : f32 to vector<2x128xf32>
    %291 = arith.addf %290, %289 : vector<2x128xf32>
    %292 = arith.divf %290, %291 : vector<2x128xf32>
    %293 = vector.extract_strided_slice %280 {offsets = [0, 256], sizes = [2, 128], strides = [1, 1]} : vector<2x512xf32> to vector<2x128xf32>
    %294 = vector.extract_strided_slice %280 {offsets = [0, 384], sizes = [2, 128], strides = [1, 1]} : vector<2x512xf32> to vector<2x128xf32>
    %295 = arith.mulf %286, %294 : vector<2x128xf32>
    %296 = arith.addf %293, %295 : vector<2x128xf32>
    %297 = math.tanh %296 : vector<2x128xf32>
    %cst_54 = arith.constant 1.000000e+00 : f32
    %298 = vector.broadcast %cst_54 : f32 to vector<2x128xf32>
    %299 = arith.subf %298, %292 : vector<2x128xf32>
    %300 = arith.mulf %299, %297 : vector<2x128xf32>
    %301 = arith.mulf %292, %245 : vector<2x128xf32>
    %302 = arith.addf %300, %301 : vector<2x128xf32>
    %c0_55 = arith.constant 0 : index
    %c5 = arith.constant 5 : index
    %303 = vector.load %arg0[%c0_55, %c5] : memref<2x8xf32, #tpu.memory_space<vmem>>, vector<2x1xf32>
    %304 = vector.broadcast %303 : vector<2x1xf32> to vector<2x512xf32>
    %305 = arith.mulf %304, %9 : vector<2x512xf32>
    %306 = arith.addf %305, %11 : vector<2x512xf32>
    %cst_56 = arith.constant dense<0.000000e+00> : vector<2x512xf32>
    %307 = tpu.matmul %277, %0, %cst_56 {dimension_numbers = #tpu.dot_dimension_numbers<[1], [0], [0], [1], [0, 0, 1, 1], [], []>} : vector<2x128xf32>, vector<128x512xf32>, vector<2x512xf32> -> vector<2x512xf32>
    %308 = arith.addf %307, %13 : vector<2x512xf32>
    %309 = vector.extract_strided_slice %306 {offsets = [0, 0], sizes = [2, 128], strides = [1, 1]} : vector<2x512xf32> to vector<2x128xf32>
    %310 = vector.extract_strided_slice %308 {offsets = [0, 0], sizes = [2, 128], strides = [1, 1]} : vector<2x512xf32> to vector<2x128xf32>
    %311 = arith.addf %309, %310 : vector<2x128xf32>
    %312 = arith.negf %311 : vector<2x128xf32>
    %313 = math.exp %312 : vector<2x128xf32>
    %cst_57 = arith.constant 1.000000e+00 : f32
    %314 = vector.broadcast %cst_57 : f32 to vector<2x128xf32>
    %315 = arith.addf %314, %313 : vector<2x128xf32>
    %316 = arith.divf %314, %315 : vector<2x128xf32>
    %317 = vector.extract_strided_slice %306 {offsets = [0, 128], sizes = [2, 128], strides = [1, 1]} : vector<2x512xf32> to vector<2x128xf32>
    %318 = vector.extract_strided_slice %308 {offsets = [0, 128], sizes = [2, 128], strides = [1, 1]} : vector<2x512xf32> to vector<2x128xf32>
    %319 = arith.addf %317, %318 : vector<2x128xf32>
    %320 = arith.negf %319 : vector<2x128xf32>
    %321 = math.exp %320 : vector<2x128xf32>
    %cst_58 = arith.constant 1.000000e+00 : f32
    %322 = vector.broadcast %cst_58 : f32 to vector<2x128xf32>
    %323 = arith.addf %322, %321 : vector<2x128xf32>
    %324 = arith.divf %322, %323 : vector<2x128xf32>
    %325 = vector.extract_strided_slice %306 {offsets = [0, 256], sizes = [2, 128], strides = [1, 1]} : vector<2x512xf32> to vector<2x128xf32>
    %326 = vector.extract_strided_slice %308 {offsets = [0, 256], sizes = [2, 128], strides = [1, 1]} : vector<2x512xf32> to vector<2x128xf32>
    %327 = arith.mulf %316, %326 : vector<2x128xf32>
    %328 = arith.addf %325, %327 : vector<2x128xf32>
    %329 = math.tanh %328 : vector<2x128xf32>
    %cst_59 = arith.constant 1.000000e+00 : f32
    %330 = vector.broadcast %cst_59 : f32 to vector<2x128xf32>
    %331 = arith.subf %330, %324 : vector<2x128xf32>
    %332 = arith.mulf %331, %329 : vector<2x128xf32>
    %333 = arith.mulf %324, %277 : vector<2x128xf32>
    %334 = arith.addf %332, %333 : vector<2x128xf32>
    %335 = tpu.concatenate %334, %302 in 1 : vector<2x128xf32>, vector<2x128xf32> -> vector<2x256xf32>
    %cst_60 = arith.constant dense<0.000000e+00> : vector<2x512xf32>
    %336 = tpu.matmul %335, %1, %cst_60 {dimension_numbers = #tpu.dot_dimension_numbers<[1], [0], [0], [1], [0, 0, 1, 1], [], []>} : vector<2x256xf32>, vector<256x512xf32>, vector<2x512xf32> -> vector<2x512xf32>
    %337 = arith.addf %336, %15 : vector<2x512xf32>
    %338 = vector.extract_strided_slice %337 {offsets = [0, 0], sizes = [2, 128], strides = [1, 1]} : vector<2x512xf32> to vector<2x128xf32>
    %339 = arith.negf %338 : vector<2x128xf32>
    %340 = math.exp %339 : vector<2x128xf32>
    %cst_61 = arith.constant 1.000000e+00 : f32
    %341 = vector.broadcast %cst_61 : f32 to vector<2x128xf32>
    %342 = arith.addf %341, %340 : vector<2x128xf32>
    %343 = arith.divf %341, %342 : vector<2x128xf32>
    %344 = vector.extract_strided_slice %337 {offsets = [0, 128], sizes = [2, 128], strides = [1, 1]} : vector<2x512xf32> to vector<2x128xf32>
    %345 = arith.negf %344 : vector<2x128xf32>
    %346 = math.exp %345 : vector<2x128xf32>
    %cst_62 = arith.constant 1.000000e+00 : f32
    %347 = vector.broadcast %cst_62 : f32 to vector<2x128xf32>
    %348 = arith.addf %347, %346 : vector<2x128xf32>
    %349 = arith.divf %347, %348 : vector<2x128xf32>
    %350 = vector.extract_strided_slice %337 {offsets = [0, 256], sizes = [2, 128], strides = [1, 1]} : vector<2x512xf32> to vector<2x128xf32>
    %351 = vector.extract_strided_slice %337 {offsets = [0, 384], sizes = [2, 128], strides = [1, 1]} : vector<2x512xf32> to vector<2x128xf32>
    %352 = arith.mulf %343, %351 : vector<2x128xf32>
    %353 = arith.addf %350, %352 : vector<2x128xf32>
    %354 = math.tanh %353 : vector<2x128xf32>
    %cst_63 = arith.constant 1.000000e+00 : f32
    %355 = vector.broadcast %cst_63 : f32 to vector<2x128xf32>
    %356 = arith.subf %355, %349 : vector<2x128xf32>
    %357 = arith.mulf %356, %354 : vector<2x128xf32>
    %358 = arith.mulf %349, %302 : vector<2x128xf32>
    %359 = arith.addf %357, %358 : vector<2x128xf32>
    %c0_64 = arith.constant 0 : index
    %c6 = arith.constant 6 : index
    %360 = vector.load %arg0[%c0_64, %c6] : memref<2x8xf32, #tpu.memory_space<vmem>>, vector<2x1xf32>
    %361 = vector.broadcast %360 : vector<2x1xf32> to vector<2x512xf32>
    %362 = arith.mulf %361, %9 : vector<2x512xf32>
    %363 = arith.addf %362, %11 : vector<2x512xf32>
    %cst_65 = arith.constant dense<0.000000e+00> : vector<2x512xf32>
    %364 = tpu.matmul %334, %0, %cst_65 {dimension_numbers = #tpu.dot_dimension_numbers<[1], [0], [0], [1], [0, 0, 1, 1], [], []>} : vector<2x128xf32>, vector<128x512xf32>, vector<2x512xf32> -> vector<2x512xf32>
    %365 = arith.addf %364, %13 : vector<2x512xf32>
    %366 = vector.extract_strided_slice %363 {offsets = [0, 0], sizes = [2, 128], strides = [1, 1]} : vector<2x512xf32> to vector<2x128xf32>
    %367 = vector.extract_strided_slice %365 {offsets = [0, 0], sizes = [2, 128], strides = [1, 1]} : vector<2x512xf32> to vector<2x128xf32>
    %368 = arith.addf %366, %367 : vector<2x128xf32>
    %369 = arith.negf %368 : vector<2x128xf32>
    %370 = math.exp %369 : vector<2x128xf32>
    %cst_66 = arith.constant 1.000000e+00 : f32
    %371 = vector.broadcast %cst_66 : f32 to vector<2x128xf32>
    %372 = arith.addf %371, %370 : vector<2x128xf32>
    %373 = arith.divf %371, %372 : vector<2x128xf32>
    %374 = vector.extract_strided_slice %363 {offsets = [0, 128], sizes = [2, 128], strides = [1, 1]} : vector<2x512xf32> to vector<2x128xf32>
    %375 = vector.extract_strided_slice %365 {offsets = [0, 128], sizes = [2, 128], strides = [1, 1]} : vector<2x512xf32> to vector<2x128xf32>
    %376 = arith.addf %374, %375 : vector<2x128xf32>
    %377 = arith.negf %376 : vector<2x128xf32>
    %378 = math.exp %377 : vector<2x128xf32>
    %cst_67 = arith.constant 1.000000e+00 : f32
    %379 = vector.broadcast %cst_67 : f32 to vector<2x128xf32>
    %380 = arith.addf %379, %378 : vector<2x128xf32>
    %381 = arith.divf %379, %380 : vector<2x128xf32>
    %382 = vector.extract_strided_slice %363 {offsets = [0, 256], sizes = [2, 128], strides = [1, 1]} : vector<2x512xf32> to vector<2x128xf32>
    %383 = vector.extract_strided_slice %365 {offsets = [0, 256], sizes = [2, 128], strides = [1, 1]} : vector<2x512xf32> to vector<2x128xf32>
    %384 = arith.mulf %373, %383 : vector<2x128xf32>
    %385 = arith.addf %382, %384 : vector<2x128xf32>
    %386 = math.tanh %385 : vector<2x128xf32>
    %cst_68 = arith.constant 1.000000e+00 : f32
    %387 = vector.broadcast %cst_68 : f32 to vector<2x128xf32>
    %388 = arith.subf %387, %381 : vector<2x128xf32>
    %389 = arith.mulf %388, %386 : vector<2x128xf32>
    %390 = arith.mulf %381, %334 : vector<2x128xf32>
    %391 = arith.addf %389, %390 : vector<2x128xf32>
    %392 = tpu.concatenate %391, %359 in 1 : vector<2x128xf32>, vector<2x128xf32> -> vector<2x256xf32>
    %cst_69 = arith.constant dense<0.000000e+00> : vector<2x512xf32>
    %393 = tpu.matmul %392, %1, %cst_69 {dimension_numbers = #tpu.dot_dimension_numbers<[1], [0], [0], [1], [0, 0, 1, 1], [], []>} : vector<2x256xf32>, vector<256x512xf32>, vector<2x512xf32> -> vector<2x512xf32>
    %394 = arith.addf %393, %15 : vector<2x512xf32>
    %395 = vector.extract_strided_slice %394 {offsets = [0, 0], sizes = [2, 128], strides = [1, 1]} : vector<2x512xf32> to vector<2x128xf32>
    %396 = arith.negf %395 : vector<2x128xf32>
    %397 = math.exp %396 : vector<2x128xf32>
    %cst_70 = arith.constant 1.000000e+00 : f32
    %398 = vector.broadcast %cst_70 : f32 to vector<2x128xf32>
    %399 = arith.addf %398, %397 : vector<2x128xf32>
    %400 = arith.divf %398, %399 : vector<2x128xf32>
    %401 = vector.extract_strided_slice %394 {offsets = [0, 128], sizes = [2, 128], strides = [1, 1]} : vector<2x512xf32> to vector<2x128xf32>
    %402 = arith.negf %401 : vector<2x128xf32>
    %403 = math.exp %402 : vector<2x128xf32>
    %cst_71 = arith.constant 1.000000e+00 : f32
    %404 = vector.broadcast %cst_71 : f32 to vector<2x128xf32>
    %405 = arith.addf %404, %403 : vector<2x128xf32>
    %406 = arith.divf %404, %405 : vector<2x128xf32>
    %407 = vector.extract_strided_slice %394 {offsets = [0, 256], sizes = [2, 128], strides = [1, 1]} : vector<2x512xf32> to vector<2x128xf32>
    %408 = vector.extract_strided_slice %394 {offsets = [0, 384], sizes = [2, 128], strides = [1, 1]} : vector<2x512xf32> to vector<2x128xf32>
    %409 = arith.mulf %400, %408 : vector<2x128xf32>
    %410 = arith.addf %407, %409 : vector<2x128xf32>
    %411 = math.tanh %410 : vector<2x128xf32>
    %cst_72 = arith.constant 1.000000e+00 : f32
    %412 = vector.broadcast %cst_72 : f32 to vector<2x128xf32>
    %413 = arith.subf %412, %406 : vector<2x128xf32>
    %414 = arith.mulf %413, %411 : vector<2x128xf32>
    %415 = arith.mulf %406, %359 : vector<2x128xf32>
    %416 = arith.addf %414, %415 : vector<2x128xf32>
    %c0_73 = arith.constant 0 : index
    %c7 = arith.constant 7 : index
    %417 = vector.load %arg0[%c0_73, %c7] : memref<2x8xf32, #tpu.memory_space<vmem>>, vector<2x1xf32>
    %418 = vector.broadcast %417 : vector<2x1xf32> to vector<2x512xf32>
    %419 = arith.mulf %418, %9 : vector<2x512xf32>
    %420 = arith.addf %419, %11 : vector<2x512xf32>
    %cst_74 = arith.constant dense<0.000000e+00> : vector<2x512xf32>
    %421 = tpu.matmul %391, %0, %cst_74 {dimension_numbers = #tpu.dot_dimension_numbers<[1], [0], [0], [1], [0, 0, 1, 1], [], []>} : vector<2x128xf32>, vector<128x512xf32>, vector<2x512xf32> -> vector<2x512xf32>
    %422 = arith.addf %421, %13 : vector<2x512xf32>
    %423 = vector.extract_strided_slice %420 {offsets = [0, 0], sizes = [2, 128], strides = [1, 1]} : vector<2x512xf32> to vector<2x128xf32>
    %424 = vector.extract_strided_slice %422 {offsets = [0, 0], sizes = [2, 128], strides = [1, 1]} : vector<2x512xf32> to vector<2x128xf32>
    %425 = arith.addf %423, %424 : vector<2x128xf32>
    %426 = arith.negf %425 : vector<2x128xf32>
    %427 = math.exp %426 : vector<2x128xf32>
    %cst_75 = arith.constant 1.000000e+00 : f32
    %428 = vector.broadcast %cst_75 : f32 to vector<2x128xf32>
    %429 = arith.addf %428, %427 : vector<2x128xf32>
    %430 = arith.divf %428, %429 : vector<2x128xf32>
    %431 = vector.extract_strided_slice %420 {offsets = [0, 128], sizes = [2, 128], strides = [1, 1]} : vector<2x512xf32> to vector<2x128xf32>
    %432 = vector.extract_strided_slice %422 {offsets = [0, 128], sizes = [2, 128], strides = [1, 1]} : vector<2x512xf32> to vector<2x128xf32>
    %433 = arith.addf %431, %432 : vector<2x128xf32>
    %434 = arith.negf %433 : vector<2x128xf32>
    %435 = math.exp %434 : vector<2x128xf32>
    %cst_76 = arith.constant 1.000000e+00 : f32
    %436 = vector.broadcast %cst_76 : f32 to vector<2x128xf32>
    %437 = arith.addf %436, %435 : vector<2x128xf32>
    %438 = arith.divf %436, %437 : vector<2x128xf32>
    %439 = vector.extract_strided_slice %420 {offsets = [0, 256], sizes = [2, 128], strides = [1, 1]} : vector<2x512xf32> to vector<2x128xf32>
    %440 = vector.extract_strided_slice %422 {offsets = [0, 256], sizes = [2, 128], strides = [1, 1]} : vector<2x512xf32> to vector<2x128xf32>
    %441 = arith.mulf %430, %440 : vector<2x128xf32>
    %442 = arith.addf %439, %441 : vector<2x128xf32>
    %443 = math.tanh %442 : vector<2x128xf32>
    %cst_77 = arith.constant 1.000000e+00 : f32
    %444 = vector.broadcast %cst_77 : f32 to vector<2x128xf32>
    %445 = arith.subf %444, %438 : vector<2x128xf32>
    %446 = arith.mulf %445, %443 : vector<2x128xf32>
    %447 = arith.mulf %438, %391 : vector<2x128xf32>
    %448 = arith.addf %446, %447 : vector<2x128xf32>
    %449 = tpu.concatenate %448, %416 in 1 : vector<2x128xf32>, vector<2x128xf32> -> vector<2x256xf32>
    %cst_78 = arith.constant dense<0.000000e+00> : vector<2x512xf32>
    %450 = tpu.matmul %449, %1, %cst_78 {dimension_numbers = #tpu.dot_dimension_numbers<[1], [0], [0], [1], [0, 0, 1, 1], [], []>} : vector<2x256xf32>, vector<256x512xf32>, vector<2x512xf32> -> vector<2x512xf32>
    %451 = arith.addf %450, %15 : vector<2x512xf32>
    %452 = vector.extract_strided_slice %451 {offsets = [0, 0], sizes = [2, 128], strides = [1, 1]} : vector<2x512xf32> to vector<2x128xf32>
    %453 = arith.negf %452 : vector<2x128xf32>
    %454 = math.exp %453 : vector<2x128xf32>
    %cst_79 = arith.constant 1.000000e+00 : f32
    %455 = vector.broadcast %cst_79 : f32 to vector<2x128xf32>
    %456 = arith.addf %455, %454 : vector<2x128xf32>
    %457 = arith.divf %455, %456 : vector<2x128xf32>
    %458 = vector.extract_strided_slice %451 {offsets = [0, 128], sizes = [2, 128], strides = [1, 1]} : vector<2x512xf32> to vector<2x128xf32>
    %459 = arith.negf %458 : vector<2x128xf32>
    %460 = math.exp %459 : vector<2x128xf32>
    %cst_80 = arith.constant 1.000000e+00 : f32
    %461 = vector.broadcast %cst_80 : f32 to vector<2x128xf32>
    %462 = arith.addf %461, %460 : vector<2x128xf32>
    %463 = arith.divf %461, %462 : vector<2x128xf32>
    %464 = vector.extract_strided_slice %451 {offsets = [0, 256], sizes = [2, 128], strides = [1, 1]} : vector<2x512xf32> to vector<2x128xf32>
    %465 = vector.extract_strided_slice %451 {offsets = [0, 384], sizes = [2, 128], strides = [1, 1]} : vector<2x512xf32> to vector<2x128xf32>
    %466 = arith.mulf %457, %465 : vector<2x128xf32>
    %467 = arith.addf %464, %466 : vector<2x128xf32>
    %468 = math.tanh %467 : vector<2x128xf32>
    %cst_81 = arith.constant 1.000000e+00 : f32
    %469 = vector.broadcast %cst_81 : f32 to vector<2x128xf32>
    %470 = arith.subf %469, %463 : vector<2x128xf32>
    %471 = arith.mulf %470, %468 : vector<2x128xf32>
    %472 = arith.mulf %463, %416 : vector<2x128xf32>
    %473 = arith.addf %471, %472 : vector<2x128xf32>
    %474 = vector.broadcast %6 : vector<1x128xf32> to vector<2x128xf32>
    %475 = arith.mulf %473, %474 : vector<2x128xf32>
    %cst_82 = arith.constant dense<0.000000e+00> : vector<2xf32>
    %476 = vector.multi_reduction <add>, %475, %cst_82 [1] : vector<2x128xf32> to vector<2xf32>
    %477 = vector.shape_cast %476 : vector<2xf32> to vector<2x1xf32>
    %478 = vector.broadcast %7 : vector<1x1xf32> to vector<2x1xf32>
    %479 = arith.addf %477, %478 : vector<2x1xf32>
    %c0_83 = arith.constant 0 : index
    %c0_84 = arith.constant 0 : index
    %480 = vector.load %arg2[%c0_83, %c0_84] : memref<2x1xf32, #tpu.memory_space<vmem>>, vector<2x1xf32>
    tpu.vector_store %arg2[%c0_83, %c0_84], %479 {strides = array<i32>} : memref<2x1xf32, #tpu.memory_space<vmem>>, vector<2x1xf32>,
    return
  }
}

</mosaic_0001>

<llo_original>
// kernel: tpu_custom_call.1
$region0: #{tpu_custom_call.1}
  #allocation0 [shape = 'u32[]', space=smem, size = 0x4, offset = 0x4, fixed_abs, tag = 'smem constant byte address 0x4 - core index']
  #allocation1 [shape = 'u32[72,128]{1,0:T(1,128)}', space=vmem, size = 0x9000, scoped, tag = 'internal scratch']
  %s0 = inlined_call_operand.hbm [shape: f32[2,8], index: 0, kind: input, shape index: {}]
  %s1 = inlined_call_operand.hbm [shape: f32[392,512], index: 1, kind: input, shape index: {}]
  %s2 = inlined_call_operand.vmem [shape: f32[2,1], index: 2, kind: output, shape index: {}]
  %s3 = sld [smem:[#allocation0]]
  $region26: #{tpu_custom_call.1} parent=0
    _
  %s5 = ssub.s32 1, %s3
  %s6 = scalar_select 0, %s5, %s3
  $region1: #{tpu_custom_call.1} parent=0
    #allocation2 [shape = 'u8[1024]{0}', space=vmem, size = 0x400, scoped, tag = 'input window, operand 0, single buffered']
    #allocation3 [shape = 's32[1]{0}', space=sflag, size = 0x4, scoped, tag = 'scoped memory for tpu_custom_call.1']
    #allocation4 [shape = 'u8[802816]{0}', space=vmem, size = 0xc4000, scoped, tag = 'input window, operand 1, single buffered']
    #allocation5 [shape = 's32[1]{0}', space=sflag, size = 0x4, scoped, tag = 'scoped memory for tpu_custom_call.1']
    %7 = vsyncpa [#allocation3], 0
    %8 = vsyncpa [#allocation5], 0
    // Predicated region
    $region2: #{tpu_custom_call.1} parent=1 // pred_check
      _
    $region3: #{tpu_custom_call.1} parent=1 // pred_check_branch
      %10 = sbr.rel (0) target = $region5
    $region4: #{tpu_custom_call.1} parent=1 // pred_region
      %12 = vsyncadd [#allocation3], 0
      %s14 = sshll.u32 %s0, 4
      %s15 = int_to_ptr.hbm [resolvable:$true] %s14
      %s16 = sshll.u32 [#allocation2], 4
      %s17 = int_to_ptr.vmem [resolvable:$true] %s16
      %19 = dma.hbm_to_vmem [thread:$0]  %s15, 32, %s17, [#allocation3]
    $region5: #{tpu_custom_call.1} parent=1 // pred_fallthru
      _
    // Predicated region
    $region6: #{tpu_custom_call.1} parent=1 // pred_check
      _
    $region7: #{tpu_custom_call.1} parent=1 // pred_check_branch
      %21 = sbr.rel (0) target = $region9
    $region8: #{tpu_custom_call.1} parent=1 // pred_region
      %23 = vsyncadd [#allocation5], 0
      %s24 = sshll.u32 %s1, 4
      %s25 = int_to_ptr.hbm [resolvable:$true] %s24
      %s26 = sshll.u32 [#allocation4], 4
      %s27 = int_to_ptr.vmem [resolvable:$true] %s26
      %32 = dma.hbm_to_vmem [thread:$0]  %s25, 25088, %s27, [#allocation5], 512, 512, 32
    $region9: #{tpu_custom_call.1} parent=1 // pred_fallthru
      _
    // Predicated region
    $region10: #{tpu_custom_call.1} parent=1 // pred_check
      _
    $region11: #{tpu_custom_call.1} parent=1 // pred_check_branch
      %34 = sbr.rel (0) target = $region13
    $region12: #{tpu_custom_call.1} parent=1 // pred_region
      %36 = dma.done [#allocation3], 32
    $region13: #{tpu_custom_call.1} parent=1 // pred_fallthru
      _
    // Predicated region
    $region14: #{tpu_custom_call.1} parent=1 // pred_check
      _
    $region15: #{tpu_custom_call.1} parent=1 // pred_check_branch
      %38 = sbr.rel (0) target = $region17
    $region16: #{tpu_custom_call.1} parent=1 // pred_region
      %40 = dma.done [#allocation5], 25088
    $region17: #{tpu_custom_call.1} parent=1 // pred_fallthru
      _
    %v41 = vld [vmem:[#allocation4] sm:$0xff]
    %v42 = vld [vmem:[#allocation4 + $0x8] sm:$0xff]
    %v43 = vld [vmem:[#allocation4 + $0x10] sm:$0xff]
    %v44 = vld [vmem:[#allocation4 + $0x20] sm:$0xff]
    %v45 = vld [vmem:[#allocation4 + $0x28] sm:$0xff]
    %v46 = vld [vmem:[#allocation4 + $0x30] sm:$0xff]
    %v47 = vld [vmem:[#allocation4 + $0x40] sm:$0xff]
    %v48 = vld [vmem:[#allocation4 + $0x48] sm:$0xff]
    %v49 = vld [vmem:[#allocation4 + $0x50] sm:$0xff]
    %v50 = vld [vmem:[#allocation4 + $0x60] sm:$0xff]
    %v51 = vld [vmem:[#allocation4 + $0x68] sm:$0xff]
    %v52 = vld [vmem:[#allocation4 + $0x70] sm:$0xff]
    %v53 = vld [vmem:[#allocation4 + $0x80] sm:$0xff]
    %v54 = vld [vmem:[#allocation4 + $0x88] sm:$0xff]
    %v55 = vld [vmem:[#allocation4 + $0x90] sm:$0xff]
    %v56 = vld [vmem:[#allocation4 + $0xa0] sm:$0xff]
    %v57 = vld [vmem:[#allocation4 + $0xa8] sm:$0xff]
    %v58 = vld [vmem:[#allocation4 + $0xb0] sm:$0xff]
    %v59 = vld [vmem:[#allocation4 + $0xc0] sm:$0xff]
    %v60 = vld [vmem:[#allocation4 + $0xc8] sm:$0xff]
    %v61 = vld [vmem:[#allocation4 + $0xd0] sm:$0xff]
    %v62 = vld [vmem:[#allocation4 + $0xe0] sm:$0xff]
    %v63 = vld [vmem:[#allocation4 + $0xe8] sm:$0xff]
    %v64 = vld [vmem:[#allocation4 + $0xf0] sm:$0xff]
    %v65 = vld [vmem:[#allocation4 + $0x100] sm:$0xff]
    %v66 = vld [vmem:[#allocation4 + $0x108] sm:$0xff]
    %v67 = vld [vmem:[#allocation4 + $0x110] sm:$0xff]
    %v68 = vld [vmem:[#allocation4 + $0x120] sm:$0xff]
    %v69 = vld [vmem:[#allocation4 + $0x128] sm:$0xff]
    %v70 = vld [vmem:[#allocation4 + $0x130] sm:$0xff]
    %v71 = vld [vmem:[#allocation4 + $0x140] sm:$0xff]
    %v72 = vld [vmem:[#allocation4 + $0x148] sm:$0xff]
    %v73 = vld [vmem:[#allocation4 + $0x150] sm:$0xff]
    %v74 = vld [vmem:[#allocation4 + $0x160] sm:$0xff]
    %v75 = vld [vmem:[#allocation4 + $0x168] sm:$0xff]
    %v76 = vld [vmem:[#allocation4 + $0x170] sm:$0xff]
    %v77 = vld [vmem:[#allocation4 + $0x180] sm:$0xff]
    %v78 = vld [vmem:[#allocation4 + $0x188] sm:$0xff]
    %v79 = vld [vmem:[#allocation4 + $0x190] sm:$0xff]
    %v80 = vld [vmem:[#allocation4 + $0x1a0] sm:$0xff]
    %v81 = vld [vmem:[#allocation4 + $0x1a8] sm:$0xff]
    %v82 = vld [vmem:[#allocation4 + $0x1b0] sm:$0xff]
    %v83 = vld [vmem:[#allocation4 + $0x1c0] sm:$0xff]
    %v84 = vld [vmem:[#allocation4 + $0x1c8] sm:$0xff]
    %v85 = vld [vmem:[#allocation4 + $0x1d0] sm:$0xff]
    %v86 = vld [vmem:[#allocation4 + $0x1e0] sm:$0xff]
    %v87 = vld [vmem:[#allocation4 + $0x1e8] sm:$0xff]
    %v88 = vld [vmem:[#allocation4 + $0x1f0] sm:$0xff]
    %v89 = vld [vmem:[#allocation4 + $0x200] sm:$0xff]
    %v90 = vld [vmem:[#allocation4 + $0x208] sm:$0xff]
    %v91 = vld [vmem:[#allocation4 + $0x210] sm:$0xff]
    %v92 = vld [vmem:[#allocation4 + $0x218] sm:$0xff]
    %v93 = vld [vmem:[#allocation4 + $0x220] sm:$0xff]
    %v94 = vld [vmem:[#allocation4 + $0x228] sm:$0xff]
    %v95 = vld [vmem:[#allocation4 + $0x230] sm:$0xff]
    %v96 = vld [vmem:[#allocation4 + $0x238] sm:$0xff]
    %v97 = vld [vmem:[#allocation4 + $0x240] sm:$0xff]
    %v98 = vld [vmem:[#allocation4 + $0x248] sm:$0xff]
    %v99 = vld [vmem:[#allocation4 + $0x250] sm:$0xff]
    %v100 = vld [vmem:[#allocation4 + $0x258] sm:$0xff]
    %v101 = vld [vmem:[#allocation4 + $0x260] sm:$0xff]
    %v102 = vld [vmem:[#allocation4 + $0x268] sm:$0xff]
    %v103 = vld [vmem:[#allocation4 + $0x270] sm:$0xff]
    %v104 = vld [vmem:[#allocation4 + $0x278] sm:$0xff]
    %v105 = vld [vmem:[#allocation4 + $0x280] sm:$0xff]
    %v106 = vld [vmem:[#allocation4 + $0x288] sm:$0xff]
    %v107 = vld [vmem:[#allocation4 + $0x290] sm:$0xff]
    %v108 = vld [vmem:[#allocation4 + $0x298] sm:$0xff]
    %v109 = vld [vmem:[#allocation4 + $0x2a0] sm:$0xff]
    %v110 = vld [vmem:[#allocation4 + $0x2a8] sm:$0xff]
    %v111 = vld [vmem:[#allocation4 + $0x2b0] sm:$0xff]
    %v112 = vld [vmem:[#allocation4 + $0x2b8] sm:$0xff]
    %v113 = vld [vmem:[#allocation4 + $0x2c0] sm:$0xff]
    %v114 = vld [vmem:[#allocation4 + $0x2c8] sm:$0xff]
    %v115 = vld [vmem:[#allocation4 + $0x2d0] sm:$0xff]
    %v116 = vld [vmem:[#allocation4 + $0x2d8] sm:$0xff]
    %v117 = vld [vmem:[#allocation4 + $0x2e0] sm:$0xff]
    %v118 = vld [vmem:[#allocation4 + $0x2e8] sm:$0xff]
    %v119 = vld [vmem:[#allocation4 + $0x2f0] sm:$0xff]
    %v120 = vld [vmem:[#allocation4 + $0x2f8] sm:$0xff]
    %v121 = vld [vmem:[#allocation4 + $0x300] sm:$0xff]
    %v122 = vld [vmem:[#allocation4 + $0x308] sm:$0xff]
    %v123 = vld [vmem:[#allocation4 + $0x310] sm:$0xff]
    %v124 = vld [vmem:[#allocation4 + $0x318] sm:$0xff]
    %v125 = vld [vmem:[#allocation4 + $0x320] sm:$0xff]
    %v126 = vld [vmem:[#allocation4 + $0x328] sm:$0xff]
    %v127 = vld [vmem:[#allocation4 + $0x330] sm:$0xff]
    %v128 = vld [vmem:[#allocation4 + $0x338] sm:$0xff]
    %v129 = vld [vmem:[#allocation4 + $0x340] sm:$0xff]
    %v130 = vld [vmem:[#allocation4 + $0x348] sm:$0xff]
    %v131 = vld [vmem:[#allocation4 + $0x350] sm:$0xff]
    %v132 = vld [vmem:[#allocation4 + $0x358] sm:$0xff]
    %v133 = vld [vmem:[#allocation4 + $0x360] sm:$0xff]
    %v134 = vld [vmem:[#allocation4 + $0x368] sm:$0xff]
    %v135 = vld [vmem:[#allocation4 + $0x370] sm:$0xff]
    %v136 = vld [vmem:[#allocation4 + $0x378] sm:$0xff]
    %v137 = vld [vmem:[#allocation4 + $0x380] sm:$0xff]
    %v138 = vld [vmem:[#allocation4 + $0x388] sm:$0xff]
    %v139 = vld [vmem:[#allocation4 + $0x390] sm:$0xff]
    %v140 = vld [vmem:[#allocation4 + $0x398] sm:$0xff]
    %v141 = vld [vmem:[#allocation4 + $0x3a0] sm:$0xff]
    %v142 = vld [vmem:[#allocation4 + $0x3a8] sm:$0xff]
    %v143 = vld [vmem:[#allocation4 + $0x3b0] sm:$0xff]
    %v144 = vld [vmem:[#allocation4 + $0x3b8] sm:$0xff]
    %v145 = vld [vmem:[#allocation4 + $0x3c0] sm:$0xff]
    %v146 = vld [vmem:[#allocation4 + $0x3c8] sm:$0xff]
    %v147 = vld [vmem:[#allocation4 + $0x3d0] sm:$0xff]
    %v148 = vld [vmem:[#allocation4 + $0x3d8] sm:$0xff]
    %v149 = vld [vmem:[#allocation4 + $0x3e0] sm:$0xff]
    %v150 = vld [vmem:[#allocation4 + $0x3e8] sm:$0xff]
    %v151 = vld [vmem:[#allocation4 + $0x3f0] sm:$0xff]
    %v152 = vld [vmem:[#allocation4 + $0x3f8] sm:$0xff]
    %v153 = vld [vmem:[#allocation4 + $0x400] sm:$0xff]
    %v154 = vld [vmem:[#allocation4 + $0x408] sm:$0xff]
    %v155 = vld [vmem:[#allocation4 + $0x410] sm:$0xff]
    %v156 = vld [vmem:[#allocation4 + $0x418] sm:$0xff]
    %v157 = vld [vmem:[#allocation4 + $0x420] sm:$0xff]
    %v158 = vld [vmem:[#allocation4 + $0x428] sm:$0xff]
    %v159 = vld [vmem:[#allocation4 + $0x430] sm:$0xff]
    %v160 = vld [vmem:[#allocation4 + $0x438] sm:$0xff]
    %v161 = vld [vmem:[#allocation4 + $0x440] sm:$0xff]
    %v162 = vld [vmem:[#allocation4 + $0x448] sm:$0xff]
    %v163 = vld [vmem:[#allocation4 + $0x450] sm:$0xff]
    %v164 = vld [vmem:[#allocation4 + $0x458] sm:$0xff]
    %v165 = vld [vmem:[#allocation4 + $0x460] sm:$0xff]
    %v166 = vld [vmem:[#allocation4 + $0x468] sm:$0xff]
    %v167 = vld [vmem:[#allocation4 + $0x470] sm:$0xff]
    %v168 = vld [vmem:[#allocation4 + $0x478] sm:$0xff]
    %v169 = vld [vmem:[#allocation4 + $0x480] sm:$0xff]
    %v170 = vld [vmem:[#allocation4 + $0x488] sm:$0xff]
    %v171 = vld [vmem:[#allocation4 + $0x490] sm:$0xff]
    %v172 = vld [vmem:[#allocation4 + $0x498] sm:$0xff]
    %v173 = vld [vmem:[#allocation4 + $0x4a0] sm:$0xff]
    %v174 = vld [vmem:[#allocation4 + $0x4a8] sm:$0xff]
    %v175 = vld [vmem:[#allocation4 + $0x4b0] sm:$0xff]
    %v176 = vld [vmem:[#allocation4 + $0x4b8] sm:$0xff]
    %v177 = vld [vmem:[#allocation4 + $0x4c0] sm:$0xff]
    %v178 = vld [vmem:[#allocation4 + $0x4c8] sm:$0xff]
    %v179 = vld [vmem:[#allocation4 + $0x4d0] sm:$0xff]
    %v180 = vld [vmem:[#allocation4 + $0x4d8] sm:$0xff]
    %v181 = vld [vmem:[#allocation4 + $0x4e0] sm:$0xff]
    %v182 = vld [vmem:[#allocation4 + $0x4e8] sm:$0xff]
    %v183 = vld [vmem:[#allocation4 + $0x4f0] sm:$0xff]
    %v184 = vld [vmem:[#allocation4 + $0x4f8] sm:$0xff]
    %v185 = vld [vmem:[#allocation4 + $0x500] sm:$0xff]
    %v186 = vld [vmem:[#allocation4 + $0x508] sm:$0xff]
    %v187 = vld [vmem:[#allocation4 + $0x510] sm:$0xff]
    %v188 = vld [vmem:[#allocation4 + $0x518] sm:$0xff]
    %v189 = vld [vmem:[#allocation4 + $0x520] sm:$0xff]
    %v190 = vld [vmem:[#allocation4 + $0x528] sm:$0xff]
    %v191 = vld [vmem:[#allocation4 + $0x530] sm:$0xff]
    %v192 = vld [vmem:[#allocation4 + $0x538] sm:$0xff]
    %v193 = vld [vmem:[#allocation4 + $0x540] sm:$0xff]
    %v194 = vld [vmem:[#allocation4 + $0x548] sm:$0xff]
    %v195 = vld [vmem:[#allocation4 + $0x550] sm:$0xff]
    %v196 = vld [vmem:[#allocation4 + $0x558] sm:$0xff]
    %v197 = vld [vmem:[#allocation4 + $0x560] sm:$0xff]
    %v198 = vld [vmem:[#allocation4 + $0x568] sm:$0xff]
    %v199 = vld [vmem:[#allocation4 + $0x570] sm:$0xff]
    %v200 = vld [vmem:[#allocation4 + $0x578] sm:$0xff]
    %v201 = vld [vmem:[#allocation4 + $0x580] sm:$0xff]
    %v202 = vld [vmem:[#allocation4 + $0x588] sm:$0xff]
    %v203 = vld [vmem:[#allocation4 + $0x590] sm:$0xff]
    %v204 = vld [vmem:[#allocation4 + $0x598] sm:$0xff]
    %v205 = vld [vmem:[#allocation4 + $0x5a0] sm:$0xff]
    %v206 = vld [vmem:[#allocation4 + $0x5a8] sm:$0xff]
    %v207 = vld [vmem:[#allocation4 + $0x5b0] sm:$0xff]
    %v208 = vld [vmem:[#allocation4 + $0x5b8] sm:$0xff]
    %v209 = vld [vmem:[#allocation4 + $0x5c0] sm:$0xff]
    %v210 = vld [vmem:[#allocation4 + $0x5c8] sm:$0xff]
    %v211 = vld [vmem:[#allocation4 + $0x5d0] sm:$0xff]
    %v212 = vld [vmem:[#allocation4 + $0x5d8] sm:$0xff]
    %v213 = vld [vmem:[#allocation4 + $0x5e0] sm:$0xff]
    %v214 = vld [vmem:[#allocation4 + $0x5e8] sm:$0xff]
    %v215 = vld [vmem:[#allocation4 + $0x5f0] sm:$0xff]
    %v216 = vld [vmem:[#allocation4 + $0x5f8] sm:$0xff]
    %s217 = scalar_lea.vmem [#allocation4], 1536
    %v218 = vld [vmem:[%s217] ss:$8 sm:$0xf]
    %s219 = scalar_lea.vmem [#allocation4], 1537
    %v220 = vld [vmem:[%s219] ss:$8 sm:$0xf]
    %s221 = scalar_lea.vmem [#allocation4], 1538
    %v222 = vld [vmem:[%s221] ss:$8 sm:$0xf]
    %s223 = scalar_lea.vmem [#allocation4], 1539
    %v224 = vld [vmem:[%s223] ss:$8 sm:$0xf]
    %v225 = vld [vmem:[#allocation4 + $0x604] ss:$0 sm:$0xff]
    %v226 = vld [vmem:[#allocation4 + $0x605] ss:$0 sm:$0xff]
    %v228 = vperm.slane %v218, 0
    %v229 = vperm.slane %v218, 1
    %v230 = vperm.slane %v218, 2
    %v235 = vperm.slane %v220, 0
    %v236 = vperm.slane %v220, 1
    %v237 = vperm.slane %v220, 2
    %v242 = vperm.slane %v222, 0
    %v243 = vperm.slane %v222, 1
    %v244 = vperm.slane %v222, 2
    %v249 = vperm.slane %v224, 0
    %v250 = vperm.slane %v224, 1
    %v251 = vperm.slane %v224, 2
    %v252 = vperm.slane %v224, 3
    %v257 = vld [vmem:[#allocation2] sm:$0x3]
    %259 = vset.pattern.permute.xlu0 0
    %260 = vperm.xlu0 %259, %v257
    %v261 = vpop.permute.xlu0 %260
    %v263 = vmul.f32 %v261, %v228
    %v264 = vmul.f32 %v261, %v229
    %v265 = vmul.f32 %v261, %v230
    %v266 = vadd.f32 %v263, %v235
    %v267 = vadd.f32 %v264, %v236
    %v268 = vadd.f32 %v265, %v237
    %269 = vmatpush.msra.mxu0 %v86
    %270 = vmatpush.msra.mxu0 %v83
    %271 = vmatpush.msra.mxu0 %v80
    %272 = vmatpush.msra.mxu0 %v77
    %273 = vmatpush.msra.mxu0 %v74
    %274 = vmatpush.msra.mxu0 %v71
    %275 = vmatpush.msra.mxu0 %v68
    %276 = vmatpush.msra.mxu0 %v65
    %277 = vmatpush.msra.mxu0 %v62
    %278 = vmatpush.msra.mxu0 %v59
    %279 = vmatpush.msra.mxu0 %v56
    %280 = vmatpush.msra.mxu0 %v53
    %281 = vmatpush.msra.mxu0 %v50
    %282 = vmatpush.msra.mxu0 %v47
    %283 = vmatpush.msra.mxu0 %v44
    %284 = vmatpush.msra.mxu0 %v41
    %285 = vmatmul.f32.gmra.mxu0 0.0
    %v286 = vpop.f32.mrf.mxu0
    %v287 = vadd.f32 %v242, %v286
    %288 = vdwg.mxu0
    %289 = vmatpush.msra.mxu0 %v87
    %290 = vmatpush.msra.mxu0 %v84
    %291 = vmatpush.msra.mxu0 %v81
    %292 = vmatpush.msra.mxu0 %v78
    %293 = vmatpush.msra.mxu0 %v75
    %294 = vmatpush.msra.mxu0 %v72
    %295 = vmatpush.msra.mxu0 %v69
    %296 = vmatpush.msra.mxu0 %v66
    %297 = vmatpush.msra.mxu0 %v63
    %298 = vmatpush.msra.mxu0 %v60
    %299 = vmatpush.msra.mxu0 %v57
    %300 = vmatpush.msra.mxu0 %v54
    %301 = vmatpush.msra.mxu0 %v51
    %302 = vmatpush.msra.mxu0 %v48
    %303 = vmatpush.msra.mxu0 %v45
    %304 = vmatpush.msra.mxu0 %v42
    %305 = vmatmul.f32.gmra.mxu0 0.0
    %v306 = vpop.f32.mrf.mxu0
    %v307 = vadd.f32 %v243, %v306
    %308 = vdwg.mxu0
    %309 = vmatpush.msra.mxu0 %v88
    %310 = vmatpush.msra.mxu0 %v85
    %311 = vmatpush.msra.mxu0 %v82
    %312 = vmatpush.msra.mxu0 %v79
    %313 = vmatpush.msra.mxu0 %v76
    %314 = vmatpush.msra.mxu0 %v73
    %315 = vmatpush.msra.mxu0 %v70
    %316 = vmatpush.msra.mxu0 %v67
    %317 = vmatpush.msra.mxu0 %v64
    %318 = vmatpush.msra.mxu0 %v61
    %319 = vmatpush.msra.mxu0 %v58
    %320 = vmatpush.msra.mxu0 %v55
    %321 = vmatpush.msra.mxu0 %v52
    %322 = vmatpush.msra.mxu0 %v49
    %323 = vmatpush.msra.mxu0 %v46
    %324 = vmatpush.msra.mxu0 %v43
    %325 = vmatmul.f32.gmra.mxu0 0.0
    %v326 = vpop.f32.mrf.mxu0
    %v327 = vadd.f32 %v244, %v326
    %328 = vdwg.mxu0
    %v329 = vadd.f32 %v266, %v287
    %v330 = vxor.u32 %v329, 2147483648
    %v331 = vmul.f32 %v330, 1.442695
    %v332 = vpow.pop %v331
    %v333 = vadd.f32 %v332, 1.0
    %v334 = vrcp.pop %v333
    %v335 = vmul.f32 %v333, %v334
    %v336 = vsub.f32 1.0, %v335
    %v337 = vmul.f32 %v334, %v336
    %v338 = vadd.f32 %v334, %v337
    %vm339 = vweird.f32 %v333
    %vm340 = vweird.f32 %v334
    %vm341 = vmor %vm339, %vm340
    %v342 = vsel %vm341, %v334, %v338
    %v343 = vand.u32 2147483647, %v333
    %vm344 = vcmp.eq.f32.partialorder %v343, 8.507059e+37
    %v345 = vand.u32 %v333, 2147483648
    %v346 = vor.u32 1.1754944e-38, %v345
    %v347 = vsel %vm344, %v346, %v342
    %v348 = vmul.f32 1.0, %v347
    %v349 = vadd.f32 %v267, %v307
    %v350 = vxor.u32 %v349, 2147483648
    %v351 = vmul.f32 %v350, 1.442695
    %v352 = vpow.pop %v351
    %v353 = vadd.f32 %v352, 1.0
    %v354 = vrcp.pop %v353
    %v355 = vmul.f32 %v353, %v354
    %v356 = vsub.f32 1.0, %v355
    %v357 = vmul.f32 %v354, %v356
    %v358 = vadd.f32 %v354, %v357
    %vm359 = vweird.f32 %v353
    %vm360 = vweird.f32 %v354
    %vm361 = vmor %vm359, %vm360
    %v362 = vsel %vm361, %v354, %v358
    %v363 = vand.u32 2147483647, %v353
    %vm364 = vcmp.eq.f32.partialorder %v363, 8.507059e+37
    %v365 = vand.u32 %v353, 2147483648
    %v366 = vor.u32 1.1754944e-38, %v365
    %v367 = vsel %vm364, %v366, %v362
    %v368 = vmul.f32 1.0, %v367
    %v369 = vmul.f32 %v348, %v327
    %v370 = vadd.f32 %v268, %v369
    %v371 = vtanh.pop %v370
    %v372 = vsub.f32 1.0, %v368
    %v373 = vmul.f32 %v372, %v371
    %v374 = vmul.f32 %v368, 0.0
    %v375 = vadd.f32 %v373, %v374
    %376 = vmatpush.msra.mxu0 %v149
    %377 = vmatpush.msra.mxu0 %v145
    %378 = vmatpush.msra.mxu0 %v141
    %379 = vmatpush.msra.mxu0 %v137
    %380 = vmatpush.msra.mxu0 %v133
    %381 = vmatpush.msra.mxu0 %v129
    %382 = vmatpush.msra.mxu0 %v125
    %383 = vmatpush.msra.mxu0 %v121
    %384 = vmatpush.msra.mxu0 %v117
    %385 = vmatpush.msra.mxu0 %v113
    %386 = vmatpush.msra.mxu0 %v109
    %387 = vmatpush.msra.mxu0 %v105
    %388 = vmatpush.msra.mxu0 %v101
    %389 = vmatpush.msra.mxu0 %v97
    %390 = vmatpush.msra.mxu0 %v93
    %391 = vmatpush.msra.mxu0 %v89
    %392 = vmatmul.f32.gmra.mxu0 %v375
    %v393 = vpop.f32.mrf.mxu0
    %v394 = vadd.f32 %v249, %v393
    %395 = vdwg.mxu0
    %396 = vmatpush.msra.mxu0 %v213
    %397 = vmatpush.msra.mxu0 %v209
    %398 = vmatpush.msra.mxu0 %v205
    %399 = vmatpush.msra.mxu0 %v201
    %400 = vmatpush.msra.mxu0 %v197
    %401 = vmatpush.msra.mxu0 %v193
    %402 = vmatpush.msra.mxu0 %v189
    %403 = vmatpush.msra.mxu0 %v185
    %404 = vmatpush.msra.mxu0 %v181
    %405 = vmatpush.msra.mxu0 %v177
    %406 = vmatpush.msra.mxu0 %v173
    %407 = vmatpush.msra.mxu0 %v169
    %408 = vmatpush.msra.mxu0 %v165
    %409 = vmatpush.msra.mxu0 %v161
    %410 = vmatpush.msra.mxu0 %v157
    %411 = vmatpush.msra.mxu0 %v153
    %412 = vmatmul.f32.gmra.mxu0 0.0
    %v413 = vpop.f32.mrf.mxu0
    %v414 = vadd.f32 %v394, %v413
    %415 = vdwg.mxu0
    %416 = vmatpush.msra.mxu0 %v150
    %417 = vmatpush.msra.mxu0 %v146
    %418 = vmatpush.msra.mxu0 %v142
    %419 = vmatpush.msra.mxu0 %v138
    %420 = vmatpush.msra.mxu0 %v134
    %421 = vmatpush.msra.mxu0 %v130
    %422 = vmatpush.msra.mxu0 %v126
    %423 = vmatpush.msra.mxu0 %v122
    %424 = vmatpush.msra.mxu0 %v118
    %425 = vmatpush.msra.mxu0 %v114
    %426 = vmatpush.msra.mxu0 %v110
    %427 = vmatpush.msra.mxu0 %v106
    %428 = vmatpush.msra.mxu0 %v102
    %429 = vmatpush.msra.mxu0 %v98
    %430 = vmatpush.msra.mxu0 %v94
    %431 = vmatpush.msra.mxu0 %v90
    %432 = vmatmul.f32.gmra.mxu0 %v375
    %v433 = vpop.f32.mrf.mxu0
    %v434 = vadd.f32 %v250, %v433
    %435 = vdwg.mxu0
    %436 = vmatpush.msra.mxu0 %v214
    %437 = vmatpush.msra.mxu0 %v210
    %438 = vmatpush.msra.mxu0 %v206
    %439 = vmatpush.msra.mxu0 %v202
    %440 = vmatpush.msra.mxu0 %v198
    %441 = vmatpush.msra.mxu0 %v194
    %442 = vmatpush.msra.mxu0 %v190
    %443 = vmatpush.msra.mxu0 %v186
    %444 = vmatpush.msra.mxu0 %v182
    %445 = vmatpush.msra.mxu0 %v178
    %446 = vmatpush.msra.mxu0 %v174
    %447 = vmatpush.msra.mxu0 %v170
    %448 = vmatpush.msra.mxu0 %v166
    %449 = vmatpush.msra.mxu0 %v162
    %450 = vmatpush.msra.mxu0 %v158
    %451 = vmatpush.msra.mxu0 %v154
    %452 = vmatmul.f32.gmra.mxu0 0.0
    %v453 = vpop.f32.mrf.mxu0
    %v454 = vadd.f32 %v434, %v453
    %455 = vdwg.mxu0
    %456 = vmatpush.msra.mxu0 %v151
    %457 = vmatpush.msra.mxu0 %v147
    %458 = vmatpush.msra.mxu0 %v143
    %459 = vmatpush.msra.mxu0 %v139
    %460 = vmatpush.msra.mxu0 %v135
    %461 = vmatpush.msra.mxu0 %v131
    %462 = vmatpush.msra.mxu0 %v127
    %463 = vmatpush.msra.mxu0 %v123
    %464 = vmatpush.msra.mxu0 %v119
    %465 = vmatpush.msra.mxu0 %v115
    %466 = vmatpush.msra.mxu0 %v111
    %467 = vmatpush.msra.mxu0 %v107
    %468 = vmatpush.msra.mxu0 %v103
    %469 = vmatpush.msra.mxu0 %v99
    %470 = vmatpush.msra.mxu0 %v95
    %471 = vmatpush.msra.mxu0 %v91
    %472 = vmatmul.f32.gmra.mxu0 %v375
    %v473 = vpop.f32.mrf.mxu0
    %v474 = vadd.f32 %v251, %v473
    %475 = vdwg.mxu0
    %476 = vmatpush.msra.mxu0 %v215
    %477 = vmatpush.msra.mxu0 %v211
    %478 = vmatpush.msra.mxu0 %v207
    %479 = vmatpush.msra.mxu0 %v203
    %480 = vmatpush.msra.mxu0 %v199
    %481 = vmatpush.msra.mxu0 %v195
    %482 = vmatpush.msra.mxu0 %v191
    %483 = vmatpush.msra.mxu0 %v187
    %484 = vmatpush.msra.mxu0 %v183
    %485 = vmatpush.msra.mxu0 %v179
    %486 = vmatpush.msra.mxu0 %v175
    %487 = vmatpush.msra.mxu0 %v171
    %488 = vmatpush.msra.mxu0 %v167
    %489 = vmatpush.msra.mxu0 %v163
    %490 = vmatpush.msra.mxu0 %v159
    %491 = vmatpush.msra.mxu0 %v155
    %492 = vmatmul.f32.gmra.mxu0 0.0
    %v493 = vpop.f32.mrf.mxu0
    %v494 = vadd.f32 %v474, %v493
    %495 = vdwg.mxu0
    %496 = vmatpush.msra.mxu0 %v152
    %497 = vmatpush.msra.mxu0 %v148
    %498 = vmatpush.msra.mxu0 %v144
    %499 = vmatpush.msra.mxu0 %v140
    %500 = vmatpush.msra.mxu0 %v136
    %501 = vmatpush.msra.mxu0 %v132
    %502 = vmatpush.msra.mxu0 %v128
    %503 = vmatpush.msra.mxu0 %v124
    %504 = vmatpush.msra.mxu0 %v120
    %505 = vmatpush.msra.mxu0 %v116
    %506 = vmatpush.msra.mxu0 %v112
    %507 = vmatpush.msra.mxu0 %v108
    %508 = vmatpush.msra.mxu0 %v104
    %509 = vmatpush.msra.mxu0 %v100
    %510 = vmatpush.msra.mxu0 %v96
    %511 = vmatpush.msra.mxu0 %v92
    %512 = vmatmul.f32.gmra.mxu0 %v375
    %v513 = vpop.f32.mrf.mxu0
    %v514 = vadd.f32 %v252, %v513
    %515 = vdwg.mxu0
    %516 = vmatpush.msra.mxu0 %v216
    %517 = vmatpush.msra.mxu0 %v212
    %518 = vmatpush.msra.mxu0 %v208
    %519 = vmatpush.msra.mxu0 %v204
    %520 = vmatpush.msra.mxu0 %v200
    %521 = vmatpush.msra.mxu0 %v196
    %522 = vmatpush.msra.mxu0 %v192
    %523 = vmatpush.msra.mxu0 %v188
    %524 = vmatpush.msra.mxu0 %v184
    %525 = vmatpush.msra.mxu0 %v180
    %526 = vmatpush.msra.mxu0 %v176
    %527 = vmatpush.msra.mxu0 %v172
    %528 = vmatpush.msra.mxu0 %v168
    %529 = vmatpush.msra.mxu0 %v164
    %530 = vmatpush.msra.mxu0 %v160
    %531 = vmatpush.msra.mxu0 %v156
    %532 = vmatmul.f32.gmra.mxu0 0.0
    %v533 = vpop.f32.mrf.mxu0
    %v534 = vadd.f32 %v514, %v533
    %535 = vdwg.mxu0
    %v536 = vxor.u32 %v414, 2147483648
    %v537 = vmul.f32 %v536, 1.442695
    %v538 = vpow.pop %v537
    %v539 = vadd.f32 %v538, 1.0
    %v540 = vrcp.pop %v539
    %v541 = vmul.f32 %v539, %v540
    %v542 = vsub.f32 1.0, %v541
    %v543 = vmul.f32 %v540, %v542
    %v544 = vadd.f32 %v540, %v543
    %vm545 = vweird.f32 %v539
    %vm546 = vweird.f32 %v540
    %vm547 = vmor %vm545, %vm546
    %v548 = vsel %vm547, %v540, %v544
    %v549 = vand.u32 2147483647, %v539
    %vm550 = vcmp.eq.f32.partialorder %v549, 8.507059e+37
    %v551 = vand.u32 %v539, 2147483648
    %v552 = vor.u32 1.1754944e-38, %v551
    %v553 = vsel %vm550, %v552, %v548
    %v554 = vmul.f32 1.0, %v553
    %v555 = vxor.u32 %v454, 2147483648
    %v556 = vmul.f32 %v555, 1.442695
    %v557 = vpow.pop %v556
    %v558 = vadd.f32 %v557, 1.0
    %v559 = vrcp.pop %v558
    %v560 = vmul.f32 %v558, %v559
    %v561 = vsub.f32 1.0, %v560
    %v562 = vmul.f32 %v559, %v561
    %v563 = vadd.f32 %v559, %v562
    %vm564 = vweird.f32 %v558
    %vm565 = vweird.f32 %v559
    %vm566 = vmor %vm564, %vm565
    %v567 = vsel %vm566, %v559, %v563
    %v568 = vand.u32 2147483647, %v558
    %vm569 = vcmp.eq.f32.partialorder %v568, 8.507059e+37
    %v570 = vand.u32 %v558, 2147483648
    %v571 = vor.u32 1.1754944e-38, %v570
    %v572 = vsel %vm569, %v571, %v567
    %v573 = vmul.f32 1.0, %v572
    %v574 = vmul.f32 %v554, %v534
    %v575 = vadd.f32 %v494, %v574
    %v576 = vtanh.pop %v575
    %v577 = vsub.f32 1.0, %v573
    %v578 = vmul.f32 %v577, %v576
    %v579 = vmul.f32 %v573, 0.0
    %v580 = vadd.f32 %v578, %v579
    %581 = vset.pattern.permute.xlu0 1
    %582 = vperm.xlu0 %581, %v257
    %v583 = vpop.permute.xlu0 %582
    %v585 = vmul.f32 %v583, %v228
    %v586 = vmul.f32 %v583, %v229
    %v587 = vmul.f32 %v583, %v230
    %v588 = vadd.f32 %v585, %v235
    %v589 = vadd.f32 %v586, %v236
    %v590 = vadd.f32 %v587, %v237
    %591 = vmatpush.msra.mxu0 %v86
    %592 = vmatpush.msra.mxu0 %v83
    %593 = vmatpush.msra.mxu0 %v80
    %594 = vmatpush.msra.mxu0 %v77
    %595 = vmatpush.msra.mxu0 %v74
    %596 = vmatpush.msra.mxu0 %v71
    %597 = vmatpush.msra.mxu0 %v68
    %598 = vmatpush.msra.mxu0 %v65
    %599 = vmatpush.msra.mxu0 %v62
    %600 = vmatpush.msra.mxu0 %v59
    %601 = vmatpush.msra.mxu0 %v56
    %602 = vmatpush.msra.mxu0 %v53
    %603 = vmatpush.msra.mxu0 %v50
    %604 = vmatpush.msra.mxu0 %v47
    %605 = vmatpush.msra.mxu0 %v44
    %606 = vmatpush.msra.mxu0 %v41
    %607 = vmatmul.f32.gmra.mxu0 %v375
    %v608 = vpop.f32.mrf.mxu0
    %v609 = vadd.f32 %v242, %v608
    %610 = vdwg.mxu0
    %611 = vmatpush.msra.mxu0 %v87
    %612 = vmatpush.msra.mxu0 %v84
    %613 = vmatpush.msra.mxu0 %v81
    %614 = vmatpush.msra.mxu0 %v78
    %615 = vmatpush.msra.mxu0 %v75
    %616 = vmatpush.msra.mxu0 %v72
    %617 = vmatpush.msra.mxu0 %v69
    %618 = vmatpush.msra.mxu0 %v66
    %619 = vmatpush.msra.mxu0 %v63
    %620 = vmatpush.msra.mxu0 %v60
    %621 = vmatpush.msra.mxu0 %v57
    %622 = vmatpush.msra.mxu0 %v54
    %623 = vmatpush.msra.mxu0 %v51
    %624 = vmatpush.msra.mxu0 %v48
    %625 = vmatpush.msra.mxu0 %v45
    %626 = vmatpush.msra.mxu0 %v42
    %627 = vmatmul.f32.gmra.mxu0 %v375
    %v628 = vpop.f32.mrf.mxu0
    %v629 = vadd.f32 %v243, %v628
    %630 = vdwg.mxu0
    %631 = vmatpush.msra.mxu0 %v88
    %632 = vmatpush.msra.mxu0 %v85
    %633 = vmatpush.msra.mxu0 %v82
    %634 = vmatpush.msra.mxu0 %v79
    %635 = vmatpush.msra.mxu0 %v76
    %636 = vmatpush.msra.mxu0 %v73
    %637 = vmatpush.msra.mxu0 %v70
    %638 = vmatpush.msra.mxu0 %v67
    %639 = vmatpush.msra.mxu0 %v64
    %640 = vmatpush.msra.mxu0 %v61
    %641 = vmatpush.msra.mxu0 %v58
    %642 = vmatpush.msra.mxu0 %v55
    %643 = vmatpush.msra.mxu0 %v52
    %644 = vmatpush.msra.mxu0 %v49
    %645 = vmatpush.msra.mxu0 %v46
    %646 = vmatpush.msra.mxu0 %v43
    %647 = vmatmul.f32.gmra.mxu0 %v375
    %v648 = vpop.f32.mrf.mxu0
    %v649 = vadd.f32 %v244, %v648
    %650 = vdwg.mxu0
    %v651 = vadd.f32 %v588, %v609
    %v652 = vxor.u32 %v651, 2147483648
    %v653 = vmul.f32 %v652, 1.442695
    %v654 = vpow.pop %v653
    %v655 = vadd.f32 %v654, 1.0
    %v656 = vrcp.pop %v655
    %v657 = vmul.f32 %v655, %v656
    %v658 = vsub.f32 1.0, %v657
    %v659 = vmul.f32 %v656, %v658
    %v660 = vadd.f32 %v656, %v659
    %vm661 = vweird.f32 %v655
    %vm662 = vweird.f32 %v656
    %vm663 = vmor %vm661, %vm662
    %v664 = vsel %vm663, %v656, %v660
    %v665 = vand.u32 2147483647, %v655
    %vm666 = vcmp.eq.f32.partialorder %v665, 8.507059e+37
    %v667 = vand.u32 %v655, 2147483648
    %v668 = vor.u32 1.1754944e-38, %v667
    %v669 = vsel %vm666, %v668, %v664
    %v670 = vmul.f32 1.0, %v669
    %v671 = vadd.f32 %v589, %v629
    %v672 = vxor.u32 %v671, 2147483648
    %v673 = vmul.f32 %v672, 1.442695
    %v674 = vpow.pop %v673
    %v675 = vadd.f32 %v674, 1.0
    %v676 = vrcp.pop %v675
    %v677 = vmul.f32 %v675, %v676
    %v678 = vsub.f32 1.0, %v677
    %v679 = vmul.f32 %v676, %v678
    %v680 = vadd.f32 %v676, %v679
    %vm681 = vweird.f32 %v675
    %vm682 = vweird.f32 %v676
    %vm683 = vmor %vm681, %vm682
    %v684 = vsel %vm683, %v676, %v680
    %v685 = vand.u32 2147483647, %v675
    %vm686 = vcmp.eq.f32.partialorder %v685, 8.507059e+37
    %v687 = vand.u32 %v675, 2147483648
    %v688 = vor.u32 1.1754944e-38, %v687
    %v689 = vsel %vm686, %v688, %v684
    %v690 = vmul.f32 1.0, %v689
    %v691 = vmul.f32 %v670, %v649
    %v692 = vadd.f32 %v590, %v691
    %v693 = vtanh.pop %v692
    %v694 = vsub.f32 1.0, %v690
    %v695 = vmul.f32 %v694, %v693
    %v696 = vmul.f32 %v690, %v375
    %v697 = vadd.f32 %v695, %v696
    %698 = vmatpush.msra.mxu0 %v149
    %699 = vmatpush.msra.mxu0 %v145
    %700 = vmatpush.msra.mxu0 %v141
    %701 = vmatpush.msra.mxu0 %v137
    %702 = vmatpush.msra.mxu0 %v133
    %703 = vmatpush.msra.mxu0 %v129
    %704 = vmatpush.msra.mxu0 %v125
    %705 = vmatpush.msra.mxu0 %v121
    %706 = vmatpush.msra.mxu0 %v117
    %707 = vmatpush.msra.mxu0 %v113
    %708 = vmatpush.msra.mxu0 %v109
    %709 = vmatpush.msra.mxu0 %v105
    %710 = vmatpush.msra.mxu0 %v101
    %711 = vmatpush.msra.mxu0 %v97
    %712 = vmatpush.msra.mxu0 %v93
    %713 = vmatpush.msra.mxu0 %v89
    %714 = vmatmul.f32.gmra.mxu0 %v697
    %v715 = vpop.f32.mrf.mxu0
    %v716 = vadd.f32 %v249, %v715
    %717 = vdwg.mxu0
    %718 = vmatpush.msra.mxu0 %v213
    %719 = vmatpush.msra.mxu0 %v209
    %720 = vmatpush.msra.mxu0 %v205
    %721 = vmatpush.msra.mxu0 %v201
    %722 = vmatpush.msra.mxu0 %v197
    %723 = vmatpush.msra.mxu0 %v193
    %724 = vmatpush.msra.mxu0 %v189
    %725 = vmatpush.msra.mxu0 %v185
    %726 = vmatpush.msra.mxu0 %v181
    %727 = vmatpush.msra.mxu0 %v177
    %728 = vmatpush.msra.mxu0 %v173
    %729 = vmatpush.msra.mxu0 %v169
    %730 = vmatpush.msra.mxu0 %v165
    %731 = vmatpush.msra.mxu0 %v161
    %732 = vmatpush.msra.mxu0 %v157
    %733 = vmatpush.msra.mxu0 %v153
    %734 = vmatmul.f32.gmra.mxu0 %v580
    %v735 = vpop.f32.mrf.mxu0
    %v736 = vadd.f32 %v716, %v735
    %737 = vdwg.mxu0
    %738 = vmatpush.msra.mxu0 %v150
    %739 = vmatpush.msra.mxu0 %v146
    %740 = vmatpush.msra.mxu0 %v142
    %741 = vmatpush.msra.mxu0 %v138
    %742 = vmatpush.msra.mxu0 %v134
    %743 = vmatpush.msra.mxu0 %v130
    %744 = vmatpush.msra.mxu0 %v126
    %745 = vmatpush.msra.mxu0 %v122
    %746 = vmatpush.msra.mxu0 %v118
    %747 = vmatpush.msra.mxu0 %v114
    %748 = vmatpush.msra.mxu0 %v110
    %749 = vmatpush.msra.mxu0 %v106
    %750 = vmatpush.msra.mxu0 %v102
    %751 = vmatpush.msra.mxu0 %v98
    %752 = vmatpush.msra.mxu0 %v94
    %753 = vmatpush.msra.mxu0 %v90
    %754 = vmatmul.f32.gmra.mxu0 %v697
    %v755 = vpop.f32.mrf.mxu0
    %v756 = vadd.f32 %v250, %v755
    %757 = vdwg.mxu0
    %758 = vmatpush.msra.mxu0 %v214
    %759 = vmatpush.msra.mxu0 %v210
    %760 = vmatpush.msra.mxu0 %v206
    %761 = vmatpush.msra.mxu0 %v202
    %762 = vmatpush.msra.mxu0 %v198
    %763 = vmatpush.msra.mxu0 %v194
    %764 = vmatpush.msra.mxu0 %v190
    %765 = vmatpush.msra.mxu0 %v186
    %766 = vmatpush.msra.mxu0 %v182
    %767 = vmatpush.msra.mxu0 %v178
    %768 = vmatpush.msra.mxu0 %v174
    %769 = vmatpush.msra.mxu0 %v170
    %770 = vmatpush.msra.mxu0 %v166
    %771 = vmatpush.msra.mxu0 %v162
    %772 = vmatpush.msra.mxu0 %v158
    %773 = vmatpush.msra.mxu0 %v154
    %774 = vmatmul.f32.gmra.mxu0 %v580
    %v775 = vpop.f32.mrf.mxu0
    %v776 = vadd.f32 %v756, %v775
    %777 = vdwg.mxu0
    %778 = vmatpush.msra.mxu0 %v151
    %779 = vmatpush.msra.mxu0 %v147
    %780 = vmatpush.msra.mxu0 %v143
    %781 = vmatpush.msra.mxu0 %v139
    %782 = vmatpush.msra.mxu0 %v135
    %783 = vmatpush.msra.mxu0 %v131
    %784 = vmatpush.msra.mxu0 %v127
    %785 = vmatpush.msra.mxu0 %v123
    %786 = vmatpush.msra.mxu0 %v119
    %787 = vmatpush.msra.mxu0 %v115
    %788 = vmatpush.msra.mxu0 %v111
    %789 = vmatpush.msra.mxu0 %v107
    %790 = vmatpush.msra.mxu0 %v103
    %791 = vmatpush.msra.mxu0 %v99
    %792 = vmatpush.msra.mxu0 %v95
    %793 = vmatpush.msra.mxu0 %v91
    %794 = vmatmul.f32.gmra.mxu0 %v697
    %v795 = vpop.f32.mrf.mxu0
    %v796 = vadd.f32 %v251, %v795
    %797 = vdwg.mxu0
    %798 = vmatpush.msra.mxu0 %v215
    %799 = vmatpush.msra.mxu0 %v211
    %800 = vmatpush.msra.mxu0 %v207
    %801 = vmatpush.msra.mxu0 %v203
    %802 = vmatpush.msra.mxu0 %v199
    %803 = vmatpush.msra.mxu0 %v195
    %804 = vmatpush.msra.mxu0 %v191
    %805 = vmatpush.msra.mxu0 %v187
    %806 = vmatpush.msra.mxu0 %v183
    %807 = vmatpush.msra.mxu0 %v179
    %808 = vmatpush.msra.mxu0 %v175
    %809 = vmatpush.msra.mxu0 %v171
    %810 = vmatpush.msra.mxu0 %v167
    %811 = vmatpush.msra.mxu0 %v163
    %812 = vmatpush.msra.mxu0 %v159
    %813 = vmatpush.msra.mxu0 %v155
    %814 = vmatmul.f32.gmra.mxu0 %v580
    %v815 = vpop.f32.mrf.mxu0
    %v816 = vadd.f32 %v796, %v815
    %817 = vdwg.mxu0
    %818 = vmatpush.msra.mxu0 %v152
    %819 = vmatpush.msra.mxu0 %v148
    %820 = vmatpush.msra.mxu0 %v144
    %821 = vmatpush.msra.mxu0 %v140
    %822 = vmatpush.msra.mxu0 %v136
    %823 = vmatpush.msra.mxu0 %v132
    %824 = vmatpush.msra.mxu0 %v128
    %825 = vmatpush.msra.mxu0 %v124
    %826 = vmatpush.msra.mxu0 %v120
    %827 = vmatpush.msra.mxu0 %v116
    %828 = vmatpush.msra.mxu0 %v112
    %829 = vmatpush.msra.mxu0 %v108
    %830 = vmatpush.msra.mxu0 %v104
    %831 = vmatpush.msra.mxu0 %v100
    %832 = vmatpush.msra.mxu0 %v96
    %833 = vmatpush.msra.mxu0 %v92
    %834 = vmatmul.f32.gmra.mxu0 %v697
    %v835 = vpop.f32.mrf.mxu0
    %v836 = vadd.f32 %v252, %v835
    %837 = vdwg.mxu0
    %838 = vmatpush.msra.mxu0 %v216
    %839 = vmatpush.msra.mxu0 %v212
    %840 = vmatpush.msra.mxu0 %v208
    %841 = vmatpush.msra.mxu0 %v204
    %842 = vmatpush.msra.mxu0 %v200
    %843 = vmatpush.msra.mxu0 %v196
    %844 = vmatpush.msra.mxu0 %v192
    %845 = vmatpush.msra.mxu0 %v188
    %846 = vmatpush.msra.mxu0 %v184
    %847 = vmatpush.msra.mxu0 %v180
    %848 = vmatpush.msra.mxu0 %v176
    %849 = vmatpush.msra.mxu0 %v172
    %850 = vmatpush.msra.mxu0 %v168
    %851 = vmatpush.msra.mxu0 %v164
    %852 = vmatpush.msra.mxu0 %v160
    %853 = vmatpush.msra.mxu0 %v156
    %854 = vmatmul.f32.gmra.mxu0 %v580
    %v855 = vpop.f32.mrf.mxu0
    %v856 = vadd.f32 %v836, %v855
    %857 = vdwg.mxu0
    %v858 = vxor.u32 %v736, 2147483648
    %v859 = vmul.f32 %v858, 1.442695
    %v860 = vpow.pop %v859
    %v861 = vadd.f32 %v860, 1.0
    %v862 = vrcp.pop %v861
    %v863 = vmul.f32 %v861, %v862
    %v864 = vsub.f32 1.0, %v863
    %v865 = vmul.f32 %v862, %v864
    %v866 = vadd.f32 %v862, %v865
    %vm867 = vweird.f32 %v861
    %vm868 = vweird.f32 %v862
    %vm869 = vmor %vm867, %vm868
    %v870 = vsel %vm869, %v862, %v866
    %v871 = vand.u32 2147483647, %v861
    %vm872 = vcmp.eq.f32.partialorder %v871, 8.507059e+37
    %v873 = vand.u32 %v861, 2147483648
    %v874 = vor.u32 1.1754944e-38, %v873
    %v875 = vsel %vm872, %v874, %v870
    %v876 = vmul.f32 1.0, %v875
    %v877 = vxor.u32 %v776, 2147483648
    %v878 = vmul.f32 %v877, 1.442695
    %v879 = vpow.pop %v878
    %v880 = vadd.f32 %v879, 1.0
    %v881 = vrcp.pop %v880
    %v882 = vmul.f32 %v880, %v881
    %v883 = vsub.f32 1.0, %v882
    %v884 = vmul.f32 %v881, %v883
    %v885 = vadd.f32 %v881, %v884
    %vm886 = vweird.f32 %v880
    %vm887 = vweird.f32 %v881
    %vm888 = vmor %vm886, %vm887
    %v889 = vsel %vm888, %v881, %v885
    %v890 = vand.u32 2147483647, %v880
    %vm891 = vcmp.eq.f32.partialorder %v890, 8.507059e+37
    %v892 = vand.u32 %v880, 2147483648
    %v893 = vor.u32 1.1754944e-38, %v892
    %v894 = vsel %vm891, %v893, %v889
    %v895 = vmul.f32 1.0, %v894
    %v896 = vmul.f32 %v876, %v856
    %v897 = vadd.f32 %v816, %v896
    %v898 = vtanh.pop %v897
    %v899 = vsub.f32 1.0, %v895
    %v900 = vmul.f32 %v899, %v898
    %v901 = vmul.f32 %v895, %v580
    %v902 = vadd.f32 %v900, %v901
    %903 = vset.pattern.permute.xlu0 2
    %904 = vperm.xlu0 %903, %v257
    %v905 = vpop.permute.xlu0 %904
    %v907 = vmul.f32 %v905, %v228
    %v908 = vmul.f32 %v905, %v229
    %v909 = vmul.f32 %v905, %v230
    %v910 = vadd.f32 %v907, %v235
    %v911 = vadd.f32 %v908, %v236
    %v912 = vadd.f32 %v909, %v237
    %913 = vmatpush.msra.mxu0 %v86
    %914 = vmatpush.msra.mxu0 %v83
    %915 = vmatpush.msra.mxu0 %v80
    %916 = vmatpush.msra.mxu0 %v77
    %917 = vmatpush.msra.mxu0 %v74
    %918 = vmatpush.msra.mxu0 %v71
    %919 = vmatpush.msra.mxu0 %v68
    %920 = vmatpush.msra.mxu0 %v65
    %921 = vmatpush.msra.mxu0 %v62
    %922 = vmatpush.msra.mxu0 %v59
    %923 = vmatpush.msra.mxu0 %v56
    %924 = vmatpush.msra.mxu0 %v53
    %925 = vmatpush.msra.mxu0 %v50
    %926 = vmatpush.msra.mxu0 %v47
    %927 = vmatpush.msra.mxu0 %v44
    %928 = vmatpush.msra.mxu0 %v41
    %929 = vmatmul.f32.gmra.mxu0 %v697
    %v930 = vpop.f32.mrf.mxu0
    %v931 = vadd.f32 %v242, %v930
    %932 = vdwg.mxu0
    %933 = vmatpush.msra.mxu0 %v87
    %934 = vmatpush.msra.mxu0 %v84
    %935 = vmatpush.msra.mxu0 %v81
    %936 = vmatpush.msra.mxu0 %v78
    %937 = vmatpush.msra.mxu0 %v75
    %938 = vmatpush.msra.mxu0 %v72
    %939 = vmatpush.msra.mxu0 %v69
    %940 = vmatpush.msra.mxu0 %v66
    %941 = vmatpush.msra.mxu0 %v63
    %942 = vmatpush.msra.mxu0 %v60
    %943 = vmatpush.msra.mxu0 %v57
    %944 = vmatpush.msra.mxu0 %v54
    %945 = vmatpush.msra.mxu0 %v51
    %946 = vmatpush.msra.mxu0 %v48
    %947 = vmatpush.msra.mxu0 %v45
    %948 = vmatpush.msra.mxu0 %v42
    %949 = vmatmul.f32.gmra.mxu0 %v697
    %v950 = vpop.f32.mrf.mxu0
    %v951 = vadd.f32 %v243, %v950
    %952 = vdwg.mxu0
    %953 = vmatpush.msra.mxu0 %v88
    %954 = vmatpush.msra.mxu0 %v85
    %955 = vmatpush.msra.mxu0 %v82
    %956 = vmatpush.msra.mxu0 %v79
    %957 = vmatpush.msra.mxu0 %v76
    %958 = vmatpush.msra.mxu0 %v73
    %959 = vmatpush.msra.mxu0 %v70
    %960 = vmatpush.msra.mxu0 %v67
    %961 = vmatpush.msra.mxu0 %v64
    %962 = vmatpush.msra.mxu0 %v61
    %963 = vmatpush.msra.mxu0 %v58
    %964 = vmatpush.msra.mxu0 %v55
    %965 = vmatpush.msra.mxu0 %v52
    %966 = vmatpush.msra.mxu0 %v49
    %967 = vmatpush.msra.mxu0 %v46
    %968 = vmatpush.msra.mxu0 %v43
    %969 = vmatmul.f32.gmra.mxu0 %v697
    %v970 = vpop.f32.mrf.mxu0
    %v971 = vadd.f32 %v244, %v970
    %972 = vdwg.mxu0
    %v973 = vadd.f32 %v910, %v931
    %v974 = vxor.u32 %v973, 2147483648
    %v975 = vmul.f32 %v974, 1.442695
    %v976 = vpow.pop %v975
    %v977 = vadd.f32 %v976, 1.0
    %v978 = vrcp.pop %v977
    %v979 = vmul.f32 %v977, %v978
    %v980 = vsub.f32 1.0, %v979
    %v981 = vmul.f32 %v978, %v980
    %v982 = vadd.f32 %v978, %v981
    %vm983 = vweird.f32 %v977
    %vm984 = vweird.f32 %v978
    %vm985 = vmor %vm983, %vm984
    %v986 = vsel %vm985, %v978, %v982
    %v987 = vand.u32 2147483647, %v977
    %vm988 = vcmp.eq.f32.partialorder %v987, 8.507059e+37
    %v989 = vand.u32 %v977, 2147483648
    %v990 = vor.u32 1.1754944e-38, %v989
    %v991 = vsel %vm988, %v990, %v986
    %v992 = vmul.f32 1.0, %v991
    %v993 = vadd.f32 %v911, %v951
    %v994 = vxor.u32 %v993, 2147483648
    %v995 = vmul.f32 %v994, 1.442695
    %v996 = vpow.pop %v995
    %v997 = vadd.f32 %v996, 1.0
    %v998 = vrcp.pop %v997
    %v999 = vmul.f32 %v997, %v998
    %v1000 = vsub.f32 1.0, %v999
    %v1001 = vmul.f32 %v998, %v1000
    %v1002 = vadd.f32 %v998, %v1001
    %vm1003 = vweird.f32 %v997
    %vm1004 = vweird.f32 %v998
    %vm1005 = vmor %vm1003, %vm1004
    %v1006 = vsel %vm1005, %v998, %v1002
    %v1007 = vand.u32 2147483647, %v997
    %vm1008 = vcmp.eq.f32.partialorder %v1007, 8.507059e+37
    %v1009 = vand.u32 %v997, 2147483648
    %v1010 = vor.u32 1.1754944e-38, %v1009
    %v1011 = vsel %vm1008, %v1010, %v1006
    %v1012 = vmul.f32 1.0, %v1011
    %v1013 = vmul.f32 %v992, %v971
    %v1014 = vadd.f32 %v912, %v1013
    %v1015 = vtanh.pop %v1014
    %v1016 = vsub.f32 1.0, %v1012
    %v1017 = vmul.f32 %v1016, %v1015
    %v1018 = vmul.f32 %v1012, %v697
    %v1019 = vadd.f32 %v1017, %v1018
    %1020 = vmatpush.msra.mxu0 %v149
    %1021 = vmatpush.msra.mxu0 %v145
    %1022 = vmatpush.msra.mxu0 %v141
    %1023 = vmatpush.msra.mxu0 %v137
    %1024 = vmatpush.msra.mxu0 %v133
    %1025 = vmatpush.msra.mxu0 %v129
    %1026 = vmatpush.msra.mxu0 %v125
    %1027 = vmatpush.msra.mxu0 %v121
    %1028 = vmatpush.msra.mxu0 %v117
    %1029 = vmatpush.msra.mxu0 %v113
    %1030 = vmatpush.msra.mxu0 %v109
    %1031 = vmatpush.msra.mxu0 %v105
    %1032 = vmatpush.msra.mxu0 %v101
    %1033 = vmatpush.msra.mxu0 %v97
    %1034 = vmatpush.msra.mxu0 %v93
    %1035 = vmatpush.msra.mxu0 %v89
    %1036 = vmatmul.f32.gmra.mxu0 %v1019
    %v1037 = vpop.f32.mrf.mxu0
    %v1038 = vadd.f32 %v249, %v1037
    %1039 = vdwg.mxu0
    %1040 = vmatpush.msra.mxu0 %v213
    %1041 = vmatpush.msra.mxu0 %v209
    %1042 = vmatpush.msra.mxu0 %v205
    %1043 = vmatpush.msra.mxu0 %v201
    %1044 = vmatpush.msra.mxu0 %v197
    %1045 = vmatpush.msra.mxu0 %v193
    %1046 = vmatpush.msra.mxu0 %v189
    %1047 = vmatpush.msra.mxu0 %v185
    %1048 = vmatpush.msra.mxu0 %v181
    %1049 = vmatpush.msra.mxu0 %v177
    %1050 = vmatpush.msra.mxu0 %v173
    %1051 = vmatpush.msra.mxu0 %v169
    %1052 = vmatpush.msra.mxu0 %v165
    %1053 = vmatpush.msra.mxu0 %v161
    %1054 = vmatpush.msra.mxu0 %v157
    %1055 = vmatpush.msra.mxu0 %v153
    %1056 = vmatmul.f32.gmra.mxu0 %v902
    %v1057 = vpop.f32.mrf.mxu0
    %v1058 = vadd.f32 %v1038, %v1057
    %1059 = vdwg.mxu0
    %1060 = vmatpush.msra.mxu0 %v150
    %1061 = vmatpush.msra.mxu0 %v146
    %1062 = vmatpush.msra.mxu0 %v142
    %1063 = vmatpush.msra.mxu0 %v138
    %1064 = vmatpush.msra.mxu0 %v134
    %1065 = vmatpush.msra.mxu0 %v130
    %1066 = vmatpush.msra.mxu0 %v126
    %1067 = vmatpush.msra.mxu0 %v122
    %1068 = vmatpush.msra.mxu0 %v118
    %1069 = vmatpush.msra.mxu0 %v114
    %1070 = vmatpush.msra.mxu0 %v110
    %1071 = vmatpush.msra.mxu0 %v106
    %1072 = vmatpush.msra.mxu0 %v102
    %1073 = vmatpush.msra.mxu0 %v98
    %1074 = vmatpush.msra.mxu0 %v94
    %1075 = vmatpush.msra.mxu0 %v90
    %1076 = vmatmul.f32.gmra.mxu0 %v1019
    %v1077 = vpop.f32.mrf.mxu0
    %v1078 = vadd.f32 %v250, %v1077
    %1079 = vdwg.mxu0
    %1080 = vmatpush.msra.mxu0 %v214
    %1081 = vmatpush.msra.mxu0 %v210
    %1082 = vmatpush.msra.mxu0 %v206
    %1083 = vmatpush.msra.mxu0 %v202
    %1084 = vmatpush.msra.mxu0 %v198
    %1085 = vmatpush.msra.mxu0 %v194
    %1086 = vmatpush.msra.mxu0 %v190
    %1087 = vmatpush.msra.mxu0 %v186
    %1088 = vmatpush.msra.mxu0 %v182
    %1089 = vmatpush.msra.mxu0 %v178
    %1090 = vmatpush.msra.mxu0 %v174
    %1091 = vmatpush.msra.mxu0 %v170
    %1092 = vmatpush.msra.mxu0 %v166
    %1093 = vmatpush.msra.mxu0 %v162
    %1094 = vmatpush.msra.mxu0 %v158
    %1095 = vmatpush.msra.mxu0 %v154
    %1096 = vmatmul.f32.gmra.mxu0 %v902
    %v1097 = vpop.f32.mrf.mxu0
    %v1098 = vadd.f32 %v1078, %v1097
    %1099 = vdwg.mxu0
    %1100 = vmatpush.msra.mxu0 %v151
    %1101 = vmatpush.msra.mxu0 %v147
    %1102 = vmatpush.msra.mxu0 %v143
    %1103 = vmatpush.msra.mxu0 %v139
    %1104 = vmatpush.msra.mxu0 %v135
    %1105 = vmatpush.msra.mxu0 %v131
    %1106 = vmatpush.msra.mxu0 %v127
    %1107 = vmatpush.msra.mxu0 %v123
    %1108 = vmatpush.msra.mxu0 %v119
    %1109 = vmatpush.msra.mxu0 %v115
    %1110 = vmatpush.msra.mxu0 %v111
    %1111 = vmatpush.msra.mxu0 %v107
    %1112 = vmatpush.msra.mxu0 %v103
    %1113 = vmatpush.msra.mxu0 %v99
    %1114 = vmatpush.msra.mxu0 %v95
    %1115 = vmatpush.msra.mxu0 %v91
    %1116 = vmatmul.f32.gmra.mxu0 %v1019
    %v1117 = vpop.f32.mrf.mxu0
    %v1118 = vadd.f32 %v251, %v1117
    %1119 = vdwg.mxu0
    %1120 = vmatpush.msra.mxu0 %v215
    %1121 = vmatpush.msra.mxu0 %v211
    %1122 = vmatpush.msra.mxu0 %v207
    %1123 = vmatpush.msra.mxu0 %v203
    %1124 = vmatpush.msra.mxu0 %v199
    %1125 = vmatpush.msra.mxu0 %v195
    %1126 = vmatpush.msra.mxu0 %v191
    %1127 = vmatpush.msra.mxu0 %v187
    %1128 = vmatpush.msra.mxu0 %v183
    %1129 = vmatpush.msra.mxu0 %v179
    %1130 = vmatpush.msra.mxu0 %v175
    %1131 = vmatpush.msra.mxu0 %v171
    %1132 = vmatpush.msra.mxu0 %v167
    %1133 = vmatpush.msra.mxu0 %v163
    %1134 = vmatpush.msra.mxu0 %v159
    %1135 = vmatpush.msra.mxu0 %v155
    %1136 = vmatmul.f32.gmra.mxu0 %v902
    %v1137 = vpop.f32.mrf.mxu0
    %v1138 = vadd.f32 %v1118, %v1137
    %1139 = vdwg.mxu0
    %1140 = vmatpush.msra.mxu0 %v152
    %1141 = vmatpush.msra.mxu0 %v148
    %1142 = vmatpush.msra.mxu0 %v144
    %1143 = vmatpush.msra.mxu0 %v140
    %1144 = vmatpush.msra.mxu0 %v136
    %1145 = vmatpush.msra.mxu0 %v132
    %1146 = vmatpush.msra.mxu0 %v128
    %1147 = vmatpush.msra.mxu0 %v124
    %1148 = vmatpush.msra.mxu0 %v120
    %1149 = vmatpush.msra.mxu0 %v116
    %1150 = vmatpush.msra.mxu0 %v112
    %1151 = vmatpush.msra.mxu0 %v108
    %1152 = vmatpush.msra.mxu0 %v104
    %1153 = vmatpush.msra.mxu0 %v100
    %1154 = vmatpush.msra.mxu0 %v96
    %1155 = vmatpush.msra.mxu0 %v92
    %1156 = vmatmul.f32.gmra.mxu0 %v1019
    %v1157 = vpop.f32.mrf.mxu0
    %v1158 = vadd.f32 %v252, %v1157
    %1159 = vdwg.mxu0
    %1160 = vmatpush.msra.mxu0 %v216
    %1161 = vmatpush.msra.mxu0 %v212
    %1162 = vmatpush.msra.mxu0 %v208
    %1163 = vmatpush.msra.mxu0 %v204
    %1164 = vmatpush.msra.mxu0 %v200
    %1165 = vmatpush.msra.mxu0 %v196
    %1166 = vmatpush.msra.mxu0 %v192
    %1167 = vmatpush.msra.mxu0 %v188
    %1168 = vmatpush.msra.mxu0 %v184
    %1169 = vmatpush.msra.mxu0 %v180
    %1170 = vmatpush.msra.mxu0 %v176
    %1171 = vmatpush.msra.mxu0 %v172
    %1172 = vmatpush.msra.mxu0 %v168
    %1173 = vmatpush.msra.mxu0 %v164
    %1174 = vmatpush.msra.mxu0 %v160
    %1175 = vmatpush.msra.mxu0 %v156
    %1176 = vmatmul.f32.gmra.mxu0 %v902
    %v1177 = vpop.f32.mrf.mxu0
    %v1178 = vadd.f32 %v1158, %v1177
    %1179 = vdwg.mxu0
    %v1180 = vxor.u32 %v1058, 2147483648
    %v1181 = vmul.f32 %v1180, 1.442695
    %v1182 = vpow.pop %v1181
    %v1183 = vadd.f32 %v1182, 1.0
    %v1184 = vrcp.pop %v1183
    %v1185 = vmul.f32 %v1183, %v1184
    %v1186 = vsub.f32 1.0, %v1185
    %v1187 = vmul.f32 %v1184, %v1186
    %v1188 = vadd.f32 %v1184, %v1187
    %vm1189 = vweird.f32 %v1183
    %vm1190 = vweird.f32 %v1184
    %vm1191 = vmor %vm1189, %vm1190
    %v1192 = vsel %vm1191, %v1184, %v1188
    %v1193 = vand.u32 2147483647, %v1183
    %vm1194 = vcmp.eq.f32.partialorder %v1193, 8.507059e+37
    %v1195 = vand.u32 %v1183, 2147483648
    %v1196 = vor.u32 1.1754944e-38, %v1195
    %v1197 = vsel %vm1194, %v1196, %v1192
    %v1198 = vmul.f32 1.0, %v1197
    %v1199 = vxor.u32 %v1098, 2147483648
    %v1200 = vmul.f32 %v1199, 1.442695
    %v1201 = vpow.pop %v1200
    %v1202 = vadd.f32 %v1201, 1.0
    %v1203 = vrcp.pop %v1202
    %v1204 = vmul.f32 %v1202, %v1203
    %v1205 = vsub.f32 1.0, %v1204
    %v1206 = vmul.f32 %v1203, %v1205
    %v1207 = vadd.f32 %v1203, %v1206
    %vm1208 = vweird.f32 %v1202
    %vm1209 = vweird.f32 %v1203
    %vm1210 = vmor %vm1208, %vm1209
    %v1211 = vsel %vm1210, %v1203, %v1207
    %v1212 = vand.u32 2147483647, %v1202
    %vm1213 = vcmp.eq.f32.partialorder %v1212, 8.507059e+37
    %v1214 = vand.u32 %v1202, 2147483648
    %v1215 = vor.u32 1.1754944e-38, %v1214
    %v1216 = vsel %vm1213, %v1215, %v1211
    %v1217 = vmul.f32 1.0, %v1216
    %v1218 = vmul.f32 %v1198, %v1178
    %v1219 = vadd.f32 %v1138, %v1218
    %v1220 = vtanh.pop %v1219
    %v1221 = vsub.f32 1.0, %v1217
    %v1222 = vmul.f32 %v1221, %v1220
    %v1223 = vmul.f32 %v1217, %v902
    %v1224 = vadd.f32 %v1222, %v1223
    %1225 = vset.pattern.permute.xlu0 3
    %1226 = vperm.xlu0 %1225, %v257
    %v1227 = vpop.permute.xlu0 %1226
    %v1229 = vmul.f32 %v1227, %v228
    %v1230 = vmul.f32 %v1227, %v229
    %v1231 = vmul.f32 %v1227, %v230
    %v1232 = vadd.f32 %v1229, %v235
    %v1233 = vadd.f32 %v1230, %v236
    %v1234 = vadd.f32 %v1231, %v237
    %1235 = vmatpush.msra.mxu0 %v86
    %1236 = vmatpush.msra.mxu0 %v83
    %1237 = vmatpush.msra.mxu0 %v80
    %1238 = vmatpush.msra.mxu0 %v77
    %1239 = vmatpush.msra.mxu0 %v74
    %1240 = vmatpush.msra.mxu0 %v71
    %1241 = vmatpush.msra.mxu0 %v68
    %1242 = vmatpush.msra.mxu0 %v65
    %1243 = vmatpush.msra.mxu0 %v62
    %1244 = vmatpush.msra.mxu0 %v59
    %1245 = vmatpush.msra.mxu0 %v56
    %1246 = vmatpush.msra.mxu0 %v53
    %1247 = vmatpush.msra.mxu0 %v50
    %1248 = vmatpush.msra.mxu0 %v47
    %1249 = vmatpush.msra.mxu0 %v44
    %1250 = vmatpush.msra.mxu0 %v41
    %1251 = vmatmul.f32.gmra.mxu0 %v1019
    %v1252 = vpop.f32.mrf.mxu0
    %v1253 = vadd.f32 %v242, %v1252
    %1254 = vdwg.mxu0
    %1255 = vmatpush.msra.mxu0 %v87
    %1256 = vmatpush.msra.mxu0 %v84
    %1257 = vmatpush.msra.mxu0 %v81
    %1258 = vmatpush.msra.mxu0 %v78
    %1259 = vmatpush.msra.mxu0 %v75
    %1260 = vmatpush.msra.mxu0 %v72
    %1261 = vmatpush.msra.mxu0 %v69
    %1262 = vmatpush.msra.mxu0 %v66
    %1263 = vmatpush.msra.mxu0 %v63
    %1264 = vmatpush.msra.mxu0 %v60
    %1265 = vmatpush.msra.mxu0 %v57
    %1266 = vmatpush.msra.mxu0 %v54
    %1267 = vmatpush.msra.mxu0 %v51
    %1268 = vmatpush.msra.mxu0 %v48
    %1269 = vmatpush.msra.mxu0 %v45
    %1270 = vmatpush.msra.mxu0 %v42
    %1271 = vmatmul.f32.gmra.mxu0 %v1019
    %v1272 = vpop.f32.mrf.mxu0
    %v1273 = vadd.f32 %v243, %v1272
    %1274 = vdwg.mxu0
    %1275 = vmatpush.msra.mxu0 %v88
    %1276 = vmatpush.msra.mxu0 %v85
    %1277 = vmatpush.msra.mxu0 %v82
    %1278 = vmatpush.msra.mxu0 %v79
    %1279 = vmatpush.msra.mxu0 %v76
    %1280 = vmatpush.msra.mxu0 %v73
    %1281 = vmatpush.msra.mxu0 %v70
    %1282 = vmatpush.msra.mxu0 %v67
    %1283 = vmatpush.msra.mxu0 %v64
    %1284 = vmatpush.msra.mxu0 %v61
    %1285 = vmatpush.msra.mxu0 %v58
    %1286 = vmatpush.msra.mxu0 %v55
    %1287 = vmatpush.msra.mxu0 %v52
    %1288 = vmatpush.msra.mxu0 %v49
    %1289 = vmatpush.msra.mxu0 %v46
    %1290 = vmatpush.msra.mxu0 %v43
    %1291 = vmatmul.f32.gmra.mxu0 %v1019
    %v1292 = vpop.f32.mrf.mxu0
    %v1293 = vadd.f32 %v244, %v1292
    %1294 = vdwg.mxu0
    %v1295 = vadd.f32 %v1232, %v1253
    %v1296 = vxor.u32 %v1295, 2147483648
    %v1297 = vmul.f32 %v1296, 1.442695
    %v1298 = vpow.pop %v1297
    %v1299 = vadd.f32 %v1298, 1.0
    %v1300 = vrcp.pop %v1299
    %v1301 = vmul.f32 %v1299, %v1300
    %v1302 = vsub.f32 1.0, %v1301
    %v1303 = vmul.f32 %v1300, %v1302
    %v1304 = vadd.f32 %v1300, %v1303
    %vm1305 = vweird.f32 %v1299
    %vm1306 = vweird.f32 %v1300
    %vm1307 = vmor %vm1305, %vm1306
    %v1308 = vsel %vm1307, %v1300, %v1304
    %v1309 = vand.u32 2147483647, %v1299
    %vm1310 = vcmp.eq.f32.partialorder %v1309, 8.507059e+37
    %v1311 = vand.u32 %v1299, 2147483648
    %v1312 = vor.u32 1.1754944e-38, %v1311
    %v1313 = vsel %vm1310, %v1312, %v1308
    %v1314 = vmul.f32 1.0, %v1313
    %v1315 = vadd.f32 %v1233, %v1273
    %v1316 = vxor.u32 %v1315, 2147483648
    %v1317 = vmul.f32 %v1316, 1.442695
    %v1318 = vpow.pop %v1317
    %v1319 = vadd.f32 %v1318, 1.0
    %v1320 = vrcp.pop %v1319
    %v1321 = vmul.f32 %v1319, %v1320
    %v1322 = vsub.f32 1.0, %v1321
    %v1323 = vmul.f32 %v1320, %v1322
    %v1324 = vadd.f32 %v1320, %v1323
    %vm1325 = vweird.f32 %v1319
    %vm1326 = vweird.f32 %v1320
    %vm1327 = vmor %vm1325, %vm1326
    %v1328 = vsel %vm1327, %v1320, %v1324
    %v1329 = vand.u32 2147483647, %v1319
    %vm1330 = vcmp.eq.f32.partialorder %v1329, 8.507059e+37
    %v1331 = vand.u32 %v1319, 2147483648
    %v1332 = vor.u32 1.1754944e-38, %v1331
    %v1333 = vsel %vm1330, %v1332, %v1328
    %v1334 = vmul.f32 1.0, %v1333
    %v1335 = vmul.f32 %v1314, %v1293
    %v1336 = vadd.f32 %v1234, %v1335
    %v1337 = vtanh.pop %v1336
    %v1338 = vsub.f32 1.0, %v1334
    %v1339 = vmul.f32 %v1338, %v1337
    %v1340 = vmul.f32 %v1334, %v1019
    %v1341 = vadd.f32 %v1339, %v1340
    %1342 = vmatpush.msra.mxu0 %v149
    %1343 = vmatpush.msra.mxu0 %v145
    %1344 = vmatpush.msra.mxu0 %v141
    %1345 = vmatpush.msra.mxu0 %v137
    %1346 = vmatpush.msra.mxu0 %v133
    %1347 = vmatpush.msra.mxu0 %v129
    %1348 = vmatpush.msra.mxu0 %v125
    %1349 = vmatpush.msra.mxu0 %v121
    %1350 = vmatpush.msra.mxu0 %v117
    %1351 = vmatpush.msra.mxu0 %v113
    %1352 = vmatpush.msra.mxu0 %v109
    %1353 = vmatpush.msra.mxu0 %v105
    %1354 = vmatpush.msra.mxu0 %v101
    %1355 = vmatpush.msra.mxu0 %v97
    %1356 = vmatpush.msra.mxu0 %v93
    %1357 = vmatpush.msra.mxu0 %v89
    %1358 = vmatmul.f32.gmra.mxu0 %v1341
    %v1359 = vpop.f32.mrf.mxu0
    %v1360 = vadd.f32 %v249, %v1359
    %1361 = vdwg.mxu0
    %1362 = vmatpush.msra.mxu0 %v213
    %1363 = vmatpush.msra.mxu0 %v209
    %1364 = vmatpush.msra.mxu0 %v205
    %1365 = vmatpush.msra.mxu0 %v201
    %1366 = vmatpush.msra.mxu0 %v197
    %1367 = vmatpush.msra.mxu0 %v193
    %1368 = vmatpush.msra.mxu0 %v189
    %1369 = vmatpush.msra.mxu0 %v185
    %1370 = vmatpush.msra.mxu0 %v181
    %1371 = vmatpush.msra.mxu0 %v177
    %1372 = vmatpush.msra.mxu0 %v173
    %1373 = vmatpush.msra.mxu0 %v169
    %1374 = vmatpush.msra.mxu0 %v165
    %1375 = vmatpush.msra.mxu0 %v161
    %1376 = vmatpush.msra.mxu0 %v157
    %1377 = vmatpush.msra.mxu0 %v153
    %1378 = vmatmul.f32.gmra.mxu0 %v1224
    %v1379 = vpop.f32.mrf.mxu0
    %v1380 = vadd.f32 %v1360, %v1379
    %1381 = vdwg.mxu0
    %1382 = vmatpush.msra.mxu0 %v150
    %1383 = vmatpush.msra.mxu0 %v146
    %1384 = vmatpush.msra.mxu0 %v142
    %1385 = vmatpush.msra.mxu0 %v138
    %1386 = vmatpush.msra.mxu0 %v134
    %1387 = vmatpush.msra.mxu0 %v130
    %1388 = vmatpush.msra.mxu0 %v126
    %1389 = vmatpush.msra.mxu0 %v122
    %1390 = vmatpush.msra.mxu0 %v118
    %1391 = vmatpush.msra.mxu0 %v114
    %1392 = vmatpush.msra.mxu0 %v110
    %1393 = vmatpush.msra.mxu0 %v106
    %1394 = vmatpush.msra.mxu0 %v102
    %1395 = vmatpush.msra.mxu0 %v98
    %1396 = vmatpush.msra.mxu0 %v94
    %1397 = vmatpush.msra.mxu0 %v90
    %1398 = vmatmul.f32.gmra.mxu0 %v1341
    %v1399 = vpop.f32.mrf.mxu0
    %v1400 = vadd.f32 %v250, %v1399
    %1401 = vdwg.mxu0
    %1402 = vmatpush.msra.mxu0 %v214
    %1403 = vmatpush.msra.mxu0 %v210
    %1404 = vmatpush.msra.mxu0 %v206
    %1405 = vmatpush.msra.mxu0 %v202
    %1406 = vmatpush.msra.mxu0 %v198
    %1407 = vmatpush.msra.mxu0 %v194
    %1408 = vmatpush.msra.mxu0 %v190
    %1409 = vmatpush.msra.mxu0 %v186
    %1410 = vmatpush.msra.mxu0 %v182
    %1411 = vmatpush.msra.mxu0 %v178
    %1412 = vmatpush.msra.mxu0 %v174
    %1413 = vmatpush.msra.mxu0 %v170
    %1414 = vmatpush.msra.mxu0 %v166
    %1415 = vmatpush.msra.mxu0 %v162
    %1416 = vmatpush.msra.mxu0 %v158
    %1417 = vmatpush.msra.mxu0 %v154
    %1418 = vmatmul.f32.gmra.mxu0 %v1224
    %v1419 = vpop.f32.mrf.mxu0
    %v1420 = vadd.f32 %v1400, %v1419
    %1421 = vdwg.mxu0
    %1422 = vmatpush.msra.mxu0 %v151
    %1423 = vmatpush.msra.mxu0 %v147
    %1424 = vmatpush.msra.mxu0 %v143
    %1425 = vmatpush.msra.mxu0 %v139
    %1426 = vmatpush.msra.mxu0 %v135
    %1427 = vmatpush.msra.mxu0 %v131
    %1428 = vmatpush.msra.mxu0 %v127
    %1429 = vmatpush.msra.mxu0 %v123
    %1430 = vmatpush.msra.mxu0 %v119
    %1431 = vmatpush.msra.mxu0 %v115
    %1432 = vmatpush.msra.mxu0 %v111
    %1433 = vmatpush.msra.mxu0 %v107
    %1434 = vmatpush.msra.mxu0 %v103
    %1435 = vmatpush.msra.mxu0 %v99
    %1436 = vmatpush.msra.mxu0 %v95
    %1437 = vmatpush.msra.mxu0 %v91
    %1438 = vmatmul.f32.gmra.mxu0 %v1341
    %v1439 = vpop.f32.mrf.mxu0
    %v1440 = vadd.f32 %v251, %v1439
    %1441 = vdwg.mxu0
    %1442 = vmatpush.msra.mxu0 %v215
    %1443 = vmatpush.msra.mxu0 %v211
    %1444 = vmatpush.msra.mxu0 %v207
    %1445 = vmatpush.msra.mxu0 %v203
    %1446 = vmatpush.msra.mxu0 %v199
    %1447 = vmatpush.msra.mxu0 %v195
    %1448 = vmatpush.msra.mxu0 %v191
    %1449 = vmatpush.msra.mxu0 %v187
    %1450 = vmatpush.msra.mxu0 %v183
    %1451 = vmatpush.msra.mxu0 %v179
    %1452 = vmatpush.msra.mxu0 %v175
    %1453 = vmatpush.msra.mxu0 %v171
    %1454 = vmatpush.msra.mxu0 %v167
    %1455 = vmatpush.msra.mxu0 %v163
    %1456 = vmatpush.msra.mxu0 %v159
    %1457 = vmatpush.msra.mxu0 %v155
    %1458 = vmatmul.f32.gmra.mxu0 %v1224
    %v1459 = vpop.f32.mrf.mxu0
    %v1460 = vadd.f32 %v1440, %v1459
    %1461 = vdwg.mxu0
    %1462 = vmatpush.msra.mxu0 %v152
    %1463 = vmatpush.msra.mxu0 %v148
    %1464 = vmatpush.msra.mxu0 %v144
    %1465 = vmatpush.msra.mxu0 %v140
    %1466 = vmatpush.msra.mxu0 %v136
    %1467 = vmatpush.msra.mxu0 %v132
    %1468 = vmatpush.msra.mxu0 %v128
    %1469 = vmatpush.msra.mxu0 %v124
    %1470 = vmatpush.msra.mxu0 %v120
    %1471 = vmatpush.msra.mxu0 %v116
    %1472 = vmatpush.msra.mxu0 %v112
    %1473 = vmatpush.msra.mxu0 %v108
    %1474 = vmatpush.msra.mxu0 %v104
    %1475 = vmatpush.msra.mxu0 %v100
    %1476 = vmatpush.msra.mxu0 %v96
    %1477 = vmatpush.msra.mxu0 %v92
    %1478 = vmatmul.f32.gmra.mxu0 %v1341
    %v1479 = vpop.f32.mrf.mxu0
    %v1480 = vadd.f32 %v252, %v1479
    %1481 = vdwg.mxu0
    %1482 = vmatpush.msra.mxu0 %v216
    %1483 = vmatpush.msra.mxu0 %v212
    %1484 = vmatpush.msra.mxu0 %v208
    %1485 = vmatpush.msra.mxu0 %v204
    %1486 = vmatpush.msra.mxu0 %v200
    %1487 = vmatpush.msra.mxu0 %v196
    %1488 = vmatpush.msra.mxu0 %v192
    %1489 = vmatpush.msra.mxu0 %v188
    %1490 = vmatpush.msra.mxu0 %v184
    %1491 = vmatpush.msra.mxu0 %v180
    %1492 = vmatpush.msra.mxu0 %v176
    %1493 = vmatpush.msra.mxu0 %v172
    %1494 = vmatpush.msra.mxu0 %v168
    %1495 = vmatpush.msra.mxu0 %v164
    %1496 = vmatpush.msra.mxu0 %v160
    %1497 = vmatpush.msra.mxu0 %v156
    %1498 = vmatmul.f32.gmra.mxu0 %v1224
    %v1499 = vpop.f32.mrf.mxu0
    %v1500 = vadd.f32 %v1480, %v1499
    %1501 = vdwg.mxu0
    %v1502 = vxor.u32 %v1380, 2147483648
    %v1503 = vmul.f32 %v1502, 1.442695
    %v1504 = vpow.pop %v1503
    %v1505 = vadd.f32 %v1504, 1.0
    %v1506 = vrcp.pop %v1505
    %v1507 = vmul.f32 %v1505, %v1506
    %v1508 = vsub.f32 1.0, %v1507
    %v1509 = vmul.f32 %v1506, %v1508
    %v1510 = vadd.f32 %v1506, %v1509
    %vm1511 = vweird.f32 %v1505
    %vm1512 = vweird.f32 %v1506
    %vm1513 = vmor %vm1511, %vm1512
    %v1514 = vsel %vm1513, %v1506, %v1510
    %v1515 = vand.u32 2147483647, %v1505
    %vm1516 = vcmp.eq.f32.partialorder %v1515, 8.507059e+37
    %v1517 = vand.u32 %v1505, 2147483648
    %v1518 = vor.u32 1.1754944e-38, %v1517
    %v1519 = vsel %vm1516, %v1518, %v1514
    %v1520 = vmul.f32 1.0, %v1519
    %v1521 = vxor.u32 %v1420, 2147483648
    %v1522 = vmul.f32 %v1521, 1.442695
    %v1523 = vpow.pop %v1522
    %v1524 = vadd.f32 %v1523, 1.0
    %v1525 = vrcp.pop %v1524
    %v1526 = vmul.f32 %v1524, %v1525
    %v1527 = vsub.f32 1.0, %v1526
    %v1528 = vmul.f32 %v1525, %v1527
    %v1529 = vadd.f32 %v1525, %v1528
    %vm1530 = vweird.f32 %v1524
    %vm1531 = vweird.f32 %v1525
    %vm1532 = vmor %vm1530, %vm1531
    %v1533 = vsel %vm1532, %v1525, %v1529
    %v1534 = vand.u32 2147483647, %v1524
    %vm1535 = vcmp.eq.f32.partialorder %v1534, 8.507059e+37
    %v1536 = vand.u32 %v1524, 2147483648
    %v1537 = vor.u32 1.1754944e-38, %v1536
    %v1538 = vsel %vm1535, %v1537, %v1533
    %v1539 = vmul.f32 1.0, %v1538
    %v1540 = vmul.f32 %v1520, %v1500
    %v1541 = vadd.f32 %v1460, %v1540
    %v1542 = vtanh.pop %v1541
    %v1543 = vsub.f32 1.0, %v1539
    %v1544 = vmul.f32 %v1543, %v1542
    %v1545 = vmul.f32 %v1539, %v1224
    %v1546 = vadd.f32 %v1544, %v1545
    %1547 = vset.pattern.permute.xlu0 4
    %1548 = vperm.xlu0 %1547, %v257
    %v1549 = vpop.permute.xlu0 %1548
    %v1551 = vmul.f32 %v1549, %v228
    %v1552 = vmul.f32 %v1549, %v229
    %v1553 = vmul.f32 %v1549, %v230
    %v1554 = vadd.f32 %v1551, %v235
    %v1555 = vadd.f32 %v1552, %v236
    %v1556 = vadd.f32 %v1553, %v237
    %1557 = vmatpush.msra.mxu0 %v86
    %1558 = vmatpush.msra.mxu0 %v83
    %1559 = vmatpush.msra.mxu0 %v80
    %1560 = vmatpush.msra.mxu0 %v77
    %1561 = vmatpush.msra.mxu0 %v74
    %1562 = vmatpush.msra.mxu0 %v71
    %1563 = vmatpush.msra.mxu0 %v68
    %1564 = vmatpush.msra.mxu0 %v65
    %1565 = vmatpush.msra.mxu0 %v62
    %1566 = vmatpush.msra.mxu0 %v59
    %1567 = vmatpush.msra.mxu0 %v56
    %1568 = vmatpush.msra.mxu0 %v53
    %1569 = vmatpush.msra.mxu0 %v50
    %1570 = vmatpush.msra.mxu0 %v47
    %1571 = vmatpush.msra.mxu0 %v44
    %1572 = vmatpush.msra.mxu0 %v41
    %1573 = vmatmul.f32.gmra.mxu0 %v1341
    %v1574 = vpop.f32.mrf.mxu0
    %v1575 = vadd.f32 %v242, %v1574
    %1576 = vdwg.mxu0
    %1577 = vmatpush.msra.mxu0 %v87
    %1578 = vmatpush.msra.mxu0 %v84
    %1579 = vmatpush.msra.mxu0 %v81
    %1580 = vmatpush.msra.mxu0 %v78
    %1581 = vmatpush.msra.mxu0 %v75
    %1582 = vmatpush.msra.mxu0 %v72
    %1583 = vmatpush.msra.mxu0 %v69
    %1584 = vmatpush.msra.mxu0 %v66
    %1585 = vmatpush.msra.mxu0 %v63
    %1586 = vmatpush.msra.mxu0 %v60
    %1587 = vmatpush.msra.mxu0 %v57
    %1588 = vmatpush.msra.mxu0 %v54
    %1589 = vmatpush.msra.mxu0 %v51
    %1590 = vmatpush.msra.mxu0 %v48
    %1591 = vmatpush.msra.mxu0 %v45
    %1592 = vmatpush.msra.mxu0 %v42
    %1593 = vmatmul.f32.gmra.mxu0 %v1341
    %v1594 = vpop.f32.mrf.mxu0
    %v1595 = vadd.f32 %v243, %v1594
    %1596 = vdwg.mxu0
    %1597 = vmatpush.msra.mxu0 %v88
    %1598 = vmatpush.msra.mxu0 %v85
    %1599 = vmatpush.msra.mxu0 %v82
    %1600 = vmatpush.msra.mxu0 %v79
    %1601 = vmatpush.msra.mxu0 %v76
    %1602 = vmatpush.msra.mxu0 %v73
    %1603 = vmatpush.msra.mxu0 %v70
    %1604 = vmatpush.msra.mxu0 %v67
    %1605 = vmatpush.msra.mxu0 %v64
    %1606 = vmatpush.msra.mxu0 %v61
    %1607 = vmatpush.msra.mxu0 %v58
    %1608 = vmatpush.msra.mxu0 %v55
    %1609 = vmatpush.msra.mxu0 %v52
    %1610 = vmatpush.msra.mxu0 %v49
    %1611 = vmatpush.msra.mxu0 %v46
    %1612 = vmatpush.msra.mxu0 %v43
    %1613 = vmatmul.f32.gmra.mxu0 %v1341
    %v1614 = vpop.f32.mrf.mxu0
    %v1615 = vadd.f32 %v244, %v1614
    %1616 = vdwg.mxu0
    %v1617 = vadd.f32 %v1554, %v1575
    %v1618 = vxor.u32 %v1617, 2147483648
    %v1619 = vmul.f32 %v1618, 1.442695
    %v1620 = vpow.pop %v1619
    %v1621 = vadd.f32 %v1620, 1.0
    %v1622 = vrcp.pop %v1621
    %v1623 = vmul.f32 %v1621, %v1622
    %v1624 = vsub.f32 1.0, %v1623
    %v1625 = vmul.f32 %v1622, %v1624
    %v1626 = vadd.f32 %v1622, %v1625
    %vm1627 = vweird.f32 %v1621
    %vm1628 = vweird.f32 %v1622
    %vm1629 = vmor %vm1627, %vm1628
    %v1630 = vsel %vm1629, %v1622, %v1626
    %v1631 = vand.u32 2147483647, %v1621
    %vm1632 = vcmp.eq.f32.partialorder %v1631, 8.507059e+37
    %v1633 = vand.u32 %v1621, 2147483648
    %v1634 = vor.u32 1.1754944e-38, %v1633
    %v1635 = vsel %vm1632, %v1634, %v1630
    %v1636 = vmul.f32 1.0, %v1635
    %v1637 = vadd.f32 %v1555, %v1595
    %v1638 = vxor.u32 %v1637, 2147483648
    %v1639 = vmul.f32 %v1638, 1.442695
    %v1640 = vpow.pop %v1639
    %v1641 = vadd.f32 %v1640, 1.0
    %v1642 = vrcp.pop %v1641
    %v1643 = vmul.f32 %v1641, %v1642
    %v1644 = vsub.f32 1.0, %v1643
    %v1645 = vmul.f32 %v1642, %v1644
    %v1646 = vadd.f32 %v1642, %v1645
    %vm1647 = vweird.f32 %v1641
    %vm1648 = vweird.f32 %v1642
    %vm1649 = vmor %vm1647, %vm1648
    %v1650 = vsel %vm1649, %v1642, %v1646
    %v1651 = vand.u32 2147483647, %v1641
    %vm1652 = vcmp.eq.f32.partialorder %v1651, 8.507059e+37
    %v1653 = vand.u32 %v1641, 2147483648
    %v1654 = vor.u32 1.1754944e-38, %v1653
    %v1655 = vsel %vm1652, %v1654, %v1650
    %v1656 = vmul.f32 1.0, %v1655
    %v1657 = vmul.f32 %v1636, %v1615
    %v1658 = vadd.f32 %v1556, %v1657
    %v1659 = vtanh.pop %v1658
    %v1660 = vsub.f32 1.0, %v1656
    %v1661 = vmul.f32 %v1660, %v1659
    %v1662 = vmul.f32 %v1656, %v1341
    %v1663 = vadd.f32 %v1661, %v1662
    %1664 = vmatpush.msra.mxu0 %v149
    %1665 = vmatpush.msra.mxu0 %v145
    %1666 = vmatpush.msra.mxu0 %v141
    %1667 = vmatpush.msra.mxu0 %v137
    %1668 = vmatpush.msra.mxu0 %v133
    %1669 = vmatpush.msra.mxu0 %v129
    %1670 = vmatpush.msra.mxu0 %v125
    %1671 = vmatpush.msra.mxu0 %v121
    %1672 = vmatpush.msra.mxu0 %v117
    %1673 = vmatpush.msra.mxu0 %v113
    %1674 = vmatpush.msra.mxu0 %v109
    %1675 = vmatpush.msra.mxu0 %v105
    %1676 = vmatpush.msra.mxu0 %v101
    %1677 = vmatpush.msra.mxu0 %v97
    %1678 = vmatpush.msra.mxu0 %v93
    %1679 = vmatpush.msra.mxu0 %v89
    %1680 = vmatmul.f32.gmra.mxu0 %v1663
    %v1681 = vpop.f32.mrf.mxu0
    %v1682 = vadd.f32 %v249, %v1681
    %1683 = vdwg.mxu0
    %1684 = vmatpush.msra.mxu0 %v213
    %1685 = vmatpush.msra.mxu0 %v209
    %1686 = vmatpush.msra.mxu0 %v205
    %1687 = vmatpush.msra.mxu0 %v201
    %1688 = vmatpush.msra.mxu0 %v197
    %1689 = vmatpush.msra.mxu0 %v193
    %1690 = vmatpush.msra.mxu0 %v189
    %1691 = vmatpush.msra.mxu0 %v185
    %1692 = vmatpush.msra.mxu0 %v181
    %1693 = vmatpush.msra.mxu0 %v177
    %1694 = vmatpush.msra.mxu0 %v173
    %1695 = vmatpush.msra.mxu0 %v169
    %1696 = vmatpush.msra.mxu0 %v165
    %1697 = vmatpush.msra.mxu0 %v161
    %1698 = vmatpush.msra.mxu0 %v157
    %1699 = vmatpush.msra.mxu0 %v153
    %1700 = vmatmul.f32.gmra.mxu0 %v1546
    %v1701 = vpop.f32.mrf.mxu0
    %v1702 = vadd.f32 %v1682, %v1701
    %1703 = vdwg.mxu0
    %1704 = vmatpush.msra.mxu0 %v150
    %1705 = vmatpush.msra.mxu0 %v146
    %1706 = vmatpush.msra.mxu0 %v142
    %1707 = vmatpush.msra.mxu0 %v138
    %1708 = vmatpush.msra.mxu0 %v134
    %1709 = vmatpush.msra.mxu0 %v130
    %1710 = vmatpush.msra.mxu0 %v126
    %1711 = vmatpush.msra.mxu0 %v122
    %1712 = vmatpush.msra.mxu0 %v118
    %1713 = vmatpush.msra.mxu0 %v114
    %1714 = vmatpush.msra.mxu0 %v110
    %1715 = vmatpush.msra.mxu0 %v106
    %1716 = vmatpush.msra.mxu0 %v102
    %1717 = vmatpush.msra.mxu0 %v98
    %1718 = vmatpush.msra.mxu0 %v94
    %1719 = vmatpush.msra.mxu0 %v90
    %1720 = vmatmul.f32.gmra.mxu0 %v1663
    %v1721 = vpop.f32.mrf.mxu0
    %v1722 = vadd.f32 %v250, %v1721
    %1723 = vdwg.mxu0
    %1724 = vmatpush.msra.mxu0 %v214
    %1725 = vmatpush.msra.mxu0 %v210
    %1726 = vmatpush.msra.mxu0 %v206
    %1727 = vmatpush.msra.mxu0 %v202
    %1728 = vmatpush.msra.mxu0 %v198
    %1729 = vmatpush.msra.mxu0 %v194
    %1730 = vmatpush.msra.mxu0 %v190
    %1731 = vmatpush.msra.mxu0 %v186
    %1732 = vmatpush.msra.mxu0 %v182
    %1733 = vmatpush.msra.mxu0 %v178
    %1734 = vmatpush.msra.mxu0 %v174
    %1735 = vmatpush.msra.mxu0 %v170
    %1736 = vmatpush.msra.mxu0 %v166
    %1737 = vmatpush.msra.mxu0 %v162
    %1738 = vmatpush.msra.mxu0 %v158
    %1739 = vmatpush.msra.mxu0 %v154
    %1740 = vmatmul.f32.gmra.mxu0 %v1546
    %v1741 = vpop.f32.mrf.mxu0
    %v1742 = vadd.f32 %v1722, %v1741
    %1743 = vdwg.mxu0
    %1744 = vmatpush.msra.mxu0 %v151
    %1745 = vmatpush.msra.mxu0 %v147
    %1746 = vmatpush.msra.mxu0 %v143
    %1747 = vmatpush.msra.mxu0 %v139
    %1748 = vmatpush.msra.mxu0 %v135
    %1749 = vmatpush.msra.mxu0 %v131
    %1750 = vmatpush.msra.mxu0 %v127
    %1751 = vmatpush.msra.mxu0 %v123
    %1752 = vmatpush.msra.mxu0 %v119
    %1753 = vmatpush.msra.mxu0 %v115
    %1754 = vmatpush.msra.mxu0 %v111
    %1755 = vmatpush.msra.mxu0 %v107
    %1756 = vmatpush.msra.mxu0 %v103
    %1757 = vmatpush.msra.mxu0 %v99
    %1758 = vmatpush.msra.mxu0 %v95
    %1759 = vmatpush.msra.mxu0 %v91
    %1760 = vmatmul.f32.gmra.mxu0 %v1663
    %v1761 = vpop.f32.mrf.mxu0
    %v1762 = vadd.f32 %v251, %v1761
    %1763 = vdwg.mxu0
    %1764 = vmatpush.msra.mxu0 %v215
    %1765 = vmatpush.msra.mxu0 %v211
    %1766 = vmatpush.msra.mxu0 %v207
    %1767 = vmatpush.msra.mxu0 %v203
    %1768 = vmatpush.msra.mxu0 %v199
    %1769 = vmatpush.msra.mxu0 %v195
    %1770 = vmatpush.msra.mxu0 %v191
    %1771 = vmatpush.msra.mxu0 %v187
    %1772 = vmatpush.msra.mxu0 %v183
    %1773 = vmatpush.msra.mxu0 %v179
    %1774 = vmatpush.msra.mxu0 %v175
    %1775 = vmatpush.msra.mxu0 %v171
    %1776 = vmatpush.msra.mxu0 %v167
    %1777 = vmatpush.msra.mxu0 %v163
    %1778 = vmatpush.msra.mxu0 %v159
    %1779 = vmatpush.msra.mxu0 %v155
    %1780 = vmatmul.f32.gmra.mxu0 %v1546
    %v1781 = vpop.f32.mrf.mxu0
    %v1782 = vadd.f32 %v1762, %v1781
    %1783 = vdwg.mxu0
    %1784 = vmatpush.msra.mxu0 %v152
    %1785 = vmatpush.msra.mxu0 %v148
    %1786 = vmatpush.msra.mxu0 %v144
    %1787 = vmatpush.msra.mxu0 %v140
    %1788 = vmatpush.msra.mxu0 %v136
    %1789 = vmatpush.msra.mxu0 %v132
    %1790 = vmatpush.msra.mxu0 %v128
    %1791 = vmatpush.msra.mxu0 %v124
    %1792 = vmatpush.msra.mxu0 %v120
    %1793 = vmatpush.msra.mxu0 %v116
    %1794 = vmatpush.msra.mxu0 %v112
    %1795 = vmatpush.msra.mxu0 %v108
    %1796 = vmatpush.msra.mxu0 %v104
    %1797 = vmatpush.msra.mxu0 %v100
    %1798 = vmatpush.msra.mxu0 %v96
    %1799 = vmatpush.msra.mxu0 %v92
    %1800 = vmatmul.f32.gmra.mxu0 %v1663
    %v1801 = vpop.f32.mrf.mxu0
    %v1802 = vadd.f32 %v252, %v1801
    %1803 = vdwg.mxu0
    %1804 = vmatpush.msra.mxu0 %v216
    %1805 = vmatpush.msra.mxu0 %v212
    %1806 = vmatpush.msra.mxu0 %v208
    %1807 = vmatpush.msra.mxu0 %v204
    %1808 = vmatpush.msra.mxu0 %v200
    %1809 = vmatpush.msra.mxu0 %v196
    %1810 = vmatpush.msra.mxu0 %v192
    %1811 = vmatpush.msra.mxu0 %v188
    %1812 = vmatpush.msra.mxu0 %v184
    %1813 = vmatpush.msra.mxu0 %v180
    %1814 = vmatpush.msra.mxu0 %v176
    %1815 = vmatpush.msra.mxu0 %v172
    %1816 = vmatpush.msra.mxu0 %v168
    %1817 = vmatpush.msra.mxu0 %v164
    %1818 = vmatpush.msra.mxu0 %v160
    %1819 = vmatpush.msra.mxu0 %v156
    %1820 = vmatmul.f32.gmra.mxu0 %v1546
    %v1821 = vpop.f32.mrf.mxu0
    %v1822 = vadd.f32 %v1802, %v1821
    %1823 = vdwg.mxu0
    %v1824 = vxor.u32 %v1702, 2147483648
    %v1825 = vmul.f32 %v1824, 1.442695
    %v1826 = vpow.pop %v1825
    %v1827 = vadd.f32 %v1826, 1.0
    %v1828 = vrcp.pop %v1827
    %v1829 = vmul.f32 %v1827, %v1828
    %v1830 = vsub.f32 1.0, %v1829
    %v1831 = vmul.f32 %v1828, %v1830
    %v1832 = vadd.f32 %v1828, %v1831
    %vm1833 = vweird.f32 %v1827
    %vm1834 = vweird.f32 %v1828
    %vm1835 = vmor %vm1833, %vm1834
    %v1836 = vsel %vm1835, %v1828, %v1832
    %v1837 = vand.u32 2147483647, %v1827
    %vm1838 = vcmp.eq.f32.partialorder %v1837, 8.507059e+37
    %v1839 = vand.u32 %v1827, 2147483648
    %v1840 = vor.u32 1.1754944e-38, %v1839
    %v1841 = vsel %vm1838, %v1840, %v1836
    %v1842 = vmul.f32 1.0, %v1841
    %v1843 = vxor.u32 %v1742, 2147483648
    %v1844 = vmul.f32 %v1843, 1.442695
    %v1845 = vpow.pop %v1844
    %v1846 = vadd.f32 %v1845, 1.0
    %v1847 = vrcp.pop %v1846
    %v1848 = vmul.f32 %v1846, %v1847
    %v1849 = vsub.f32 1.0, %v1848
    %v1850 = vmul.f32 %v1847, %v1849
    %v1851 = vadd.f32 %v1847, %v1850
    %vm1852 = vweird.f32 %v1846
    %vm1853 = vweird.f32 %v1847
    %vm1854 = vmor %vm1852, %vm1853
    %v1855 = vsel %vm1854, %v1847, %v1851
    %v1856 = vand.u32 2147483647, %v1846
    %vm1857 = vcmp.eq.f32.partialorder %v1856, 8.507059e+37
    %v1858 = vand.u32 %v1846, 2147483648
    %v1859 = vor.u32 1.1754944e-38, %v1858
    %v1860 = vsel %vm1857, %v1859, %v1855
    %v1861 = vmul.f32 1.0, %v1860
    %v1862 = vmul.f32 %v1842, %v1822
    %v1863 = vadd.f32 %v1782, %v1862
    %v1864 = vtanh.pop %v1863
    %v1865 = vsub.f32 1.0, %v1861
    %v1866 = vmul.f32 %v1865, %v1864
    %v1867 = vmul.f32 %v1861, %v1546
    %v1868 = vadd.f32 %v1866, %v1867
    %1869 = vset.pattern.permute.xlu0 5
    %1870 = vperm.xlu0 %1869, %v257
    %v1871 = vpop.permute.xlu0 %1870
    %v1873 = vmul.f32 %v1871, %v228
    %v1874 = vmul.f32 %v1871, %v229
    %v1875 = vmul.f32 %v1871, %v230
    %v1876 = vadd.f32 %v1873, %v235
    %v1877 = vadd.f32 %v1874, %v236
    %v1878 = vadd.f32 %v1875, %v237
    %1879 = vmatpush.msra.mxu0 %v86
    %1880 = vmatpush.msra.mxu0 %v83
    %1881 = vmatpush.msra.mxu0 %v80
    %1882 = vmatpush.msra.mxu0 %v77
    %1883 = vmatpush.msra.mxu0 %v74
    %1884 = vmatpush.msra.mxu0 %v71
    %1885 = vmatpush.msra.mxu0 %v68
    %1886 = vmatpush.msra.mxu0 %v65
    %1887 = vmatpush.msra.mxu0 %v62
    %1888 = vmatpush.msra.mxu0 %v59
    %1889 = vmatpush.msra.mxu0 %v56
    %1890 = vmatpush.msra.mxu0 %v53
    %1891 = vmatpush.msra.mxu0 %v50
    %1892 = vmatpush.msra.mxu0 %v47
    %1893 = vmatpush.msra.mxu0 %v44
    %1894 = vmatpush.msra.mxu0 %v41
    %1895 = vmatmul.f32.gmra.mxu0 %v1663
    %v1896 = vpop.f32.mrf.mxu0
    %v1897 = vadd.f32 %v242, %v1896
    %1898 = vdwg.mxu0
    %1899 = vmatpush.msra.mxu0 %v87
    %1900 = vmatpush.msra.mxu0 %v84
    %1901 = vmatpush.msra.mxu0 %v81
    %1902 = vmatpush.msra.mxu0 %v78
    %1903 = vmatpush.msra.mxu0 %v75
    %1904 = vmatpush.msra.mxu0 %v72
    %1905 = vmatpush.msra.mxu0 %v69
    %1906 = vmatpush.msra.mxu0 %v66
    %1907 = vmatpush.msra.mxu0 %v63
    %1908 = vmatpush.msra.mxu0 %v60
    %1909 = vmatpush.msra.mxu0 %v57
    %1910 = vmatpush.msra.mxu0 %v54
    %1911 = vmatpush.msra.mxu0 %v51
    %1912 = vmatpush.msra.mxu0 %v48
    %1913 = vmatpush.msra.mxu0 %v45
    %1914 = vmatpush.msra.mxu0 %v42
    %1915 = vmatmul.f32.gmra.mxu0 %v1663
    %v1916 = vpop.f32.mrf.mxu0
    %v1917 = vadd.f32 %v243, %v1916
    %1918 = vdwg.mxu0
    %1919 = vmatpush.msra.mxu0 %v88
    %1920 = vmatpush.msra.mxu0 %v85
    %1921 = vmatpush.msra.mxu0 %v82
    %1922 = vmatpush.msra.mxu0 %v79
    %1923 = vmatpush.msra.mxu0 %v76
    %1924 = vmatpush.msra.mxu0 %v73
    %1925 = vmatpush.msra.mxu0 %v70
    %1926 = vmatpush.msra.mxu0 %v67
    %1927 = vmatpush.msra.mxu0 %v64
    %1928 = vmatpush.msra.mxu0 %v61
    %1929 = vmatpush.msra.mxu0 %v58
    %1930 = vmatpush.msra.mxu0 %v55
    %1931 = vmatpush.msra.mxu0 %v52
    %1932 = vmatpush.msra.mxu0 %v49
    %1933 = vmatpush.msra.mxu0 %v46
    %1934 = vmatpush.msra.mxu0 %v43
    %1935 = vmatmul.f32.gmra.mxu0 %v1663
    %v1936 = vpop.f32.mrf.mxu0
    %v1937 = vadd.f32 %v244, %v1936
    %1938 = vdwg.mxu0
    %v1939 = vadd.f32 %v1876, %v1897
    %v1940 = vxor.u32 %v1939, 2147483648
    %v1941 = vmul.f32 %v1940, 1.442695
    %v1942 = vpow.pop %v1941
    %v1943 = vadd.f32 %v1942, 1.0
    %v1944 = vrcp.pop %v1943
    %v1945 = vmul.f32 %v1943, %v1944
    %v1946 = vsub.f32 1.0, %v1945
    %v1947 = vmul.f32 %v1944, %v1946
    %v1948 = vadd.f32 %v1944, %v1947
    %vm1949 = vweird.f32 %v1943
    %vm1950 = vweird.f32 %v1944
    %vm1951 = vmor %vm1949, %vm1950
    %v1952 = vsel %vm1951, %v1944, %v1948
    %v1953 = vand.u32 2147483647, %v1943
    %vm1954 = vcmp.eq.f32.partialorder %v1953, 8.507059e+37
    %v1955 = vand.u32 %v1943, 2147483648
    %v1956 = vor.u32 1.1754944e-38, %v1955
    %v1957 = vsel %vm1954, %v1956, %v1952
    %v1958 = vmul.f32 1.0, %v1957
    %v1959 = vadd.f32 %v1877, %v1917
    %v1960 = vxor.u32 %v1959, 2147483648
    %v1961 = vmul.f32 %v1960, 1.442695
    %v1962 = vpow.pop %v1961
    %v1963 = vadd.f32 %v1962, 1.0
    %v1964 = vrcp.pop %v1963
    %v1965 = vmul.f32 %v1963, %v1964
    %v1966 = vsub.f32 1.0, %v1965
    %v1967 = vmul.f32 %v1964, %v1966
    %v1968 = vadd.f32 %v1964, %v1967
    %vm1969 = vweird.f32 %v1963
    %vm1970 = vweird.f32 %v1964
    %vm1971 = vmor %vm1969, %vm1970
    %v1972 = vsel %vm1971, %v1964, %v1968
    %v1973 = vand.u32 2147483647, %v1963
    %vm1974 = vcmp.eq.f32.partialorder %v1973, 8.507059e+37
    %v1975 = vand.u32 %v1963, 2147483648
    %v1976 = vor.u32 1.1754944e-38, %v1975
    %v1977 = vsel %vm1974, %v1976, %v1972
    %v1978 = vmul.f32 1.0, %v1977
    %v1979 = vmul.f32 %v1958, %v1937
    %v1980 = vadd.f32 %v1878, %v1979
    %v1981 = vtanh.pop %v1980
    %v1982 = vsub.f32 1.0, %v1978
    %v1983 = vmul.f32 %v1982, %v1981
    %v1984 = vmul.f32 %v1978, %v1663
    %v1985 = vadd.f32 %v1983, %v1984
    %1986 = vmatpush.msra.mxu0 %v149
    %1987 = vmatpush.msra.mxu0 %v145
    %1988 = vmatpush.msra.mxu0 %v141
    %1989 = vmatpush.msra.mxu0 %v137
    %1990 = vmatpush.msra.mxu0 %v133
    %1991 = vmatpush.msra.mxu0 %v129
    %1992 = vmatpush.msra.mxu0 %v125
    %1993 = vmatpush.msra.mxu0 %v121
    %1994 = vmatpush.msra.mxu0 %v117
    %1995 = vmatpush.msra.mxu0 %v113
    %1996 = vmatpush.msra.mxu0 %v109
    %1997 = vmatpush.msra.mxu0 %v105
    %1998 = vmatpush.msra.mxu0 %v101
    %1999 = vmatpush.msra.mxu0 %v97
    %2000 = vmatpush.msra.mxu0 %v93
    %2001 = vmatpush.msra.mxu0 %v89
    %2002 = vmatmul.f32.gmra.mxu0 %v1985
    %v2003 = vpop.f32.mrf.mxu0
    %v2004 = vadd.f32 %v249, %v2003
    %2005 = vdwg.mxu0
    %2006 = vmatpush.msra.mxu0 %v213
    %2007 = vmatpush.msra.mxu0 %v209
    %2008 = vmatpush.msra.mxu0 %v205
    %2009 = vmatpush.msra.mxu0 %v201
    %2010 = vmatpush.msra.mxu0 %v197
    %2011 = vmatpush.msra.mxu0 %v193
    %2012 = vmatpush.msra.mxu0 %v189
    %2013 = vmatpush.msra.mxu0 %v185
    %2014 = vmatpush.msra.mxu0 %v181
    %2015 = vmatpush.msra.mxu0 %v177
    %2016 = vmatpush.msra.mxu0 %v173
    %2017 = vmatpush.msra.mxu0 %v169
    %2018 = vmatpush.msra.mxu0 %v165
    %2019 = vmatpush.msra.mxu0 %v161
    %2020 = vmatpush.msra.mxu0 %v157
    %2021 = vmatpush.msra.mxu0 %v153
    %2022 = vmatmul.f32.gmra.mxu0 %v1868
    %v2023 = vpop.f32.mrf.mxu0
    %v2024 = vadd.f32 %v2004, %v2023
    %2025 = vdwg.mxu0
    %2026 = vmatpush.msra.mxu0 %v150
    %2027 = vmatpush.msra.mxu0 %v146
    %2028 = vmatpush.msra.mxu0 %v142
    %2029 = vmatpush.msra.mxu0 %v138
    %2030 = vmatpush.msra.mxu0 %v134
    %2031 = vmatpush.msra.mxu0 %v130
    %2032 = vmatpush.msra.mxu0 %v126
    %2033 = vmatpush.msra.mxu0 %v122
    %2034 = vmatpush.msra.mxu0 %v118
    %2035 = vmatpush.msra.mxu0 %v114
    %2036 = vmatpush.msra.mxu0 %v110
    %2037 = vmatpush.msra.mxu0 %v106
    %2038 = vmatpush.msra.mxu0 %v102
    %2039 = vmatpush.msra.mxu0 %v98
    %2040 = vmatpush.msra.mxu0 %v94
    %2041 = vmatpush.msra.mxu0 %v90
    %2042 = vmatmul.f32.gmra.mxu0 %v1985
    %v2043 = vpop.f32.mrf.mxu0
    %v2044 = vadd.f32 %v250, %v2043
    %2045 = vdwg.mxu0
    %2046 = vmatpush.msra.mxu0 %v214
    %2047 = vmatpush.msra.mxu0 %v210
    %2048 = vmatpush.msra.mxu0 %v206
    %2049 = vmatpush.msra.mxu0 %v202
    %2050 = vmatpush.msra.mxu0 %v198
    %2051 = vmatpush.msra.mxu0 %v194
    %2052 = vmatpush.msra.mxu0 %v190
    %2053 = vmatpush.msra.mxu0 %v186
    %2054 = vmatpush.msra.mxu0 %v182
    %2055 = vmatpush.msra.mxu0 %v178
    %2056 = vmatpush.msra.mxu0 %v174
    %2057 = vmatpush.msra.mxu0 %v170
    %2058 = vmatpush.msra.mxu0 %v166
    %2059 = vmatpush.msra.mxu0 %v162
    %2060 = vmatpush.msra.mxu0 %v158
    %2061 = vmatpush.msra.mxu0 %v154
    %2062 = vmatmul.f32.gmra.mxu0 %v1868
    %v2063 = vpop.f32.mrf.mxu0
    %v2064 = vadd.f32 %v2044, %v2063
    %2065 = vdwg.mxu0
    %2066 = vmatpush.msra.mxu0 %v151
    %2067 = vmatpush.msra.mxu0 %v147
    %2068 = vmatpush.msra.mxu0 %v143
    %2069 = vmatpush.msra.mxu0 %v139
    %2070 = vmatpush.msra.mxu0 %v135
    %2071 = vmatpush.msra.mxu0 %v131
    %2072 = vmatpush.msra.mxu0 %v127
    %2073 = vmatpush.msra.mxu0 %v123
    %2074 = vmatpush.msra.mxu0 %v119
    %2075 = vmatpush.msra.mxu0 %v115
    %2076 = vmatpush.msra.mxu0 %v111
    %2077 = vmatpush.msra.mxu0 %v107
    %2078 = vmatpush.msra.mxu0 %v103
    %2079 = vmatpush.msra.mxu0 %v99
    %2080 = vmatpush.msra.mxu0 %v95
    %2081 = vmatpush.msra.mxu0 %v91
    %2082 = vmatmul.f32.gmra.mxu0 %v1985
    %v2083 = vpop.f32.mrf.mxu0
    %v2084 = vadd.f32 %v251, %v2083
    %2085 = vdwg.mxu0
    %2086 = vmatpush.msra.mxu0 %v215
    %2087 = vmatpush.msra.mxu0 %v211
    %2088 = vmatpush.msra.mxu0 %v207
    %2089 = vmatpush.msra.mxu0 %v203
    %2090 = vmatpush.msra.mxu0 %v199
    %2091 = vmatpush.msra.mxu0 %v195
    %2092 = vmatpush.msra.mxu0 %v191
    %2093 = vmatpush.msra.mxu0 %v187
    %2094 = vmatpush.msra.mxu0 %v183
    %2095 = vmatpush.msra.mxu0 %v179
    %2096 = vmatpush.msra.mxu0 %v175
    %2097 = vmatpush.msra.mxu0 %v171
    %2098 = vmatpush.msra.mxu0 %v167
    %2099 = vmatpush.msra.mxu0 %v163
    %2100 = vmatpush.msra.mxu0 %v159
    %2101 = vmatpush.msra.mxu0 %v155
    %2102 = vmatmul.f32.gmra.mxu0 %v1868
    %v2103 = vpop.f32.mrf.mxu0
    %v2104 = vadd.f32 %v2084, %v2103
    %2105 = vdwg.mxu0
    %2106 = vmatpush.msra.mxu0 %v152
    %2107 = vmatpush.msra.mxu0 %v148
    %2108 = vmatpush.msra.mxu0 %v144
    %2109 = vmatpush.msra.mxu0 %v140
    %2110 = vmatpush.msra.mxu0 %v136
    %2111 = vmatpush.msra.mxu0 %v132
    %2112 = vmatpush.msra.mxu0 %v128
    %2113 = vmatpush.msra.mxu0 %v124
    %2114 = vmatpush.msra.mxu0 %v120
    %2115 = vmatpush.msra.mxu0 %v116
    %2116 = vmatpush.msra.mxu0 %v112
    %2117 = vmatpush.msra.mxu0 %v108
    %2118 = vmatpush.msra.mxu0 %v104
    %2119 = vmatpush.msra.mxu0 %v100
    %2120 = vmatpush.msra.mxu0 %v96
    %2121 = vmatpush.msra.mxu0 %v92
    %2122 = vmatmul.f32.gmra.mxu0 %v1985
    %v2123 = vpop.f32.mrf.mxu0
    %v2124 = vadd.f32 %v252, %v2123
    %2125 = vdwg.mxu0
    %2126 = vmatpush.msra.mxu0 %v216
    %2127 = vmatpush.msra.mxu0 %v212
    %2128 = vmatpush.msra.mxu0 %v208
    %2129 = vmatpush.msra.mxu0 %v204
    %2130 = vmatpush.msra.mxu0 %v200
    %2131 = vmatpush.msra.mxu0 %v196
    %2132 = vmatpush.msra.mxu0 %v192
    %2133 = vmatpush.msra.mxu0 %v188
    %2134 = vmatpush.msra.mxu0 %v184
    %2135 = vmatpush.msra.mxu0 %v180
    %2136 = vmatpush.msra.mxu0 %v176
    %2137 = vmatpush.msra.mxu0 %v172
    %2138 = vmatpush.msra.mxu0 %v168
    %2139 = vmatpush.msra.mxu0 %v164
    %2140 = vmatpush.msra.mxu0 %v160
    %2141 = vmatpush.msra.mxu0 %v156
    %2142 = vmatmul.f32.gmra.mxu0 %v1868
    %v2143 = vpop.f32.mrf.mxu0
    %v2144 = vadd.f32 %v2124, %v2143
    %2145 = vdwg.mxu0
    %v2146 = vxor.u32 %v2024, 2147483648
    %v2147 = vmul.f32 %v2146, 1.442695
    %v2148 = vpow.pop %v2147
    %v2149 = vadd.f32 %v2148, 1.0
    %v2150 = vrcp.pop %v2149
    %v2151 = vmul.f32 %v2149, %v2150
    %v2152 = vsub.f32 1.0, %v2151
    %v2153 = vmul.f32 %v2150, %v2152
    %v2154 = vadd.f32 %v2150, %v2153
    %vm2155 = vweird.f32 %v2149
    %vm2156 = vweird.f32 %v2150
    %vm2157 = vmor %vm2155, %vm2156
    %v2158 = vsel %vm2157, %v2150, %v2154
    %v2159 = vand.u32 2147483647, %v2149
    %vm2160 = vcmp.eq.f32.partialorder %v2159, 8.507059e+37
    %v2161 = vand.u32 %v2149, 2147483648
    %v2162 = vor.u32 1.1754944e-38, %v2161
    %v2163 = vsel %vm2160, %v2162, %v2158
    %v2164 = vmul.f32 1.0, %v2163
    %v2165 = vxor.u32 %v2064, 2147483648
    %v2166 = vmul.f32 %v2165, 1.442695
    %v2167 = vpow.pop %v2166
    %v2168 = vadd.f32 %v2167, 1.0
    %v2169 = vrcp.pop %v2168
    %v2170 = vmul.f32 %v2168, %v2169
    %v2171 = vsub.f32 1.0, %v2170
    %v2172 = vmul.f32 %v2169, %v2171
    %v2173 = vadd.f32 %v2169, %v2172
    %vm2174 = vweird.f32 %v2168
    %vm2175 = vweird.f32 %v2169
    %vm2176 = vmor %vm2174, %vm2175
    %v2177 = vsel %vm2176, %v2169, %v2173
    %v2178 = vand.u32 2147483647, %v2168
    %vm2179 = vcmp.eq.f32.partialorder %v2178, 8.507059e+37
    %v2180 = vand.u32 %v2168, 2147483648
    %v2181 = vor.u32 1.1754944e-38, %v2180
    %v2182 = vsel %vm2179, %v2181, %v2177
    %v2183 = vmul.f32 1.0, %v2182
    %v2184 = vmul.f32 %v2164, %v2144
    %v2185 = vadd.f32 %v2104, %v2184
    %v2186 = vtanh.pop %v2185
    %v2187 = vsub.f32 1.0, %v2183
    %v2188 = vmul.f32 %v2187, %v2186
    %v2189 = vmul.f32 %v2183, %v1868
    %v2190 = vadd.f32 %v2188, %v2189
    %2191 = vset.pattern.permute.xlu0 6
    %2192 = vperm.xlu0 %2191, %v257
    %v2193 = vpop.permute.xlu0 %2192
    %v2195 = vmul.f32 %v2193, %v228
    %v2196 = vmul.f32 %v2193, %v229
    %v2197 = vmul.f32 %v2193, %v230
    %v2198 = vadd.f32 %v2195, %v235
    %v2199 = vadd.f32 %v2196, %v236
    %v2200 = vadd.f32 %v2197, %v237
    %2201 = vmatpush.msra.mxu0 %v86
    %2202 = vmatpush.msra.mxu0 %v83
    %2203 = vmatpush.msra.mxu0 %v80
    %2204 = vmatpush.msra.mxu0 %v77
    %2205 = vmatpush.msra.mxu0 %v74
    %2206 = vmatpush.msra.mxu0 %v71
    %2207 = vmatpush.msra.mxu0 %v68
    %2208 = vmatpush.msra.mxu0 %v65
    %2209 = vmatpush.msra.mxu0 %v62
    %2210 = vmatpush.msra.mxu0 %v59
    %2211 = vmatpush.msra.mxu0 %v56
    %2212 = vmatpush.msra.mxu0 %v53
    %2213 = vmatpush.msra.mxu0 %v50
    %2214 = vmatpush.msra.mxu0 %v47
    %2215 = vmatpush.msra.mxu0 %v44
    %2216 = vmatpush.msra.mxu0 %v41
    %2217 = vmatmul.f32.gmra.mxu0 %v1985
    %v2218 = vpop.f32.mrf.mxu0
    %v2219 = vadd.f32 %v242, %v2218
    %2220 = vdwg.mxu0
    %2221 = vmatpush.msra.mxu0 %v87
    %2222 = vmatpush.msra.mxu0 %v84
    %2223 = vmatpush.msra.mxu0 %v81
    %2224 = vmatpush.msra.mxu0 %v78
    %2225 = vmatpush.msra.mxu0 %v75
    %2226 = vmatpush.msra.mxu0 %v72
    %2227 = vmatpush.msra.mxu0 %v69
    %2228 = vmatpush.msra.mxu0 %v66
    %2229 = vmatpush.msra.mxu0 %v63
    %2230 = vmatpush.msra.mxu0 %v60
    %2231 = vmatpush.msra.mxu0 %v57
    %2232 = vmatpush.msra.mxu0 %v54
    %2233 = vmatpush.msra.mxu0 %v51
    %2234 = vmatpush.msra.mxu0 %v48
    %2235 = vmatpush.msra.mxu0 %v45
    %2236 = vmatpush.msra.mxu0 %v42
    %2237 = vmatmul.f32.gmra.mxu0 %v1985
    %v2238 = vpop.f32.mrf.mxu0
    %v2239 = vadd.f32 %v243, %v2238
    %2240 = vdwg.mxu0
    %2241 = vmatpush.msra.mxu0 %v88
    %2242 = vmatpush.msra.mxu0 %v85
    %2243 = vmatpush.msra.mxu0 %v82
    %2244 = vmatpush.msra.mxu0 %v79
    %2245 = vmatpush.msra.mxu0 %v76
    %2246 = vmatpush.msra.mxu0 %v73
    %2247 = vmatpush.msra.mxu0 %v70
    %2248 = vmatpush.msra.mxu0 %v67
    %2249 = vmatpush.msra.mxu0 %v64
    %2250 = vmatpush.msra.mxu0 %v61
    %2251 = vmatpush.msra.mxu0 %v58
    %2252 = vmatpush.msra.mxu0 %v55
    %2253 = vmatpush.msra.mxu0 %v52
    %2254 = vmatpush.msra.mxu0 %v49
    %2255 = vmatpush.msra.mxu0 %v46
    %2256 = vmatpush.msra.mxu0 %v43
    %2257 = vmatmul.f32.gmra.mxu0 %v1985
    %v2258 = vpop.f32.mrf.mxu0
    %v2259 = vadd.f32 %v244, %v2258
    %2260 = vdwg.mxu0
    %v2261 = vadd.f32 %v2198, %v2219
    %v2262 = vxor.u32 %v2261, 2147483648
    %v2263 = vmul.f32 %v2262, 1.442695
    %v2264 = vpow.pop %v2263
    %v2265 = vadd.f32 %v2264, 1.0
    %v2266 = vrcp.pop %v2265
    %v2267 = vmul.f32 %v2265, %v2266
    %v2268 = vsub.f32 1.0, %v2267
    %v2269 = vmul.f32 %v2266, %v2268
    %v2270 = vadd.f32 %v2266, %v2269
    %vm2271 = vweird.f32 %v2265
    %vm2272 = vweird.f32 %v2266
    %vm2273 = vmor %vm2271, %vm2272
    %v2274 = vsel %vm2273, %v2266, %v2270
    %v2275 = vand.u32 2147483647, %v2265
    %vm2276 = vcmp.eq.f32.partialorder %v2275, 8.507059e+37
    %v2277 = vand.u32 %v2265, 2147483648
    %v2278 = vor.u32 1.1754944e-38, %v2277
    %v2279 = vsel %vm2276, %v2278, %v2274
    %v2280 = vmul.f32 1.0, %v2279
    %v2281 = vadd.f32 %v2199, %v2239
    %v2282 = vxor.u32 %v2281, 2147483648
    %v2283 = vmul.f32 %v2282, 1.442695
    %v2284 = vpow.pop %v2283
    %v2285 = vadd.f32 %v2284, 1.0
    %v2286 = vrcp.pop %v2285
    %v2287 = vmul.f32 %v2285, %v2286
    %v2288 = vsub.f32 1.0, %v2287
    %v2289 = vmul.f32 %v2286, %v2288
    %v2290 = vadd.f32 %v2286, %v2289
    %vm2291 = vweird.f32 %v2285
    %vm2292 = vweird.f32 %v2286
    %vm2293 = vmor %vm2291, %vm2292
    %v2294 = vsel %vm2293, %v2286, %v2290
    %v2295 = vand.u32 2147483647, %v2285
    %vm2296 = vcmp.eq.f32.partialorder %v2295, 8.507059e+37
    %v2297 = vand.u32 %v2285, 2147483648
    %v2298 = vor.u32 1.1754944e-38, %v2297
    %v2299 = vsel %vm2296, %v2298, %v2294
    %v2300 = vmul.f32 1.0, %v2299
    %v2301 = vmul.f32 %v2280, %v2259
    %v2302 = vadd.f32 %v2200, %v2301
    %v2303 = vtanh.pop %v2302
    %v2304 = vsub.f32 1.0, %v2300
    %v2305 = vmul.f32 %v2304, %v2303
    %v2306 = vmul.f32 %v2300, %v1985
    %v2307 = vadd.f32 %v2305, %v2306
    %2308 = vmatpush.msra.mxu0 %v149
    %2309 = vmatpush.msra.mxu0 %v145
    %2310 = vmatpush.msra.mxu0 %v141
    %2311 = vmatpush.msra.mxu0 %v137
    %2312 = vmatpush.msra.mxu0 %v133
    %2313 = vmatpush.msra.mxu0 %v129
    %2314 = vmatpush.msra.mxu0 %v125
    %2315 = vmatpush.msra.mxu0 %v121
    %2316 = vmatpush.msra.mxu0 %v117
    %2317 = vmatpush.msra.mxu0 %v113
    %2318 = vmatpush.msra.mxu0 %v109
    %2319 = vmatpush.msra.mxu0 %v105
    %2320 = vmatpush.msra.mxu0 %v101
    %2321 = vmatpush.msra.mxu0 %v97
    %2322 = vmatpush.msra.mxu0 %v93
    %2323 = vmatpush.msra.mxu0 %v89
    %2324 = vmatmul.f32.gmra.mxu0 %v2307
    %v2325 = vpop.f32.mrf.mxu0
    %v2326 = vadd.f32 %v249, %v2325
    %2327 = vdwg.mxu0
    %2328 = vmatpush.msra.mxu0 %v213
    %2329 = vmatpush.msra.mxu0 %v209
    %2330 = vmatpush.msra.mxu0 %v205
    %2331 = vmatpush.msra.mxu0 %v201
    %2332 = vmatpush.msra.mxu0 %v197
    %2333 = vmatpush.msra.mxu0 %v193
    %2334 = vmatpush.msra.mxu0 %v189
    %2335 = vmatpush.msra.mxu0 %v185
    %2336 = vmatpush.msra.mxu0 %v181
    %2337 = vmatpush.msra.mxu0 %v177
    %2338 = vmatpush.msra.mxu0 %v173
    %2339 = vmatpush.msra.mxu0 %v169
    %2340 = vmatpush.msra.mxu0 %v165
    %2341 = vmatpush.msra.mxu0 %v161
    %2342 = vmatpush.msra.mxu0 %v157
    %2343 = vmatpush.msra.mxu0 %v153
    %2344 = vmatmul.f32.gmra.mxu0 %v2190
    %v2345 = vpop.f32.mrf.mxu0
    %v2346 = vadd.f32 %v2326, %v2345
    %2347 = vdwg.mxu0
    %2348 = vmatpush.msra.mxu0 %v150
    %2349 = vmatpush.msra.mxu0 %v146
    %2350 = vmatpush.msra.mxu0 %v142
    %2351 = vmatpush.msra.mxu0 %v138
    %2352 = vmatpush.msra.mxu0 %v134
    %2353 = vmatpush.msra.mxu0 %v130
    %2354 = vmatpush.msra.mxu0 %v126
    %2355 = vmatpush.msra.mxu0 %v122
    %2356 = vmatpush.msra.mxu0 %v118
    %2357 = vmatpush.msra.mxu0 %v114
    %2358 = vmatpush.msra.mxu0 %v110
    %2359 = vmatpush.msra.mxu0 %v106
    %2360 = vmatpush.msra.mxu0 %v102
    %2361 = vmatpush.msra.mxu0 %v98
    %2362 = vmatpush.msra.mxu0 %v94
    %2363 = vmatpush.msra.mxu0 %v90
    %2364 = vmatmul.f32.gmra.mxu0 %v2307
    %v2365 = vpop.f32.mrf.mxu0
    %v2366 = vadd.f32 %v250, %v2365
    %2367 = vdwg.mxu0
    %2368 = vmatpush.msra.mxu0 %v214
    %2369 = vmatpush.msra.mxu0 %v210
    %2370 = vmatpush.msra.mxu0 %v206
    %2371 = vmatpush.msra.mxu0 %v202
    %2372 = vmatpush.msra.mxu0 %v198
    %2373 = vmatpush.msra.mxu0 %v194
    %2374 = vmatpush.msra.mxu0 %v190
    %2375 = vmatpush.msra.mxu0 %v186
    %2376 = vmatpush.msra.mxu0 %v182
    %2377 = vmatpush.msra.mxu0 %v178
    %2378 = vmatpush.msra.mxu0 %v174
    %2379 = vmatpush.msra.mxu0 %v170
    %2380 = vmatpush.msra.mxu0 %v166
    %2381 = vmatpush.msra.mxu0 %v162
    %2382 = vmatpush.msra.mxu0 %v158
    %2383 = vmatpush.msra.mxu0 %v154
    %2384 = vmatmul.f32.gmra.mxu0 %v2190
    %v2385 = vpop.f32.mrf.mxu0
    %v2386 = vadd.f32 %v2366, %v2385
    %2387 = vdwg.mxu0
    %2388 = vmatpush.msra.mxu0 %v151
    %2389 = vmatpush.msra.mxu0 %v147
    %2390 = vmatpush.msra.mxu0 %v143
    %2391 = vmatpush.msra.mxu0 %v139
    %2392 = vmatpush.msra.mxu0 %v135
    %2393 = vmatpush.msra.mxu0 %v131
    %2394 = vmatpush.msra.mxu0 %v127
    %2395 = vmatpush.msra.mxu0 %v123
    %2396 = vmatpush.msra.mxu0 %v119
    %2397 = vmatpush.msra.mxu0 %v115
    %2398 = vmatpush.msra.mxu0 %v111
    %2399 = vmatpush.msra.mxu0 %v107
    %2400 = vmatpush.msra.mxu0 %v103
    %2401 = vmatpush.msra.mxu0 %v99
    %2402 = vmatpush.msra.mxu0 %v95
    %2403 = vmatpush.msra.mxu0 %v91
    %2404 = vmatmul.f32.gmra.mxu0 %v2307
    %v2405 = vpop.f32.mrf.mxu0
    %v2406 = vadd.f32 %v251, %v2405
    %2407 = vdwg.mxu0
    %2408 = vmatpush.msra.mxu0 %v215
    %2409 = vmatpush.msra.mxu0 %v211
    %2410 = vmatpush.msra.mxu0 %v207
    %2411 = vmatpush.msra.mxu0 %v203
    %2412 = vmatpush.msra.mxu0 %v199
    %2413 = vmatpush.msra.mxu0 %v195
    %2414 = vmatpush.msra.mxu0 %v191
    %2415 = vmatpush.msra.mxu0 %v187
    %2416 = vmatpush.msra.mxu0 %v183
    %2417 = vmatpush.msra.mxu0 %v179
    %2418 = vmatpush.msra.mxu0 %v175
    %2419 = vmatpush.msra.mxu0 %v171
    %2420 = vmatpush.msra.mxu0 %v167
    %2421 = vmatpush.msra.mxu0 %v163
    %2422 = vmatpush.msra.mxu0 %v159
    %2423 = vmatpush.msra.mxu0 %v155
    %2424 = vmatmul.f32.gmra.mxu0 %v2190
    %v2425 = vpop.f32.mrf.mxu0
    %v2426 = vadd.f32 %v2406, %v2425
    %2427 = vdwg.mxu0
    %2428 = vmatpush.msra.mxu0 %v152
    %2429 = vmatpush.msra.mxu0 %v148
    %2430 = vmatpush.msra.mxu0 %v144
    %2431 = vmatpush.msra.mxu0 %v140
    %2432 = vmatpush.msra.mxu0 %v136
    %2433 = vmatpush.msra.mxu0 %v132
    %2434 = vmatpush.msra.mxu0 %v128
    %2435 = vmatpush.msra.mxu0 %v124
    %2436 = vmatpush.msra.mxu0 %v120
    %2437 = vmatpush.msra.mxu0 %v116
    %2438 = vmatpush.msra.mxu0 %v112
    %2439 = vmatpush.msra.mxu0 %v108
    %2440 = vmatpush.msra.mxu0 %v104
    %2441 = vmatpush.msra.mxu0 %v100
    %2442 = vmatpush.msra.mxu0 %v96
    %2443 = vmatpush.msra.mxu0 %v92
    %2444 = vmatmul.f32.gmra.mxu0 %v2307
    %v2445 = vpop.f32.mrf.mxu0
    %v2446 = vadd.f32 %v252, %v2445
    %2447 = vdwg.mxu0
    %2448 = vmatpush.msra.mxu0 %v216
    %2449 = vmatpush.msra.mxu0 %v212
    %2450 = vmatpush.msra.mxu0 %v208
    %2451 = vmatpush.msra.mxu0 %v204
    %2452 = vmatpush.msra.mxu0 %v200
    %2453 = vmatpush.msra.mxu0 %v196
    %2454 = vmatpush.msra.mxu0 %v192
    %2455 = vmatpush.msra.mxu0 %v188
    %2456 = vmatpush.msra.mxu0 %v184
    %2457 = vmatpush.msra.mxu0 %v180
    %2458 = vmatpush.msra.mxu0 %v176
    %2459 = vmatpush.msra.mxu0 %v172
    %2460 = vmatpush.msra.mxu0 %v168
    %2461 = vmatpush.msra.mxu0 %v164
    %2462 = vmatpush.msra.mxu0 %v160
    %2463 = vmatpush.msra.mxu0 %v156
    %2464 = vmatmul.f32.gmra.mxu0 %v2190
    %v2465 = vpop.f32.mrf.mxu0
    %v2466 = vadd.f32 %v2446, %v2465
    %2467 = vdwg.mxu0
    %v2468 = vxor.u32 %v2346, 2147483648
    %v2469 = vmul.f32 %v2468, 1.442695
    %v2470 = vpow.pop %v2469
    %v2471 = vadd.f32 %v2470, 1.0
    %v2472 = vrcp.pop %v2471
    %v2473 = vmul.f32 %v2471, %v2472
    %v2474 = vsub.f32 1.0, %v2473
    %v2475 = vmul.f32 %v2472, %v2474
    %v2476 = vadd.f32 %v2472, %v2475
    %vm2477 = vweird.f32 %v2471
    %vm2478 = vweird.f32 %v2472
    %vm2479 = vmor %vm2477, %vm2478
    %v2480 = vsel %vm2479, %v2472, %v2476
    %v2481 = vand.u32 2147483647, %v2471
    %vm2482 = vcmp.eq.f32.partialorder %v2481, 8.507059e+37
    %v2483 = vand.u32 %v2471, 2147483648
    %v2484 = vor.u32 1.1754944e-38, %v2483
    %v2485 = vsel %vm2482, %v2484, %v2480
    %v2486 = vmul.f32 1.0, %v2485
    %v2487 = vxor.u32 %v2386, 2147483648
    %v2488 = vmul.f32 %v2487, 1.442695
    %v2489 = vpow.pop %v2488
    %v2490 = vadd.f32 %v2489, 1.0
    %v2491 = vrcp.pop %v2490
    %v2492 = vmul.f32 %v2490, %v2491
    %v2493 = vsub.f32 1.0, %v2492
    %v2494 = vmul.f32 %v2491, %v2493
    %v2495 = vadd.f32 %v2491, %v2494
    %vm2496 = vweird.f32 %v2490
    %vm2497 = vweird.f32 %v2491
    %vm2498 = vmor %vm2496, %vm2497
    %v2499 = vsel %vm2498, %v2491, %v2495
    %v2500 = vand.u32 2147483647, %v2490
    %vm2501 = vcmp.eq.f32.partialorder %v2500, 8.507059e+37
    %v2502 = vand.u32 %v2490, 2147483648
    %v2503 = vor.u32 1.1754944e-38, %v2502
    %v2504 = vsel %vm2501, %v2503, %v2499
    %v2505 = vmul.f32 1.0, %v2504
    %v2506 = vmul.f32 %v2486, %v2466
    %v2507 = vadd.f32 %v2426, %v2506
    %v2508 = vtanh.pop %v2507
    %v2509 = vsub.f32 1.0, %v2505
    %v2510 = vmul.f32 %v2509, %v2508
    %v2511 = vmul.f32 %v2505, %v2190
    %v2512 = vadd.f32 %v2510, %v2511
    %2513 = vset.pattern.permute.xlu0 7
    %2514 = vperm.xlu0 %2513, %v257
    %v2515 = vpop.permute.xlu0 %2514
    %v2517 = vmul.f32 %v2515, %v228
    %v2518 = vmul.f32 %v2515, %v229
    %v2519 = vmul.f32 %v2515, %v230
    %v2520 = vadd.f32 %v2517, %v235
    %v2521 = vadd.f32 %v2518, %v236
    %v2522 = vadd.f32 %v2519, %v237
    %2523 = vmatpush.msra.mxu0 %v86
    %2524 = vmatpush.msra.mxu0 %v83
    %2525 = vmatpush.msra.mxu0 %v80
    %2526 = vmatpush.msra.mxu0 %v77
    %2527 = vmatpush.msra.mxu0 %v74
    %2528 = vmatpush.msra.mxu0 %v71
    %2529 = vmatpush.msra.mxu0 %v68
    %2530 = vmatpush.msra.mxu0 %v65
    %2531 = vmatpush.msra.mxu0 %v62
    %2532 = vmatpush.msra.mxu0 %v59
    %2533 = vmatpush.msra.mxu0 %v56
    %2534 = vmatpush.msra.mxu0 %v53
    %2535 = vmatpush.msra.mxu0 %v50
    %2536 = vmatpush.msra.mxu0 %v47
    %2537 = vmatpush.msra.mxu0 %v44
    %2538 = vmatpush.msra.mxu0 %v41
    %2539 = vmatmul.f32.gmra.mxu0 %v2307
    %v2540 = vpop.f32.mrf.mxu0
    %v2541 = vadd.f32 %v242, %v2540
    %2542 = vdwg.mxu0
    %2543 = vmatpush.msra.mxu0 %v87
    %2544 = vmatpush.msra.mxu0 %v84
    %2545 = vmatpush.msra.mxu0 %v81
    %2546 = vmatpush.msra.mxu0 %v78
    %2547 = vmatpush.msra.mxu0 %v75
    %2548 = vmatpush.msra.mxu0 %v72
    %2549 = vmatpush.msra.mxu0 %v69
    %2550 = vmatpush.msra.mxu0 %v66
    %2551 = vmatpush.msra.mxu0 %v63
    %2552 = vmatpush.msra.mxu0 %v60
    %2553 = vmatpush.msra.mxu0 %v57
    %2554 = vmatpush.msra.mxu0 %v54
    %2555 = vmatpush.msra.mxu0 %v51
    %2556 = vmatpush.msra.mxu0 %v48
    %2557 = vmatpush.msra.mxu0 %v45
    %2558 = vmatpush.msra.mxu0 %v42
    %2559 = vmatmul.f32.gmra.mxu0 %v2307
    %v2560 = vpop.f32.mrf.mxu0
    %v2561 = vadd.f32 %v243, %v2560
    %2562 = vdwg.mxu0
    %2563 = vmatpush.msra.mxu0 %v88
    %2564 = vmatpush.msra.mxu0 %v85
    %2565 = vmatpush.msra.mxu0 %v82
    %2566 = vmatpush.msra.mxu0 %v79
    %2567 = vmatpush.msra.mxu0 %v76
    %2568 = vmatpush.msra.mxu0 %v73
    %2569 = vmatpush.msra.mxu0 %v70
    %2570 = vmatpush.msra.mxu0 %v67
    %2571 = vmatpush.msra.mxu0 %v64
    %2572 = vmatpush.msra.mxu0 %v61
    %2573 = vmatpush.msra.mxu0 %v58
    %2574 = vmatpush.msra.mxu0 %v55
    %2575 = vmatpush.msra.mxu0 %v52
    %2576 = vmatpush.msra.mxu0 %v49
    %2577 = vmatpush.msra.mxu0 %v46
    %2578 = vmatpush.msra.mxu0 %v43
    %2579 = vmatmul.f32.gmra.mxu0 %v2307
    %v2580 = vpop.f32.mrf.mxu0
    %v2581 = vadd.f32 %v244, %v2580
    %2582 = vdwg.mxu0
    %v2583 = vadd.f32 %v2520, %v2541
    %v2584 = vxor.u32 %v2583, 2147483648
    %v2585 = vmul.f32 %v2584, 1.442695
    %v2586 = vpow.pop %v2585
    %v2587 = vadd.f32 %v2586, 1.0
    %v2588 = vrcp.pop %v2587
    %v2589 = vmul.f32 %v2587, %v2588
    %v2590 = vsub.f32 1.0, %v2589
    %v2591 = vmul.f32 %v2588, %v2590
    %v2592 = vadd.f32 %v2588, %v2591
    %vm2593 = vweird.f32 %v2587
    %vm2594 = vweird.f32 %v2588
    %vm2595 = vmor %vm2593, %vm2594
    %v2596 = vsel %vm2595, %v2588, %v2592
    %v2597 = vand.u32 2147483647, %v2587
    %vm2598 = vcmp.eq.f32.partialorder %v2597, 8.507059e+37
    %v2599 = vand.u32 %v2587, 2147483648
    %v2600 = vor.u32 1.1754944e-38, %v2599
    %v2601 = vsel %vm2598, %v2600, %v2596
    %v2602 = vmul.f32 1.0, %v2601
    %v2603 = vadd.f32 %v2521, %v2561
    %v2604 = vxor.u32 %v2603, 2147483648
    %v2605 = vmul.f32 %v2604, 1.442695
    %v2606 = vpow.pop %v2605
    %v2607 = vadd.f32 %v2606, 1.0
    %v2608 = vrcp.pop %v2607
    %v2609 = vmul.f32 %v2607, %v2608
    %v2610 = vsub.f32 1.0, %v2609
    %v2611 = vmul.f32 %v2608, %v2610
    %v2612 = vadd.f32 %v2608, %v2611
    %vm2613 = vweird.f32 %v2607
    %vm2614 = vweird.f32 %v2608
    %vm2615 = vmor %vm2613, %vm2614
    %v2616 = vsel %vm2615, %v2608, %v2612
    %v2617 = vand.u32 2147483647, %v2607
    %vm2618 = vcmp.eq.f32.partialorder %v2617, 8.507059e+37
    %v2619 = vand.u32 %v2607, 2147483648
    %v2620 = vor.u32 1.1754944e-38, %v2619
    %v2621 = vsel %vm2618, %v2620, %v2616
    %v2622 = vmul.f32 1.0, %v2621
    %v2623 = vmul.f32 %v2602, %v2581
    %v2624 = vadd.f32 %v2522, %v2623
    %v2625 = vtanh.pop %v2624
    %v2626 = vsub.f32 1.0, %v2622
    %v2627 = vmul.f32 %v2626, %v2625
    %v2628 = vmul.f32 %v2622, %v2307
    %v2629 = vadd.f32 %v2627, %v2628
    %2630 = vmatpush.msra.mxu0 %v149
    %2631 = vmatpush.msra.mxu0 %v145
    %2632 = vmatpush.msra.mxu0 %v141
    %2633 = vmatpush.msra.mxu0 %v137
    %2634 = vmatpush.msra.mxu0 %v133
    %2635 = vmatpush.msra.mxu0 %v129
    %2636 = vmatpush.msra.mxu0 %v125
    %2637 = vmatpush.msra.mxu0 %v121
    %2638 = vmatpush.msra.mxu0 %v117
    %2639 = vmatpush.msra.mxu0 %v113
    %2640 = vmatpush.msra.mxu0 %v109
    %2641 = vmatpush.msra.mxu0 %v105
    %2642 = vmatpush.msra.mxu0 %v101
    %2643 = vmatpush.msra.mxu0 %v97
    %2644 = vmatpush.msra.mxu0 %v93
    %2645 = vmatpush.msra.mxu0 %v89
    %2646 = vmatmul.f32.gmra.mxu0 %v2629
    %v2647 = vpop.f32.mrf.mxu0
    %v2648 = vadd.f32 %v249, %v2647
    %2649 = vdwg.mxu0
    %2650 = vmatpush.msra.mxu0 %v213
    %2651 = vmatpush.msra.mxu0 %v209
    %2652 = vmatpush.msra.mxu0 %v205
    %2653 = vmatpush.msra.mxu0 %v201
    %2654 = vmatpush.msra.mxu0 %v197
    %2655 = vmatpush.msra.mxu0 %v193
    %2656 = vmatpush.msra.mxu0 %v189
    %2657 = vmatpush.msra.mxu0 %v185
    %2658 = vmatpush.msra.mxu0 %v181
    %2659 = vmatpush.msra.mxu0 %v177
    %2660 = vmatpush.msra.mxu0 %v173
    %2661 = vmatpush.msra.mxu0 %v169
    %2662 = vmatpush.msra.mxu0 %v165
    %2663 = vmatpush.msra.mxu0 %v161
    %2664 = vmatpush.msra.mxu0 %v157
    %2665 = vmatpush.msra.mxu0 %v153
    %2666 = vmatmul.f32.gmra.mxu0 %v2512
    %v2667 = vpop.f32.mrf.mxu0
    %v2668 = vadd.f32 %v2648, %v2667
    %2669 = vdwg.mxu0
    %2670 = vmatpush.msra.mxu0 %v150
    %2671 = vmatpush.msra.mxu0 %v146
    %2672 = vmatpush.msra.mxu0 %v142
    %2673 = vmatpush.msra.mxu0 %v138
    %2674 = vmatpush.msra.mxu0 %v134
    %2675 = vmatpush.msra.mxu0 %v130
    %2676 = vmatpush.msra.mxu0 %v126
    %2677 = vmatpush.msra.mxu0 %v122
    %2678 = vmatpush.msra.mxu0 %v118
    %2679 = vmatpush.msra.mxu0 %v114
    %2680 = vmatpush.msra.mxu0 %v110
    %2681 = vmatpush.msra.mxu0 %v106
    %2682 = vmatpush.msra.mxu0 %v102
    %2683 = vmatpush.msra.mxu0 %v98
    %2684 = vmatpush.msra.mxu0 %v94
    %2685 = vmatpush.msra.mxu0 %v90
    %2686 = vmatmul.f32.gmra.mxu0 %v2629
    %v2687 = vpop.f32.mrf.mxu0
    %v2688 = vadd.f32 %v250, %v2687
    %2689 = vdwg.mxu0
    %2690 = vmatpush.msra.mxu0 %v214
    %2691 = vmatpush.msra.mxu0 %v210
    %2692 = vmatpush.msra.mxu0 %v206
    %2693 = vmatpush.msra.mxu0 %v202
    %2694 = vmatpush.msra.mxu0 %v198
    %2695 = vmatpush.msra.mxu0 %v194
    %2696 = vmatpush.msra.mxu0 %v190
    %2697 = vmatpush.msra.mxu0 %v186
    %2698 = vmatpush.msra.mxu0 %v182
    %2699 = vmatpush.msra.mxu0 %v178
    %2700 = vmatpush.msra.mxu0 %v174
    %2701 = vmatpush.msra.mxu0 %v170
    %2702 = vmatpush.msra.mxu0 %v166
    %2703 = vmatpush.msra.mxu0 %v162
    %2704 = vmatpush.msra.mxu0 %v158
    %2705 = vmatpush.msra.mxu0 %v154
    %2706 = vmatmul.f32.gmra.mxu0 %v2512
    %v2707 = vpop.f32.mrf.mxu0
    %v2708 = vadd.f32 %v2688, %v2707
    %2709 = vdwg.mxu0
    %2710 = vmatpush.msra.mxu0 %v151
    %2711 = vmatpush.msra.mxu0 %v147
    %2712 = vmatpush.msra.mxu0 %v143
    %2713 = vmatpush.msra.mxu0 %v139
    %2714 = vmatpush.msra.mxu0 %v135
    %2715 = vmatpush.msra.mxu0 %v131
    %2716 = vmatpush.msra.mxu0 %v127
    %2717 = vmatpush.msra.mxu0 %v123
    %2718 = vmatpush.msra.mxu0 %v119
    %2719 = vmatpush.msra.mxu0 %v115
    %2720 = vmatpush.msra.mxu0 %v111
    %2721 = vmatpush.msra.mxu0 %v107
    %2722 = vmatpush.msra.mxu0 %v103
    %2723 = vmatpush.msra.mxu0 %v99
    %2724 = vmatpush.msra.mxu0 %v95
    %2725 = vmatpush.msra.mxu0 %v91
    %2726 = vmatmul.f32.gmra.mxu0 %v2629
    %v2727 = vpop.f32.mrf.mxu0
    %v2728 = vadd.f32 %v251, %v2727
    %2729 = vdwg.mxu0
    %2730 = vmatpush.msra.mxu0 %v215
    %2731 = vmatpush.msra.mxu0 %v211
    %2732 = vmatpush.msra.mxu0 %v207
    %2733 = vmatpush.msra.mxu0 %v203
    %2734 = vmatpush.msra.mxu0 %v199
    %2735 = vmatpush.msra.mxu0 %v195
    %2736 = vmatpush.msra.mxu0 %v191
    %2737 = vmatpush.msra.mxu0 %v187
    %2738 = vmatpush.msra.mxu0 %v183
    %2739 = vmatpush.msra.mxu0 %v179
    %2740 = vmatpush.msra.mxu0 %v175
    %2741 = vmatpush.msra.mxu0 %v171
    %2742 = vmatpush.msra.mxu0 %v167
    %2743 = vmatpush.msra.mxu0 %v163
    %2744 = vmatpush.msra.mxu0 %v159
    %2745 = vmatpush.msra.mxu0 %v155
    %2746 = vmatmul.f32.gmra.mxu0 %v2512
    %v2747 = vpop.f32.mrf.mxu0
    %v2748 = vadd.f32 %v2728, %v2747
    %2749 = vdwg.mxu0
    %2750 = vmatpush.msra.mxu0 %v152
    %2751 = vmatpush.msra.mxu0 %v148
    %2752 = vmatpush.msra.mxu0 %v144
    %2753 = vmatpush.msra.mxu0 %v140
    %2754 = vmatpush.msra.mxu0 %v136
    %2755 = vmatpush.msra.mxu0 %v132
    %2756 = vmatpush.msra.mxu0 %v128
    %2757 = vmatpush.msra.mxu0 %v124
    %2758 = vmatpush.msra.mxu0 %v120
    %2759 = vmatpush.msra.mxu0 %v116
    %2760 = vmatpush.msra.mxu0 %v112
    %2761 = vmatpush.msra.mxu0 %v108
    %2762 = vmatpush.msra.mxu0 %v104
    %2763 = vmatpush.msra.mxu0 %v100
    %2764 = vmatpush.msra.mxu0 %v96
    %2765 = vmatpush.msra.mxu0 %v92
    %2766 = vmatmul.f32.gmra.mxu0 %v2629
    %v2767 = vpop.f32.mrf.mxu0
    %v2768 = vadd.f32 %v252, %v2767
    %2769 = vdwg.mxu0
    %2770 = vmatpush.msra.mxu0 %v216
    %2771 = vmatpush.msra.mxu0 %v212
    %2772 = vmatpush.msra.mxu0 %v208
    %2773 = vmatpush.msra.mxu0 %v204
    %2774 = vmatpush.msra.mxu0 %v200
    %2775 = vmatpush.msra.mxu0 %v196
    %2776 = vmatpush.msra.mxu0 %v192
    %2777 = vmatpush.msra.mxu0 %v188
    %2778 = vmatpush.msra.mxu0 %v184
    %2779 = vmatpush.msra.mxu0 %v180
    %2780 = vmatpush.msra.mxu0 %v176
    %2781 = vmatpush.msra.mxu0 %v172
    %2782 = vmatpush.msra.mxu0 %v168
    %2783 = vmatpush.msra.mxu0 %v164
    %2784 = vmatpush.msra.mxu0 %v160
    %2785 = vmatpush.msra.mxu0 %v156
    %2786 = vmatmul.f32.gmra.mxu0 %v2512
    %v2787 = vpop.f32.mrf.mxu0
    %v2788 = vadd.f32 %v2768, %v2787
    %2789 = vdwg.mxu0
    %v2790 = vxor.u32 %v2668, 2147483648
    %v2791 = vmul.f32 %v2790, 1.442695
    %v2792 = vpow.pop %v2791
    %v2793 = vadd.f32 %v2792, 1.0
    %v2794 = vrcp.pop %v2793
    %v2795 = vmul.f32 %v2793, %v2794
    %v2796 = vsub.f32 1.0, %v2795
    %v2797 = vmul.f32 %v2794, %v2796
    %v2798 = vadd.f32 %v2794, %v2797
    %vm2799 = vweird.f32 %v2793
    %vm2800 = vweird.f32 %v2794
    %vm2801 = vmor %vm2799, %vm2800
    %v2802 = vsel %vm2801, %v2794, %v2798
    %v2803 = vand.u32 2147483647, %v2793
    %vm2804 = vcmp.eq.f32.partialorder %v2803, 8.507059e+37
    %v2805 = vand.u32 %v2793, 2147483648
    %v2806 = vor.u32 1.1754944e-38, %v2805
    %v2807 = vsel %vm2804, %v2806, %v2802
    %v2808 = vmul.f32 1.0, %v2807
    %v2809 = vxor.u32 %v2708, 2147483648
    %v2810 = vmul.f32 %v2809, 1.442695
    %v2811 = vpow.pop %v2810
    %v2812 = vadd.f32 %v2811, 1.0
    %v2813 = vrcp.pop %v2812
    %v2814 = vmul.f32 %v2812, %v2813
    %v2815 = vsub.f32 1.0, %v2814
    %v2816 = vmul.f32 %v2813, %v2815
    %v2817 = vadd.f32 %v2813, %v2816
    %vm2818 = vweird.f32 %v2812
    %vm2819 = vweird.f32 %v2813
    %vm2820 = vmor %vm2818, %vm2819
    %v2821 = vsel %vm2820, %v2813, %v2817
    %v2822 = vand.u32 2147483647, %v2812
    %vm2823 = vcmp.eq.f32.partialorder %v2822, 8.507059e+37
    %v2824 = vand.u32 %v2812, 2147483648
    %v2825 = vor.u32 1.1754944e-38, %v2824
    %v2826 = vsel %vm2823, %v2825, %v2821
    %v2827 = vmul.f32 1.0, %v2826
    %v2828 = vmul.f32 %v2808, %v2788
    %v2829 = vadd.f32 %v2748, %v2828
    %v2830 = vtanh.pop %v2829
    %v2831 = vsub.f32 1.0, %v2827
    %v2832 = vmul.f32 %v2831, %v2830
    %v2833 = vmul.f32 %v2827, %v2512
    %v2834 = vadd.f32 %v2832, %v2833
    %v2835 = vmul.f32 %v2834, %v225
    %vm2836 = vcmask 1041408
    %v2837 = vsel %vm2836, %v2835, 0.0
    %2838 = vadd.xlane.f32.xlu0 %v2837
    %v2839 = vpop.xlane.xlu0 %2838
    %v2840 = vadd.f32 %v2839, %v226
    %vm2841 = vcmask 1024
    %2842 = vst.msk [vmem:[%s2] sm:$0x3] %vm2841, %v2840
    // Predicated region
    $region18: #{tpu_custom_call.1} parent=1 // pred_check
      _
    $region19: #{tpu_custom_call.1} parent=1 // pred_check_branch
      %2844 = sbr.rel (0) target = $region21
    $region20: #{tpu_custom_call.1} parent=1 // pred_region
      _
    $region21: #{tpu_custom_call.1} parent=1 // pred_fallthru
      _
    // Predicated region
    $region22: #{tpu_custom_call.1} parent=1 // pred_check
      _
    $region23: #{tpu_custom_call.1} parent=1 // pred_check_branch
      %2846 = sbr.rel (0) target = $region25
    $region24: #{tpu_custom_call.1} parent=1 // pred_region
      _
    $region25: #{tpu_custom_call.1} parent=1 // pred_fallthru
      _
    %2847 = vsyncpa [#allocation3], 1
    %2848 = vsyncpa [#allocation5], 1

</llo_original>
